<compile_context>
chip_gen: v6e
topology: v6e:2x2x1
jax: 0.10.0
libtpu: 0.0.40
codegen_flags: <defaults>
</compile_context>

<pallas_src>
import jax
import jax.numpy as jnp
from jax.experimental import pallas as pl
from jax.experimental.pallas import tpu as pltpu

EPS = 1e-3


def _bn_kernel(x_ref, w_ref, b_ref, o_ref):
    # x_ref / o_ref: [N, TC, HW]  (channels on sublanes, spatial on lanes)
    # w_ref / b_ref: [TC, 1]
    x = x_ref[...].astype(jnp.float32)
    n, tc, hw = x.shape
    inv_cnt = 1.0 / (n * hw)

    # One pass over the slab: per-channel sum and sum-of-squares (XLU reduce).
    s = jnp.sum(x, axis=(0, 2), keepdims=True)          # [1, TC, 1]
    ss = jnp.sum(x * x, axis=(0, 2), keepdims=True)     # [1, TC, 1]
    mean = s * inv_cnt
    # Biased variance (denominator N*H*W), matching PyTorch's normalization.
    var = jnp.maximum(ss * inv_cnt - mean * mean, 0.0)
    inv = jax.lax.rsqrt(var + EPS)                       # EUP slot

    # Fold normalization + affine into a single FMA per element.
    w = w_ref[...].astype(jnp.float32)                   # [TC, 1] -> bcast
    b = b_ref[...].astype(jnp.float32)
    scale = inv * w                                      # [1, TC, 1]
    shift = b - mean * scale                             # [1, TC, 1]
    o_ref[...] = (x * scale + shift).astype(o_ref.dtype)


def _pick_channel_tile(c, n, hw, dtype_bytes=4, vmem_budget=12 * 1024 * 1024):
    """Largest sublane-aligned channel tile that fits the VMEM budget.

    Budget accounts for input + output, double-buffered, with lane padding.
    Prefers >= 2 blocks so DMAs overlap compute and megacore can split work.
    """
    hw_pad = -(-hw // 128) * 128 if hw > 128 else 128

    def block_bytes(t):
        return 4 * n * t * hw_pad * dtype_bytes  # (in + out) x double-buffer

    cands = [t for t in range(8, c + 1, 8) if c % t == 0]
    if not cands:
        return c  # tiny / odd channel count: single block over all channels
    fitting = [t for t in cands if block_bytes(t) <= vmem_budget]
    if not fitting:
        return min(cands)
    proper = [t for t in fitting if t < c] or fitting
    return max(proper)


def batchnorm2d_pallas(x_nchw, weight, bias):
    n, c, h, w = x_nchw.shape
    hw = h * w
    x3d = x_nchw.reshape(n, c, hw)   # free reshape, native NCHW memory order
    w2d = weight.reshape(c, 1)
    b2d = bias.reshape(c, 1)

    tc = _pick_channel_tile(c, n, hw, dtype_bytes=x_nchw.dtype.itemsize)
    grid = (c // tc,)

    out3d = pl.pallas_call(
        _bn_kernel,
        out_shape=jax.ShapeDtypeStruct((n, c, hw), x_nchw.dtype),
        grid=grid,
        in_specs=[
            pl.BlockSpec((n, tc, hw), lambda i: (0, i, 0)),
            pl.BlockSpec((tc, 1), lambda i: (i, 0)),
            pl.BlockSpec((tc, 1), lambda i: (i, 0)),
        ],
        out_specs=pl.BlockSpec((n, tc, hw), lambda i: (0, i, 0)),
        compiler_params=pltpu.CompilerParams(
            dimension_semantics=("parallel",),   # channel blocks are independent
            vmem_limit_bytes=32 * 1024 * 1024,
        ),
    )(x3d, w2d, b2d)

    return out3d.reshape(n, c, h, w)


if __name__ == "__main__":
    key = jax.random.PRNGKey(0)
    kx, kw, kb = jax.random.split(key, 3)

    # shape implied by the module: x453 = randn(1, 1344, 14, 14)
    N, C, H, W = 1, 1344, 14, 14
    x = jax.random.normal(kx, (N, C, H, W), dtype=jnp.float32)
    weight = jax.random.normal(kw, (C,), dtype=jnp.float32) * 0.1 + 1.0
    bias = jax.random.normal(kb, (C,), dtype=jnp.float32) * 0.1

    out = batchnorm2d_pallas(x, weight, bias)
    out = jax.block_until_ready(out)

    # lightweight self-check against plain-JAX reference (training-mode BN)
    xr = x.astype(jnp.float32)
    mean = xr.mean(axis=(0, 2, 3), keepdims=True)
    var = ((xr - mean) ** 2).mean(axis=(0, 2, 3), keepdims=True)
    ref = (xr - mean) / jnp.sqrt(var + EPS) * weight[None, :, None, None] \
        + bias[None, :, None, None]
    assert out.shape == (N, C, H, W)
    assert jnp.max(jnp.abs(out - ref)) < 1e-4

    print("KERNEL_OK")
</pallas_src>

<mosaic_0001>
module attributes {stable_mosaic.version = 11 : i64} {
  func.func @_bn_kernel(%arg0: i32, %arg1: memref<1x672x196xf32, #tpu.memory_space<vmem>>, %arg2: memref<672x1xf32, #tpu.memory_space<vmem>>, %arg3: memref<672x1xf32, #tpu.memory_space<vmem>>, %arg4: memref<1x672x196xf32, #tpu.memory_space<vmem>>) attributes {dimension_semantics = [#tpu.dimension_semantics<parallel>], iteration_bounds = array<i64: 2>, scalar_prefetch = 0 : i64, scratch_operands = 0 : i64, tpu.core_type = #tpu.core_type<tc>, window_params = [{transform_indices = @transform_0, window_bounds = array<i64: 1, 672, 196>}, {transform_indices = @transform_1, window_bounds = array<i64: 672, 1>}, {transform_indices = @transform_2, window_bounds = array<i64: 672, 1>}, {transform_indices = @transform_3, window_bounds = array<i64: 1, 672, 196>}]} {
    %c0 = arith.constant 0 : index
    %c0_0 = arith.constant 0 : index
    %c0_1 = arith.constant 0 : index
    %0 = vector.load %arg1[%c0, %c0_0, %c0_1] : memref<1x672x196xf32, #tpu.memory_space<vmem>>, vector<1x672x196xf32>
    %cst = arith.constant dense<0.000000e+00> : vector<672xf32>
    %1 = vector.multi_reduction <add>, %0, %cst [0, 2] : vector<1x672x196xf32> to vector<672xf32>
    %2 = vector.shape_cast %1 : vector<672xf32> to vector<1x672x1xf32>
    %3 = arith.mulf %0, %0 : vector<1x672x196xf32>
    %cst_2 = arith.constant dense<0.000000e+00> : vector<672xf32>
    %4 = vector.multi_reduction <add>, %3, %cst_2 [0, 2] : vector<1x672x196xf32> to vector<672xf32>
    %5 = vector.shape_cast %4 : vector<672xf32> to vector<1x672x1xf32>
    %cst_3 = arith.constant 0.00510204071 : f32
    %6 = vector.broadcast %cst_3 : f32 to vector<1x672x1xf32>
    %7 = arith.mulf %2, %6 : vector<1x672x1xf32>
    %cst_4 = arith.constant 0.00510204071 : f32
    %8 = vector.broadcast %cst_4 : f32 to vector<1x672x1xf32>
    %9 = arith.mulf %5, %8 : vector<1x672x1xf32>
    %10 = arith.mulf %7, %7 : vector<1x672x1xf32>
    %11 = arith.subf %9, %10 : vector<1x672x1xf32>
    %cst_5 = arith.constant 0.000000e+00 : f32
    %12 = vector.broadcast %cst_5 : f32 to vector<1x672x1xf32>
    %13 = arith.maximumf %11, %12 : vector<1x672x1xf32>
    %cst_6 = arith.constant 1.000000e-03 : f32
    %14 = vector.broadcast %cst_6 : f32 to vector<1x672x1xf32>
    %15 = arith.addf %13, %14 : vector<1x672x1xf32>
    %16 = math.rsqrt %15 : vector<1x672x1xf32>
    %c0_7 = arith.constant 0 : index
    %c0_8 = arith.constant 0 : index
    %17 = vector.load %arg2[%c0_7, %c0_8] : memref<672x1xf32, #tpu.memory_space<vmem>>, vector<672x1xf32>
    %c0_9 = arith.constant 0 : index
    %c0_10 = arith.constant 0 : index
    %18 = vector.load %arg3[%c0_9, %c0_10] : memref<672x1xf32, #tpu.memory_space<vmem>>, vector<672x1xf32>
    %19 = vector.shape_cast %17 : vector<672x1xf32> to vector<1x672x1xf32>
    %20 = arith.mulf %16, %19 : vector<1x672x1xf32>
    %21 = arith.mulf %7, %20 : vector<1x672x1xf32>
    %22 = vector.shape_cast %18 : vector<672x1xf32> to vector<1x672x1xf32>
    %23 = arith.subf %22, %21 : vector<1x672x1xf32>
    %24 = vector.broadcast %20 : vector<1x672x1xf32> to vector<1x672x196xf32>
    %25 = arith.mulf %0, %24 : vector<1x672x196xf32>
    %26 = vector.broadcast %23 : vector<1x672x1xf32> to vector<1x672x196xf32>
    %27 = arith.addf %25, %26 : vector<1x672x196xf32>
    %c0_11 = arith.constant 0 : index
    %c0_12 = arith.constant 0 : index
    %c0_13 = arith.constant 0 : index
    %28 = vector.load %arg4[%c0_11, %c0_12, %c0_13] : memref<1x672x196xf32, #tpu.memory_space<vmem>>, vector<1x672x196xf32>
    tpu.vector_store %arg4[%c0_11, %c0_12, %c0_13], %27 {strides = array<i32>} : memref<1x672x196xf32, #tpu.memory_space<vmem>>, vector<1x672x196xf32>,
    return
  }
  func.func @transform_0(%arg0: i32) -> (i32, i32, i32) {
    %c0_i32 = arith.constant 0 : i32
    %c0_i32_0 = arith.constant 0 : i32
    %c0_i32_1 = arith.constant 0 : i32
    return %c0_i32, %arg0, %c0_i32_0 : i32, i32, i32
  }
  func.func @transform_1(%arg0: i32) -> (i32, i32) {
    %c0_i32 = arith.constant 0 : i32
    %c0_i32_0 = arith.constant 0 : i32
    return %arg0, %c0_i32 : i32, i32
  }
  func.func @transform_2(%arg0: i32) -> (i32, i32) {
    %c0_i32 = arith.constant 0 : i32
    %c0_i32_0 = arith.constant 0 : i32
    return %arg0, %c0_i32 : i32, i32
  }
  func.func @transform_3(%arg0: i32) -> (i32, i32, i32) {
    %c0_i32 = arith.constant 0 : i32
    %c0_i32_0 = arith.constant 0 : i32
    %c0_i32_1 = arith.constant 0 : i32
    return %c0_i32, %arg0, %c0_i32_0 : i32, i32, i32
  }
}

</mosaic_0001>

<llo_original>
// kernel: tpu_custom_call.1
$region0: #{tpu_custom_call.1}
  #allocation0 [shape = 'u32[]', space=smem, size = 0x4, offset = 0x4, fixed_abs, tag = 'smem constant byte address 0x4 - core index']
  #allocation1 [shape = 'u32[144,128]{1,0:T(1,128)}', space=vmem, size = 0x12000, scoped, tag = 'internal scratch']
  %s0 = inlined_call_operand.vmem [shape: f32[1,1344,196], index: 0, kind: input, shape index: {}]
  %s1 = inlined_call_operand.vmem [shape: f32[1344,1], index: 1, kind: input, shape index: {}]
  %s2 = inlined_call_operand.vmem [shape: f32[1344,1], index: 2, kind: input, shape index: {}]
  %s3 = inlined_call_operand.vmem [shape: f32[1,1344,196], index: 3, kind: output, shape index: {}]
  %s4 = sld [smem:[#allocation0]]
  $region45: #{tpu_custom_call.1} parent=0
    _
  %s6 = ssub.s32 1, %s4
  %s7 = scalar_select 0, %s6, %s4
  loop: start=0, step=1, limit=4
  $region2: #{tpu_custom_call.1} parent=0 // loop_pre_header
    _
  $region3: #{tpu_custom_call.1} parent=0 // loop_header
    %s9 = sphi 0, %s13
    %p10 = scmp.ge.s32.totalorder %s9, 4
    %s19 = sphi 0, %s21
    %s22 = sphi 0, %s19
    %s23 = sphi 0, %s22
    %s39 = sphi 0, %s23
    %s45 = sphi 0, %s47
    %s48 = sphi 0, %s45
    %s49 = sphi 0, %s48
    %s65 = sphi 0, %s49
    %s71 = sphi 0, %s73
    %s74 = sphi 0, %s71
    %s75 = sphi 0, %s74
    %s91 = sphi 0, %s75
    %s97 = sphi 0, %s99
    %s100 = sphi 0, %s97
    %s101 = sphi 0, %s100
    %s117 = sphi 0, %s101
  $region4: #{tpu_custom_call.1} parent=0 // loop_header_branch
    %12 = sbr.rel (%p10) target = $region8
  $region5: #{tpu_custom_call.1} parent=0 // loop_body
    %s14 = ssub.s32 %s9, 1
    %s15 = ssub.s32 %s9, 2
    %s16 = sadd.s32 %s9, 1
    %s17 = ssub.s32 %s9, %s16
    %p18 = scmp.eq.s32.totalorder %s17, 0
    %s20 = sadd.s32 %s19, 1
    %s21 = scalar_select %p18, %s19, %s20
    %p24 = pneg %p18
    %p25 = scmp.eq.s32.totalorder %s9, 1
    %p26 = por %p24, %p25
    %p27 = scmp.ne.s32.totalorder %s19, %s22
    %p28 = scmp.eq.s32.totalorder %s9, 0
    %p29 = por %p27, %p28
    %p30 = scmp.ne.s32.totalorder %s19, %s22
    %p31 = scmp.eq.s32.totalorder %s14, 1
    %p32 = por %p30, %p31
    %p33 = scmp.ne.s32.totalorder %s22, %s23
    %p34 = scmp.eq.s32.totalorder %s14, 0
    %p35 = por %p33, %p34
    %p36 = scmp.ne.s32.totalorder %s22, %s23
    %p37 = scmp.eq.s32.totalorder %s15, 1
    %p38 = por %p36, %p37
    %p40 = scmp.ne.s32.totalorder %s23, %s39
    %p41 = scmp.eq.s32.totalorder %s15, 0
    %p42 = por %p40, %p41
    %s43 = ssub.s32 %s9, %s16
    %p44 = scmp.eq.s32.totalorder %s43, 0
    %s46 = sadd.s32 %s45, 1
    %s47 = scalar_select %p44, %s45, %s46
    %p50 = pneg %p44
    %p51 = scmp.eq.s32.totalorder %s9, 1
    %p52 = por %p50, %p51
    %p53 = scmp.ne.s32.totalorder %s45, %s48
    %p54 = scmp.eq.s32.totalorder %s9, 0
    %p55 = por %p53, %p54
    %p56 = scmp.ne.s32.totalorder %s45, %s48
    %p57 = scmp.eq.s32.totalorder %s14, 1
    %p58 = por %p56, %p57
    %p59 = scmp.ne.s32.totalorder %s48, %s49
    %p60 = scmp.eq.s32.totalorder %s14, 0
    %p61 = por %p59, %p60
    %p62 = scmp.ne.s32.totalorder %s48, %s49
    %p63 = scmp.eq.s32.totalorder %s15, 1
    %p64 = por %p62, %p63
    %p66 = scmp.ne.s32.totalorder %s49, %s65
    %p67 = scmp.eq.s32.totalorder %s15, 0
    %p68 = por %p66, %p67
    %s69 = ssub.s32 %s9, %s16
    %p70 = scmp.eq.s32.totalorder %s69, 0
    %s72 = sadd.s32 %s71, 1
    %s73 = scalar_select %p70, %s71, %s72
    %p76 = pneg %p70
    %p77 = scmp.eq.s32.totalorder %s9, 1
    %p78 = por %p76, %p77
    %p79 = scmp.ne.s32.totalorder %s71, %s74
    %p80 = scmp.eq.s32.totalorder %s9, 0
    %p81 = por %p79, %p80
    %p82 = scmp.ne.s32.totalorder %s71, %s74
    %p83 = scmp.eq.s32.totalorder %s14, 1
    %p84 = por %p82, %p83
    %p85 = scmp.ne.s32.totalorder %s74, %s75
    %p86 = scmp.eq.s32.totalorder %s14, 0
    %p87 = por %p85, %p86
    %p88 = scmp.ne.s32.totalorder %s74, %s75
    %p89 = scmp.eq.s32.totalorder %s15, 1
    %p90 = por %p88, %p89
    %p92 = scmp.ne.s32.totalorder %s75, %s91
    %p93 = scmp.eq.s32.totalorder %s15, 0
    %p94 = por %p92, %p93
    %s95 = ssub.s32 %s9, %s16
    %p96 = scmp.eq.s32.totalorder %s95, 0
    %s98 = sadd.s32 %s97, 1
    %s99 = scalar_select %p96, %s97, %s98
    %p102 = pneg %p96
    %p103 = scmp.eq.s32.totalorder %s9, 1
    %p104 = por %p102, %p103
    %p105 = scmp.ne.s32.totalorder %s97, %s100
    %p106 = scmp.eq.s32.totalorder %s9, 0
    %p107 = por %p105, %p106
    %p108 = scmp.ne.s32.totalorder %s97, %s100
    %p109 = scmp.eq.s32.totalorder %s14, 1
    %p110 = por %p108, %p109
    %p111 = scmp.ne.s32.totalorder %s100, %s101
    %p112 = scmp.eq.s32.totalorder %s14, 0
    %p113 = por %p111, %p112
    %p114 = scmp.ne.s32.totalorder %s100, %s101
    %p115 = scmp.eq.s32.totalorder %s15, 1
    %p116 = por %p114, %p115
    %p118 = scmp.ne.s32.totalorder %s101, %s117
    %p119 = scmp.eq.s32.totalorder %s15, 0
    %p120 = por %p118, %p119
    %p121 = scmp.le.s32.totalorder 1, %s9
    %p122 = scmp.lt.s32.totalorder %s9, 3
    %p123 = pnand %p121, %p122
    %p124 = pneg %p123
    // Predicated region
    $region9: #{tpu_custom_call.1} parent=5 // pred_check
      _
    $region10: #{tpu_custom_call.1} parent=5 // pred_check_branch
      %126 = sbr.rel (%p123) target = $region12
    $region11: #{tpu_custom_call.1} parent=5 // pred_region
      %s127 = ssub.s32 %s9, 1
    $region12: #{tpu_custom_call.1} parent=5 // pred_fallthru
      _
    %p128 = scmp.lt.s32.totalorder %s9, 2
    // Predicated region
    $region13: #{tpu_custom_call.1} parent=5 // pred_check
      %p129 = pneg %p128
    $region14: #{tpu_custom_call.1} parent=5 // pred_check_branch
      %131 = sbr.rel (%p129) target = $region16
    $region15: #{tpu_custom_call.1} parent=5 // pred_region
      // Predicated region
      $region17: #{tpu_custom_call.1} parent=15 // pred_check
        %p132 = pneg %p29
      $region18: #{tpu_custom_call.1} parent=15 // pred_check_branch
        %134 = sbr.rel (%p132) target = $region20
      $region19: #{tpu_custom_call.1} parent=15 // pred_region
        %s135 = smul.u32 84, %s9
        %p136 = scmp.lt.s32.totalorder %s135, 167
        %s137 = scalar_select %p136, %s135, 167
        %s138 = smul.addr %s137, 2
        %s139 = smul.addr %s138, 8
        %s140 = scalar_lea.vmem %s0, %s139
        %s141 = smul.u32 84, %s9
      $region20: #{tpu_custom_call.1} parent=15 // pred_fallthru
        _
      // Predicated region
      $region21: #{tpu_custom_call.1} parent=15 // pred_check
        %p142 = pneg %p55
      $region22: #{tpu_custom_call.1} parent=15 // pred_check_branch
        %144 = sbr.rel (%p142) target = $region24
      $region23: #{tpu_custom_call.1} parent=15 // pred_region
        %s145 = smul.u32 84, %s9
        %p146 = scmp.lt.s32.totalorder %s145, 167
        %s147 = scalar_select %p146, %s145, 167
        %s148 = smul.addr %s147, 8
        %s149 = scalar_lea.vmem %s1, %s148
        %s150 = smul.u32 84, %s9
      $region24: #{tpu_custom_call.1} parent=15 // pred_fallthru
        _
      // Predicated region
      $region25: #{tpu_custom_call.1} parent=15 // pred_check
        %p151 = pneg %p81
      $region26: #{tpu_custom_call.1} parent=15 // pred_check_branch
        %153 = sbr.rel (%p151) target = $region28
      $region27: #{tpu_custom_call.1} parent=15 // pred_region
        %s154 = smul.u32 84, %s9
        %p155 = scmp.lt.s32.totalorder %s154, 167
        %s156 = scalar_select %p155, %s154, 167
        %s157 = smul.addr %s156, 8
        %s158 = scalar_lea.vmem %s2, %s157
        %s159 = smul.u32 84, %s9
      $region28: #{tpu_custom_call.1} parent=15 // pred_fallthru
        _
    $region16: #{tpu_custom_call.1} parent=5 // pred_fallthru
      _
    %p160 = scmp.le.s32.totalorder 1, %s9
    %p161 = scmp.lt.s32.totalorder %s9, 3
    %p162 = pnand %p160, %p161
    %p163 = pneg %p162
    // Predicated region
    $region29: #{tpu_custom_call.1} parent=5 // pred_check
      _
    $region30: #{tpu_custom_call.1} parent=5 // pred_check_branch
      %165 = sbr.rel (%p162) target = $region32
    $region31: #{tpu_custom_call.1} parent=5 // pred_region
      %s166 = ssub.s32 %s9, 1
      %s167 = smul.u32 84, %s14
      %p168 = scmp.lt.s32.totalorder %s167, 167
      %s169 = scalar_select %p168, %s167, 167
      %s170 = smul.addr %s169, 2
      %s171 = smul.addr %s170, 8
      %s172 = scalar_lea.vmem %s0, %s171
      %p173 = pneg %p35
      %p174 = pneg %p32
      %s175 = smul.u32 84, %s14
      %p176 = scmp.lt.s32.totalorder %s175, 167
      %s177 = scalar_select %p176, %s175, 167
      %s178 = smul.addr %s177, 8
      %s179 = scalar_lea.vmem %s1, %s178
      %p180 = pneg %p61
      %p181 = pneg %p58
      %s182 = smul.u32 84, %s14
      %p183 = scmp.lt.s32.totalorder %s182, 167
      %s184 = scalar_select %p183, %s182, 167
      %s185 = smul.addr %s184, 8
      %s186 = scalar_lea.vmem %s2, %s185
      %p187 = pneg %p87
      %p188 = pneg %p84
      %p189 = pneg %p113
      %p190 = pneg %p110
      %s191 = smul.u32 84, %s14
      %p192 = scmp.lt.s32.totalorder %s191, 167
      %s193 = scalar_select %p192, %s191, 167
      %s194 = smul.addr %s193, 2
      %s195 = smul.addr %s194, 8
      %s196 = scalar_lea.vmem %s3, %s195
      %s197 = smul.u32 84, %s14
      %p198 = scmp.lt.s32.totalorder %s197, 167
      %s199 = scalar_select %p198, %s197, 167
      %s200 = smul.addr %s199, 2
      %s201 = smul.addr %s200, 8
      %s202 = scalar_lea.vmem %s0, %s201
      %s203 = smul.u32 84, %s14
      %s204 = smul.u32 84, %s14
      %p205 = scmp.lt.s32.totalorder %s204, 167
      %s206 = scalar_select %p205, %s204, 167
      %s207 = smul.addr %s206, 8
      %s208 = scalar_lea.vmem %s1, %s207
      %s209 = smul.u32 84, %s14
      %s210 = smul.u32 84, %s14
      %p211 = scmp.lt.s32.totalorder %s210, 167
      %s212 = scalar_select %p211, %s210, 167
      %s213 = smul.addr %s212, 8
      %s214 = scalar_lea.vmem %s2, %s213
      %s215 = smul.u32 84, %s14
      %s216 = smul.u32 84, %s14
      %p217 = scmp.lt.s32.totalorder %s216, 167
      %s218 = scalar_select %p217, %s216, 167
      %s219 = smul.addr %s218, 2
      %s220 = smul.addr %s219, 8
      %s221 = scalar_lea.vmem %s3, %s220
      %s222 = smul.u32 84, %s14
      %v223 = vld [vmem:[%s202] sm:$0xff]
      %v224 = vld [vmem:[%s202 + $0x8] sm:$0xff]
      %v225 = vld [vmem:[%s202 + $0x10] sm:$0xff]
      %v226 = vld [vmem:[%s202 + $0x18] sm:$0xff]
      %v227 = vld [vmem:[%s202 + $0x20] sm:$0xff]
      %v228 = vld [vmem:[%s202 + $0x28] sm:$0xff]
      %v229 = vld [vmem:[%s202 + $0x30] sm:$0xff]
      %v230 = vld [vmem:[%s202 + $0x38] sm:$0xff]
      %v231 = vld [vmem:[%s202 + $0x40] sm:$0xff]
      %v232 = vld [vmem:[%s202 + $0x48] sm:$0xff]
      %v233 = vld [vmem:[%s202 + $0x50] sm:$0xff]
      %v234 = vld [vmem:[%s202 + $0x58] sm:$0xff]
      %v235 = vld [vmem:[%s202 + $0x60] sm:$0xff]
      %v236 = vld [vmem:[%s202 + $0x68] sm:$0xff]
      %v237 = vld [vmem:[%s202 + $0x70] sm:$0xff]
      %v238 = vld [vmem:[%s202 + $0x78] sm:$0xff]
      %v239 = vld [vmem:[%s202 + $0x80] sm:$0xff]
      %v240 = vld [vmem:[%s202 + $0x88] sm:$0xff]
      %v241 = vld [vmem:[%s202 + $0x90] sm:$0xff]
      %v242 = vld [vmem:[%s202 + $0x98] sm:$0xff]
      %v243 = vld [vmem:[%s202 + $0xa0] sm:$0xff]
      %v244 = vld [vmem:[%s202 + $0xa8] sm:$0xff]
      %v245 = vld [vmem:[%s202 + $0xb0] sm:$0xff]
      %v246 = vld [vmem:[%s202 + $0xb8] sm:$0xff]
      %v247 = vld [vmem:[%s202 + $0xc0] sm:$0xff]
      %v248 = vld [vmem:[%s202 + $0xc8] sm:$0xff]
      %v249 = vld [vmem:[%s202 + $0xd0] sm:$0xff]
      %v250 = vld [vmem:[%s202 + $0xd8] sm:$0xff]
      %v251 = vld [vmem:[%s202 + $0xe0] sm:$0xff]
      %v252 = vld [vmem:[%s202 + $0xe8] sm:$0xff]
      %v253 = vld [vmem:[%s202 + $0xf0] sm:$0xff]
      %v254 = vld [vmem:[%s202 + $0xf8] sm:$0xff]
      %v255 = vld [vmem:[%s202 + $0x100] sm:$0xff]
      %v256 = vld [vmem:[%s202 + $0x108] sm:$0xff]
      %v257 = vld [vmem:[%s202 + $0x110] sm:$0xff]
      %v258 = vld [vmem:[%s202 + $0x118] sm:$0xff]
      %v259 = vld [vmem:[%s202 + $0x120] sm:$0xff]
      %v260 = vld [vmem:[%s202 + $0x128] sm:$0xff]
      %v261 = vld [vmem:[%s202 + $0x130] sm:$0xff]
      %v262 = vld [vmem:[%s202 + $0x138] sm:$0xff]
      %v263 = vld [vmem:[%s202 + $0x140] sm:$0xff]
      %v264 = vld [vmem:[%s202 + $0x148] sm:$0xff]
      %v265 = vld [vmem:[%s202 + $0x150] sm:$0xff]
      %v266 = vld [vmem:[%s202 + $0x158] sm:$0xff]
      %v267 = vld [vmem:[%s202 + $0x160] sm:$0xff]
      %v268 = vld [vmem:[%s202 + $0x168] sm:$0xff]
      %v269 = vld [vmem:[%s202 + $0x170] sm:$0xff]
      %v270 = vld [vmem:[%s202 + $0x178] sm:$0xff]
      %v271 = vld [vmem:[%s202 + $0x180] sm:$0xff]
      %v272 = vld [vmem:[%s202 + $0x188] sm:$0xff]
      %v273 = vld [vmem:[%s202 + $0x190] sm:$0xff]
      %v274 = vld [vmem:[%s202 + $0x198] sm:$0xff]
      %v275 = vld [vmem:[%s202 + $0x1a0] sm:$0xff]
      %v276 = vld [vmem:[%s202 + $0x1a8] sm:$0xff]
      %v277 = vld [vmem:[%s202 + $0x1b0] sm:$0xff]
      %v278 = vld [vmem:[%s202 + $0x1b8] sm:$0xff]
      %v279 = vld [vmem:[%s202 + $0x1c0] sm:$0xff]
      %v280 = vld [vmem:[%s202 + $0x1c8] sm:$0xff]
      %v281 = vld [vmem:[%s202 + $0x1d0] sm:$0xff]
      %v282 = vld [vmem:[%s202 + $0x1d8] sm:$0xff]
      %v283 = vld [vmem:[%s202 + $0x1e0] sm:$0xff]
      %v284 = vld [vmem:[%s202 + $0x1e8] sm:$0xff]
      %v285 = vld [vmem:[%s202 + $0x1f0] sm:$0xff]
      %v286 = vld [vmem:[%s202 + $0x1f8] sm:$0xff]
      %v287 = vld [vmem:[%s202 + $0x200] sm:$0xff]
      %v288 = vld [vmem:[%s202 + $0x208] sm:$0xff]
      %v289 = vld [vmem:[%s202 + $0x210] sm:$0xff]
      %v290 = vld [vmem:[%s202 + $0x218] sm:$0xff]
      %v291 = vld [vmem:[%s202 + $0x220] sm:$0xff]
      %v292 = vld [vmem:[%s202 + $0x228] sm:$0xff]
      %v293 = vld [vmem:[%s202 + $0x230] sm:$0xff]
      %v294 = vld [vmem:[%s202 + $0x238] sm:$0xff]
      %v295 = vld [vmem:[%s202 + $0x240] sm:$0xff]
      %v296 = vld [vmem:[%s202 + $0x248] sm:$0xff]
      %v297 = vld [vmem:[%s202 + $0x250] sm:$0xff]
      %v298 = vld [vmem:[%s202 + $0x258] sm:$0xff]
      %v299 = vld [vmem:[%s202 + $0x260] sm:$0xff]
      %v300 = vld [vmem:[%s202 + $0x268] sm:$0xff]
      %v301 = vld [vmem:[%s202 + $0x270] sm:$0xff]
      %v302 = vld [vmem:[%s202 + $0x278] sm:$0xff]
      %v303 = vld [vmem:[%s202 + $0x280] sm:$0xff]
      %v304 = vld [vmem:[%s202 + $0x288] sm:$0xff]
      %v305 = vld [vmem:[%s202 + $0x290] sm:$0xff]
      %v306 = vld [vmem:[%s202 + $0x298] sm:$0xff]
      %v307 = vld [vmem:[%s202 + $0x2a0] sm:$0xff]
      %v308 = vld [vmem:[%s202 + $0x2a8] sm:$0xff]
      %v309 = vld [vmem:[%s202 + $0x2b0] sm:$0xff]
      %v310 = vld [vmem:[%s202 + $0x2b8] sm:$0xff]
      %v311 = vld [vmem:[%s202 + $0x2c0] sm:$0xff]
      %v312 = vld [vmem:[%s202 + $0x2c8] sm:$0xff]
      %v313 = vld [vmem:[%s202 + $0x2d0] sm:$0xff]
      %v314 = vld [vmem:[%s202 + $0x2d8] sm:$0xff]
      %v315 = vld [vmem:[%s202 + $0x2e0] sm:$0xff]
      %v316 = vld [vmem:[%s202 + $0x2e8] sm:$0xff]
      %v317 = vld [vmem:[%s202 + $0x2f0] sm:$0xff]
      %v318 = vld [vmem:[%s202 + $0x2f8] sm:$0xff]
      %v319 = vld [vmem:[%s202 + $0x300] sm:$0xff]
      %v320 = vld [vmem:[%s202 + $0x308] sm:$0xff]
      %v321 = vld [vmem:[%s202 + $0x310] sm:$0xff]
      %v322 = vld [vmem:[%s202 + $0x318] sm:$0xff]
      %v323 = vld [vmem:[%s202 + $0x320] sm:$0xff]
      %v324 = vld [vmem:[%s202 + $0x328] sm:$0xff]
      %v325 = vld [vmem:[%s202 + $0x330] sm:$0xff]
      %v326 = vld [vmem:[%s202 + $0x338] sm:$0xff]
      %v327 = vld [vmem:[%s202 + $0x340] sm:$0xff]
      %v328 = vld [vmem:[%s202 + $0x348] sm:$0xff]
      %v329 = vld [vmem:[%s202 + $0x350] sm:$0xff]
      %v330 = vld [vmem:[%s202 + $0x358] sm:$0xff]
      %v331 = vld [vmem:[%s202 + $0x360] sm:$0xff]
      %v332 = vld [vmem:[%s202 + $0x368] sm:$0xff]
      %v333 = vld [vmem:[%s202 + $0x370] sm:$0xff]
      %v334 = vld [vmem:[%s202 + $0x378] sm:$0xff]
      %v335 = vld [vmem:[%s202 + $0x380] sm:$0xff]
      %v336 = vld [vmem:[%s202 + $0x388] sm:$0xff]
      %v337 = vld [vmem:[%s202 + $0x390] sm:$0xff]
      %v338 = vld [vmem:[%s202 + $0x398] sm:$0xff]
      %v339 = vld [vmem:[%s202 + $0x3a0] sm:$0xff]
      %v340 = vld [vmem:[%s202 + $0x3a8] sm:$0xff]
      %v341 = vld [vmem:[%s202 + $0x3b0] sm:$0xff]
      %v342 = vld [vmem:[%s202 + $0x3b8] sm:$0xff]
      %v343 = vld [vmem:[%s202 + $0x3c0] sm:$0xff]
      %v344 = vld [vmem:[%s202 + $0x3c8] sm:$0xff]
      %v345 = vld [vmem:[%s202 + $0x3d0] sm:$0xff]
      %v346 = vld [vmem:[%s202 + $0x3d8] sm:$0xff]
      %v347 = vld [vmem:[%s202 + $0x3e0] sm:$0xff]
      %v348 = vld [vmem:[%s202 + $0x3e8] sm:$0xff]
      %v349 = vld [vmem:[%s202 + $0x3f0] sm:$0xff]
      %v350 = vld [vmem:[%s202 + $0x3f8] sm:$0xff]
      %v351 = vld [vmem:[%s202 + $0x400] sm:$0xff]
      %v352 = vld [vmem:[%s202 + $0x408] sm:$0xff]
      %v353 = vld [vmem:[%s202 + $0x410] sm:$0xff]
      %v354 = vld [vmem:[%s202 + $0x418] sm:$0xff]
      %v355 = vld [vmem:[%s202 + $0x420] sm:$0xff]
      %v356 = vld [vmem:[%s202 + $0x428] sm:$0xff]
      %v357 = vld [vmem:[%s202 + $0x430] sm:$0xff]
      %v358 = vld [vmem:[%s202 + $0x438] sm:$0xff]
      %v359 = vld [vmem:[%s202 + $0x440] sm:$0xff]
      %v360 = vld [vmem:[%s202 + $0x448] sm:$0xff]
      %v361 = vld [vmem:[%s202 + $0x450] sm:$0xff]
      %v362 = vld [vmem:[%s202 + $0x458] sm:$0xff]
      %v363 = vld [vmem:[%s202 + $0x460] sm:$0xff]
      %v364 = vld [vmem:[%s202 + $0x468] sm:$0xff]
      %v365 = vld [vmem:[%s202 + $0x470] sm:$0xff]
      %v366 = vld [vmem:[%s202 + $0x478] sm:$0xff]
      %v367 = vld [vmem:[%s202 + $0x480] sm:$0xff]
      %v368 = vld [vmem:[%s202 + $0x488] sm:$0xff]
      %v369 = vld [vmem:[%s202 + $0x490] sm:$0xff]
      %v370 = vld [vmem:[%s202 + $0x498] sm:$0xff]
      %v371 = vld [vmem:[%s202 + $0x4a0] sm:$0xff]
      %v372 = vld [vmem:[%s202 + $0x4a8] sm:$0xff]
      %v373 = vld [vmem:[%s202 + $0x4b0] sm:$0xff]
      %v374 = vld [vmem:[%s202 + $0x4b8] sm:$0xff]
      %v375 = vld [vmem:[%s202 + $0x4c0] sm:$0xff]
      %v376 = vld [vmem:[%s202 + $0x4c8] sm:$0xff]
      %v377 = vld [vmem:[%s202 + $0x4d0] sm:$0xff]
      %v378 = vld [vmem:[%s202 + $0x4d8] sm:$0xff]
      %v379 = vld [vmem:[%s202 + $0x4e0] sm:$0xff]
      %v380 = vld [vmem:[%s202 + $0x4e8] sm:$0xff]
      %v381 = vld [vmem:[%s202 + $0x4f0] sm:$0xff]
      %v382 = vld [vmem:[%s202 + $0x4f8] sm:$0xff]
      %v383 = vld [vmem:[%s202 + $0x500] sm:$0xff]
      %v384 = vld [vmem:[%s202 + $0x508] sm:$0xff]
      %v385 = vld [vmem:[%s202 + $0x510] sm:$0xff]
      %v386 = vld [vmem:[%s202 + $0x518] sm:$0xff]
      %v387 = vld [vmem:[%s202 + $0x520] sm:$0xff]
      %v388 = vld [vmem:[%s202 + $0x528] sm:$0xff]
      %v389 = vld [vmem:[%s202 + $0x530] sm:$0xff]
      %v390 = vld [vmem:[%s202 + $0x538] sm:$0xff]
      %vm391 = vcmask 556032
      %v392 = vsel %vm391, %v224, 0.0
      %v393 = vadd.f32 %v223, %v392
      %394 = vadd.xlane.f32.xlu0 %v393
      %v395 = vpop.xlane.xlu0 %394
      %v396 = vsel %vm391, %v226, 0.0
      %v397 = vadd.f32 %v225, %v396
      %398 = vadd.xlane.f32.xlu0 %v397
      %v399 = vpop.xlane.xlu0 %398
      %v400 = vsel %vm391, %v228, 0.0
      %v401 = vadd.f32 %v227, %v400
      %402 = vadd.xlane.f32.xlu0 %v401
      %v403 = vpop.xlane.xlu0 %402
      %v404 = vsel %vm391, %v230, 0.0
      %v405 = vadd.f32 %v229, %v404
      %406 = vadd.xlane.f32.xlu0 %v405
      %v407 = vpop.xlane.xlu0 %406
      %v408 = vsel %vm391, %v232, 0.0
      %v409 = vadd.f32 %v231, %v408
      %410 = vadd.xlane.f32.xlu0 %v409
      %v411 = vpop.xlane.xlu0 %410
      %v412 = vsel %vm391, %v234, 0.0
      %v413 = vadd.f32 %v233, %v412
      %414 = vadd.xlane.f32.xlu0 %v413
      %v415 = vpop.xlane.xlu0 %414
      %v416 = vsel %vm391, %v236, 0.0
      %v417 = vadd.f32 %v235, %v416
      %418 = vadd.xlane.f32.xlu0 %v417
      %v419 = vpop.xlane.xlu0 %418
      %v420 = vsel %vm391, %v238, 0.0
      %v421 = vadd.f32 %v237, %v420
      %422 = vadd.xlane.f32.xlu0 %v421
      %v423 = vpop.xlane.xlu0 %422
      %v424 = vsel %vm391, %v240, 0.0
      %v425 = vadd.f32 %v239, %v424
      %426 = vadd.xlane.f32.xlu0 %v425
      %v427 = vpop.xlane.xlu0 %426
      %v428 = vsel %vm391, %v242, 0.0
      %v429 = vadd.f32 %v241, %v428
      %430 = vadd.xlane.f32.xlu0 %v429
      %v431 = vpop.xlane.xlu0 %430
      %v432 = vsel %vm391, %v244, 0.0
      %v433 = vadd.f32 %v243, %v432
      %434 = vadd.xlane.f32.xlu0 %v433
      %v435 = vpop.xlane.xlu0 %434
      %v436 = vsel %vm391, %v246, 0.0
      %v437 = vadd.f32 %v245, %v436
      %438 = vadd.xlane.f32.xlu0 %v437
      %v439 = vpop.xlane.xlu0 %438
      %v440 = vsel %vm391, %v248, 0.0
      %v441 = vadd.f32 %v247, %v440
      %442 = vadd.xlane.f32.xlu0 %v441
      %v443 = vpop.xlane.xlu0 %442
      %v444 = vsel %vm391, %v250, 0.0
      %v445 = vadd.f32 %v249, %v444
      %446 = vadd.xlane.f32.xlu0 %v445
      %v447 = vpop.xlane.xlu0 %446
      %v448 = vsel %vm391, %v252, 0.0
      %v449 = vadd.f32 %v251, %v448
      %450 = vadd.xlane.f32.xlu0 %v449
      %v451 = vpop.xlane.xlu0 %450
      %v452 = vsel %vm391, %v254, 0.0
      %v453 = vadd.f32 %v253, %v452
      %454 = vadd.xlane.f32.xlu0 %v453
      %v455 = vpop.xlane.xlu0 %454
      %v456 = vsel %vm391, %v256, 0.0
      %v457 = vadd.f32 %v255, %v456
      %458 = vadd.xlane.f32.xlu0 %v457
      %v459 = vpop.xlane.xlu0 %458
      %v460 = vsel %vm391, %v258, 0.0
      %v461 = vadd.f32 %v257, %v460
      %462 = vadd.xlane.f32.xlu0 %v461
      %v463 = vpop.xlane.xlu0 %462
      %v464 = vsel %vm391, %v260, 0.0
      %v465 = vadd.f32 %v259, %v464
      %466 = vadd.xlane.f32.xlu0 %v465
      %v467 = vpop.xlane.xlu0 %466
      %v468 = vsel %vm391, %v262, 0.0
      %v469 = vadd.f32 %v261, %v468
      %470 = vadd.xlane.f32.xlu0 %v469
      %v471 = vpop.xlane.xlu0 %470
      %v472 = vsel %vm391, %v264, 0.0
      %v473 = vadd.f32 %v263, %v472
      %474 = vadd.xlane.f32.xlu0 %v473
      %v475 = vpop.xlane.xlu0 %474
      %v476 = vsel %vm391, %v266, 0.0
      %v477 = vadd.f32 %v265, %v476
      %478 = vadd.xlane.f32.xlu0 %v477
      %v479 = vpop.xlane.xlu0 %478
      %v480 = vsel %vm391, %v268, 0.0
      %v481 = vadd.f32 %v267, %v480
      %482 = vadd.xlane.f32.xlu0 %v481
      %v483 = vpop.xlane.xlu0 %482
      %v484 = vsel %vm391, %v270, 0.0
      %v485 = vadd.f32 %v269, %v484
      %486 = vadd.xlane.f32.xlu0 %v485
      %v487 = vpop.xlane.xlu0 %486
      %v488 = vsel %vm391, %v272, 0.0
      %v489 = vadd.f32 %v271, %v488
      %490 = vadd.xlane.f32.xlu0 %v489
      %v491 = vpop.xlane.xlu0 %490
      %v492 = vsel %vm391, %v274, 0.0
      %v493 = vadd.f32 %v273, %v492
      %494 = vadd.xlane.f32.xlu0 %v493
      %v495 = vpop.xlane.xlu0 %494
      %v496 = vsel %vm391, %v276, 0.0
      %v497 = vadd.f32 %v275, %v496
      %498 = vadd.xlane.f32.xlu0 %v497
      %v499 = vpop.xlane.xlu0 %498
      %v500 = vsel %vm391, %v278, 0.0
      %v501 = vadd.f32 %v277, %v500
      %502 = vadd.xlane.f32.xlu0 %v501
      %v503 = vpop.xlane.xlu0 %502
      %v504 = vsel %vm391, %v280, 0.0
      %v505 = vadd.f32 %v279, %v504
      %506 = vadd.xlane.f32.xlu0 %v505
      %v507 = vpop.xlane.xlu0 %506
      %v508 = vsel %vm391, %v282, 0.0
      %v509 = vadd.f32 %v281, %v508
      %510 = vadd.xlane.f32.xlu0 %v509
      %v511 = vpop.xlane.xlu0 %510
      %v512 = vsel %vm391, %v284, 0.0
      %v513 = vadd.f32 %v283, %v512
      %514 = vadd.xlane.f32.xlu0 %v513
      %v515 = vpop.xlane.xlu0 %514
      %v516 = vsel %vm391, %v286, 0.0
      %v517 = vadd.f32 %v285, %v516
      %518 = vadd.xlane.f32.xlu0 %v517
      %v519 = vpop.xlane.xlu0 %518
      %v520 = vsel %vm391, %v288, 0.0
      %v521 = vadd.f32 %v287, %v520
      %522 = vadd.xlane.f32.xlu0 %v521
      %v523 = vpop.xlane.xlu0 %522
      %v524 = vsel %vm391, %v290, 0.0
      %v525 = vadd.f32 %v289, %v524
      %526 = vadd.xlane.f32.xlu0 %v525
      %v527 = vpop.xlane.xlu0 %526
      %v528 = vsel %vm391, %v292, 0.0
      %v529 = vadd.f32 %v291, %v528
      %530 = vadd.xlane.f32.xlu0 %v529
      %v531 = vpop.xlane.xlu0 %530
      %v532 = vsel %vm391, %v294, 0.0
      %v533 = vadd.f32 %v293, %v532
      %534 = vadd.xlane.f32.xlu0 %v533
      %v535 = vpop.xlane.xlu0 %534
      %v536 = vsel %vm391, %v296, 0.0
      %v537 = vadd.f32 %v295, %v536
      %538 = vadd.xlane.f32.xlu0 %v537
      %v539 = vpop.xlane.xlu0 %538
      %v540 = vsel %vm391, %v298, 0.0
      %v541 = vadd.f32 %v297, %v540
      %542 = vadd.xlane.f32.xlu0 %v541
      %v543 = vpop.xlane.xlu0 %542
      %v544 = vsel %vm391, %v300, 0.0
      %v545 = vadd.f32 %v299, %v544
      %546 = vadd.xlane.f32.xlu0 %v545
      %v547 = vpop.xlane.xlu0 %546
      %v548 = vsel %vm391, %v302, 0.0
      %v549 = vadd.f32 %v301, %v548
      %550 = vadd.xlane.f32.xlu0 %v549
      %v551 = vpop.xlane.xlu0 %550
      %v552 = vsel %vm391, %v304, 0.0
      %v553 = vadd.f32 %v303, %v552
      %554 = vadd.xlane.f32.xlu0 %v553
      %v555 = vpop.xlane.xlu0 %554
      %v556 = vsel %vm391, %v306, 0.0
      %v557 = vadd.f32 %v305, %v556
      %558 = vadd.xlane.f32.xlu0 %v557
      %v559 = vpop.xlane.xlu0 %558
      %v560 = vsel %vm391, %v308, 0.0
      %v561 = vadd.f32 %v307, %v560
      %562 = vadd.xlane.f32.xlu0 %v561
      %v563 = vpop.xlane.xlu0 %562
      %v564 = vsel %vm391, %v310, 0.0
      %v565 = vadd.f32 %v309, %v564
      %566 = vadd.xlane.f32.xlu0 %v565
      %v567 = vpop.xlane.xlu0 %566
      %v568 = vsel %vm391, %v312, 0.0
      %v569 = vadd.f32 %v311, %v568
      %570 = vadd.xlane.f32.xlu0 %v569
      %v571 = vpop.xlane.xlu0 %570
      %v572 = vsel %vm391, %v314, 0.0
      %v573 = vadd.f32 %v313, %v572
      %574 = vadd.xlane.f32.xlu0 %v573
      %v575 = vpop.xlane.xlu0 %574
      %v576 = vsel %vm391, %v316, 0.0
      %v577 = vadd.f32 %v315, %v576
      %578 = vadd.xlane.f32.xlu0 %v577
      %v579 = vpop.xlane.xlu0 %578
      %v580 = vsel %vm391, %v318, 0.0
      %v581 = vadd.f32 %v317, %v580
      %582 = vadd.xlane.f32.xlu0 %v581
      %v583 = vpop.xlane.xlu0 %582
      %v584 = vsel %vm391, %v320, 0.0
      %v585 = vadd.f32 %v319, %v584
      %586 = vadd.xlane.f32.xlu0 %v585
      %v587 = vpop.xlane.xlu0 %586
      %v588 = vsel %vm391, %v322, 0.0
      %v589 = vadd.f32 %v321, %v588
      %590 = vadd.xlane.f32.xlu0 %v589
      %v591 = vpop.xlane.xlu0 %590
      %v592 = vsel %vm391, %v324, 0.0
      %v593 = vadd.f32 %v323, %v592
      %594 = vadd.xlane.f32.xlu0 %v593
      %v595 = vpop.xlane.xlu0 %594
      %v596 = vsel %vm391, %v326, 0.0
      %v597 = vadd.f32 %v325, %v596
      %598 = vadd.xlane.f32.xlu0 %v597
      %v599 = vpop.xlane.xlu0 %598
      %v600 = vsel %vm391, %v328, 0.0
      %v601 = vadd.f32 %v327, %v600
      %602 = vadd.xlane.f32.xlu0 %v601
      %v603 = vpop.xlane.xlu0 %602
      %v604 = vsel %vm391, %v330, 0.0
      %v605 = vadd.f32 %v329, %v604
      %606 = vadd.xlane.f32.xlu0 %v605
      %v607 = vpop.xlane.xlu0 %606
      %v608 = vsel %vm391, %v332, 0.0
      %v609 = vadd.f32 %v331, %v608
      %610 = vadd.xlane.f32.xlu0 %v609
      %v611 = vpop.xlane.xlu0 %610
      %v612 = vsel %vm391, %v334, 0.0
      %v613 = vadd.f32 %v333, %v612
      %614 = vadd.xlane.f32.xlu0 %v613
      %v615 = vpop.xlane.xlu0 %614
      %v616 = vsel %vm391, %v336, 0.0
      %v617 = vadd.f32 %v335, %v616
      %618 = vadd.xlane.f32.xlu0 %v617
      %v619 = vpop.xlane.xlu0 %618
      %v620 = vsel %vm391, %v338, 0.0
      %v621 = vadd.f32 %v337, %v620
      %622 = vadd.xlane.f32.xlu0 %v621
      %v623 = vpop.xlane.xlu0 %622
      %v624 = vsel %vm391, %v340, 0.0
      %v625 = vadd.f32 %v339, %v624
      %626 = vadd.xlane.f32.xlu0 %v625
      %v627 = vpop.xlane.xlu0 %626
      %v628 = vsel %vm391, %v342, 0.0
      %v629 = vadd.f32 %v341, %v628
      %630 = vadd.xlane.f32.xlu0 %v629
      %v631 = vpop.xlane.xlu0 %630
      %v632 = vsel %vm391, %v344, 0.0
      %v633 = vadd.f32 %v343, %v632
      %634 = vadd.xlane.f32.xlu0 %v633
      %v635 = vpop.xlane.xlu0 %634
      %v636 = vsel %vm391, %v346, 0.0
      %v637 = vadd.f32 %v345, %v636
      %638 = vadd.xlane.f32.xlu0 %v637
      %v639 = vpop.xlane.xlu0 %638
      %v640 = vsel %vm391, %v348, 0.0
      %v641 = vadd.f32 %v347, %v640
      %642 = vadd.xlane.f32.xlu0 %v641
      %v643 = vpop.xlane.xlu0 %642
      %v644 = vsel %vm391, %v350, 0.0
      %v645 = vadd.f32 %v349, %v644
      %646 = vadd.xlane.f32.xlu0 %v645
      %v647 = vpop.xlane.xlu0 %646
      %v648 = vsel %vm391, %v352, 0.0
      %v649 = vadd.f32 %v351, %v648
      %650 = vadd.xlane.f32.xlu0 %v649
      %v651 = vpop.xlane.xlu0 %650
      %v652 = vsel %vm391, %v354, 0.0
      %v653 = vadd.f32 %v353, %v652
      %654 = vadd.xlane.f32.xlu0 %v653
      %v655 = vpop.xlane.xlu0 %654
      %v656 = vsel %vm391, %v356, 0.0
      %v657 = vadd.f32 %v355, %v656
      %658 = vadd.xlane.f32.xlu0 %v657
      %v659 = vpop.xlane.xlu0 %658
      %v660 = vsel %vm391, %v358, 0.0
      %v661 = vadd.f32 %v357, %v660
      %662 = vadd.xlane.f32.xlu0 %v661
      %v663 = vpop.xlane.xlu0 %662
      %v664 = vsel %vm391, %v360, 0.0
      %v665 = vadd.f32 %v359, %v664
      %666 = vadd.xlane.f32.xlu0 %v665
      %v667 = vpop.xlane.xlu0 %666
      %v668 = vsel %vm391, %v362, 0.0
      %v669 = vadd.f32 %v361, %v668
      %670 = vadd.xlane.f32.xlu0 %v669
      %v671 = vpop.xlane.xlu0 %670
      %v672 = vsel %vm391, %v364, 0.0
      %v673 = vadd.f32 %v363, %v672
      %674 = vadd.xlane.f32.xlu0 %v673
      %v675 = vpop.xlane.xlu0 %674
      %v676 = vsel %vm391, %v366, 0.0
      %v677 = vadd.f32 %v365, %v676
      %678 = vadd.xlane.f32.xlu0 %v677
      %v679 = vpop.xlane.xlu0 %678
      %v680 = vsel %vm391, %v368, 0.0
      %v681 = vadd.f32 %v367, %v680
      %682 = vadd.xlane.f32.xlu0 %v681
      %v683 = vpop.xlane.xlu0 %682
      %v684 = vsel %vm391, %v370, 0.0
      %v685 = vadd.f32 %v369, %v684
      %686 = vadd.xlane.f32.xlu0 %v685
      %v687 = vpop.xlane.xlu0 %686
      %v688 = vsel %vm391, %v372, 0.0
      %v689 = vadd.f32 %v371, %v688
      %690 = vadd.xlane.f32.xlu0 %v689
      %v691 = vpop.xlane.xlu0 %690
      %v692 = vsel %vm391, %v374, 0.0
      %v693 = vadd.f32 %v373, %v692
      %694 = vadd.xlane.f32.xlu0 %v693
      %v695 = vpop.xlane.xlu0 %694
      %v696 = vsel %vm391, %v376, 0.0
      %v697 = vadd.f32 %v375, %v696
      %698 = vadd.xlane.f32.xlu0 %v697
      %v699 = vpop.xlane.xlu0 %698
      %v700 = vsel %vm391, %v378, 0.0
      %v701 = vadd.f32 %v377, %v700
      %702 = vadd.xlane.f32.xlu0 %v701
      %v703 = vpop.xlane.xlu0 %702
      %v704 = vsel %vm391, %v380, 0.0
      %v705 = vadd.f32 %v379, %v704
      %706 = vadd.xlane.f32.xlu0 %v705
      %v707 = vpop.xlane.xlu0 %706
      %v708 = vsel %vm391, %v382, 0.0
      %v709 = vadd.f32 %v381, %v708
      %710 = vadd.xlane.f32.xlu0 %v709
      %v711 = vpop.xlane.xlu0 %710
      %v712 = vsel %vm391, %v384, 0.0
      %v713 = vadd.f32 %v383, %v712
      %714 = vadd.xlane.f32.xlu0 %v713
      %v715 = vpop.xlane.xlu0 %714
      %v716 = vsel %vm391, %v386, 0.0
      %v717 = vadd.f32 %v385, %v716
      %718 = vadd.xlane.f32.xlu0 %v717
      %v719 = vpop.xlane.xlu0 %718
      %v720 = vsel %vm391, %v388, 0.0
      %v721 = vadd.f32 %v387, %v720
      %722 = vadd.xlane.f32.xlu0 %v721
      %v723 = vpop.xlane.xlu0 %722
      %v724 = vsel %vm391, %v390, 0.0
      %v725 = vadd.f32 %v389, %v724
      %726 = vadd.xlane.f32.xlu0 %v725
      %v727 = vpop.xlane.xlu0 %726
      %v728 = vmul.f32 %v223, %v223
      %v729 = vmul.f32 %v224, %v224
      %v730 = vmul.f32 %v225, %v225
      %v731 = vmul.f32 %v226, %v226
      %v732 = vmul.f32 %v227, %v227
      %v733 = vmul.f32 %v228, %v228
      %v734 = vmul.f32 %v229, %v229
      %v735 = vmul.f32 %v230, %v230
      %v736 = vmul.f32 %v231, %v231
      %v737 = vmul.f32 %v232, %v232
      %v738 = vmul.f32 %v233, %v233
      %v739 = vmul.f32 %v234, %v234
      %v740 = vmul.f32 %v235, %v235
      %v741 = vmul.f32 %v236, %v236
      %v742 = vmul.f32 %v237, %v237
      %v743 = vmul.f32 %v238, %v238
      %v744 = vmul.f32 %v239, %v239
      %v745 = vmul.f32 %v240, %v240
      %v746 = vmul.f32 %v241, %v241
      %v747 = vmul.f32 %v242, %v242
      %v748 = vmul.f32 %v243, %v243
      %v749 = vmul.f32 %v244, %v244
      %v750 = vmul.f32 %v245, %v245
      %v751 = vmul.f32 %v246, %v246
      %v752 = vmul.f32 %v247, %v247
      %v753 = vmul.f32 %v248, %v248
      %v754 = vmul.f32 %v249, %v249
      %v755 = vmul.f32 %v250, %v250
      %v756 = vmul.f32 %v251, %v251
      %v757 = vmul.f32 %v252, %v252
      %v758 = vmul.f32 %v253, %v253
      %v759 = vmul.f32 %v254, %v254
      %v760 = vmul.f32 %v255, %v255
      %v761 = vmul.f32 %v256, %v256
      %v762 = vmul.f32 %v257, %v257
      %v763 = vmul.f32 %v258, %v258
      %v764 = vmul.f32 %v259, %v259
      %v765 = vmul.f32 %v260, %v260
      %v766 = vmul.f32 %v261, %v261
      %v767 = vmul.f32 %v262, %v262
      %v768 = vmul.f32 %v263, %v263
      %v769 = vmul.f32 %v264, %v264
      %v770 = vmul.f32 %v265, %v265
      %v771 = vmul.f32 %v266, %v266
      %v772 = vmul.f32 %v267, %v267
      %v773 = vmul.f32 %v268, %v268
      %v774 = vmul.f32 %v269, %v269
      %v775 = vmul.f32 %v270, %v270
      %v776 = vmul.f32 %v271, %v271
      %v777 = vmul.f32 %v272, %v272
      %v778 = vmul.f32 %v273, %v273
      %v779 = vmul.f32 %v274, %v274
      %v780 = vmul.f32 %v275, %v275
      %v781 = vmul.f32 %v276, %v276
      %v782 = vmul.f32 %v277, %v277
      %v783 = vmul.f32 %v278, %v278
      %v784 = vmul.f32 %v279, %v279
      %v785 = vmul.f32 %v280, %v280
      %v786 = vmul.f32 %v281, %v281
      %v787 = vmul.f32 %v282, %v282
      %v788 = vmul.f32 %v283, %v283
      %v789 = vmul.f32 %v284, %v284
      %v790 = vmul.f32 %v285, %v285
      %v791 = vmul.f32 %v286, %v286
      %v792 = vmul.f32 %v287, %v287
      %v793 = vmul.f32 %v288, %v288
      %v794 = vmul.f32 %v289, %v289
      %v795 = vmul.f32 %v290, %v290
      %v796 = vmul.f32 %v291, %v291
      %v797 = vmul.f32 %v292, %v292
      %v798 = vmul.f32 %v293, %v293
      %v799 = vmul.f32 %v294, %v294
      %v800 = vmul.f32 %v295, %v295
      %v801 = vmul.f32 %v296, %v296
      %v802 = vmul.f32 %v297, %v297
      %v803 = vmul.f32 %v298, %v298
      %v804 = vmul.f32 %v299, %v299
      %v805 = vmul.f32 %v300, %v300
      %v806 = vmul.f32 %v301, %v301
      %v807 = vmul.f32 %v302, %v302
      %v808 = vmul.f32 %v303, %v303
      %v809 = vmul.f32 %v304, %v304
      %v810 = vmul.f32 %v305, %v305
      %v811 = vmul.f32 %v306, %v306
      %v812 = vmul.f32 %v307, %v307
      %v813 = vmul.f32 %v308, %v308
      %v814 = vmul.f32 %v309, %v309
      %v815 = vmul.f32 %v310, %v310
      %v816 = vmul.f32 %v311, %v311
      %v817 = vmul.f32 %v312, %v312
      %v818 = vmul.f32 %v313, %v313
      %v819 = vmul.f32 %v314, %v314
      %v820 = vmul.f32 %v315, %v315
      %v821 = vmul.f32 %v316, %v316
      %v822 = vmul.f32 %v317, %v317
      %v823 = vmul.f32 %v318, %v318
      %v824 = vmul.f32 %v319, %v319
      %v825 = vmul.f32 %v320, %v320
      %v826 = vmul.f32 %v321, %v321
      %v827 = vmul.f32 %v322, %v322
      %v828 = vmul.f32 %v323, %v323
      %v829 = vmul.f32 %v324, %v324
      %v830 = vmul.f32 %v325, %v325
      %v831 = vmul.f32 %v326, %v326
      %v832 = vmul.f32 %v327, %v327
      %v833 = vmul.f32 %v328, %v328
      %v834 = vmul.f32 %v329, %v329
      %v835 = vmul.f32 %v330, %v330
      %v836 = vmul.f32 %v331, %v331
      %v837 = vmul.f32 %v332, %v332
      %v838 = vmul.f32 %v333, %v333
      %v839 = vmul.f32 %v334, %v334
      %v840 = vmul.f32 %v335, %v335
      %v841 = vmul.f32 %v336, %v336
      %v842 = vmul.f32 %v337, %v337
      %v843 = vmul.f32 %v338, %v338
      %v844 = vmul.f32 %v339, %v339
      %v845 = vmul.f32 %v340, %v340
      %v846 = vmul.f32 %v341, %v341
      %v847 = vmul.f32 %v342, %v342
      %v848 = vmul.f32 %v343, %v343
      %v849 = vmul.f32 %v344, %v344
      %v850 = vmul.f32 %v345, %v345
      %v851 = vmul.f32 %v346, %v346
      %v852 = vmul.f32 %v347, %v347
      %v853 = vmul.f32 %v348, %v348
      %v854 = vmul.f32 %v349, %v349
      %v855 = vmul.f32 %v350, %v350
      %v856 = vmul.f32 %v351, %v351
      %v857 = vmul.f32 %v352, %v352
      %v858 = vmul.f32 %v353, %v353
      %v859 = vmul.f32 %v354, %v354
      %v860 = vmul.f32 %v355, %v355
      %v861 = vmul.f32 %v356, %v356
      %v862 = vmul.f32 %v357, %v357
      %v863 = vmul.f32 %v358, %v358
      %v864 = vmul.f32 %v359, %v359
      %v865 = vmul.f32 %v360, %v360
      %v866 = vmul.f32 %v361, %v361
      %v867 = vmul.f32 %v362, %v362
      %v868 = vmul.f32 %v363, %v363
      %v869 = vmul.f32 %v364, %v364
      %v870 = vmul.f32 %v365, %v365
      %v871 = vmul.f32 %v366, %v366
      %v872 = vmul.f32 %v367, %v367
      %v873 = vmul.f32 %v368, %v368
      %v874 = vmul.f32 %v369, %v369
      %v875 = vmul.f32 %v370, %v370
      %v876 = vmul.f32 %v371, %v371
      %v877 = vmul.f32 %v372, %v372
      %v878 = vmul.f32 %v373, %v373
      %v879 = vmul.f32 %v374, %v374
      %v880 = vmul.f32 %v375, %v375
      %v881 = vmul.f32 %v376, %v376
      %v882 = vmul.f32 %v377, %v377
      %v883 = vmul.f32 %v378, %v378
      %v884 = vmul.f32 %v379, %v379
      %v885 = vmul.f32 %v380, %v380
      %v886 = vmul.f32 %v381, %v381
      %v887 = vmul.f32 %v382, %v382
      %v888 = vmul.f32 %v383, %v383
      %v889 = vmul.f32 %v384, %v384
      %v890 = vmul.f32 %v385, %v385
      %v891 = vmul.f32 %v386, %v386
      %v892 = vmul.f32 %v387, %v387
      %v893 = vmul.f32 %v388, %v388
      %v894 = vmul.f32 %v389, %v389
      %v895 = vmul.f32 %v390, %v390
      %v896 = vsel %vm391, %v729, 0.0
      %v897 = vadd.f32 %v728, %v896
      %898 = vadd.xlane.f32.xlu0 %v897
      %v899 = vpop.xlane.xlu0 %898
      %v900 = vsel %vm391, %v731, 0.0
      %v901 = vadd.f32 %v730, %v900
      %902 = vadd.xlane.f32.xlu0 %v901
      %v903 = vpop.xlane.xlu0 %902
      %v904 = vsel %vm391, %v733, 0.0
      %v905 = vadd.f32 %v732, %v904
      %906 = vadd.xlane.f32.xlu0 %v905
      %v907 = vpop.xlane.xlu0 %906
      %v908 = vsel %vm391, %v735, 0.0
      %v909 = vadd.f32 %v734, %v908
      %910 = vadd.xlane.f32.xlu0 %v909
      %v911 = vpop.xlane.xlu0 %910
      %v912 = vsel %vm391, %v737, 0.0
      %v913 = vadd.f32 %v736, %v912
      %914 = vadd.xlane.f32.xlu0 %v913
      %v915 = vpop.xlane.xlu0 %914
      %v916 = vsel %vm391, %v739, 0.0
      %v917 = vadd.f32 %v738, %v916
      %918 = vadd.xlane.f32.xlu0 %v917
      %v919 = vpop.xlane.xlu0 %918
      %v920 = vsel %vm391, %v741, 0.0
      %v921 = vadd.f32 %v740, %v920
      %922 = vadd.xlane.f32.xlu0 %v921
      %v923 = vpop.xlane.xlu0 %922
      %v924 = vsel %vm391, %v743, 0.0
      %v925 = vadd.f32 %v742, %v924
      %926 = vadd.xlane.f32.xlu0 %v925
      %v927 = vpop.xlane.xlu0 %926
      %v928 = vsel %vm391, %v745, 0.0
      %v929 = vadd.f32 %v744, %v928
      %930 = vadd.xlane.f32.xlu0 %v929
      %v931 = vpop.xlane.xlu0 %930
      %v932 = vsel %vm391, %v747, 0.0
      %v933 = vadd.f32 %v746, %v932
      %934 = vadd.xlane.f32.xlu0 %v933
      %v935 = vpop.xlane.xlu0 %934
      %v936 = vsel %vm391, %v749, 0.0
      %v937 = vadd.f32 %v748, %v936
      %938 = vadd.xlane.f32.xlu0 %v937
      %v939 = vpop.xlane.xlu0 %938
      %v940 = vsel %vm391, %v751, 0.0
      %v941 = vadd.f32 %v750, %v940
      %942 = vadd.xlane.f32.xlu0 %v941
      %v943 = vpop.xlane.xlu0 %942
      %v944 = vsel %vm391, %v753, 0.0
      %v945 = vadd.f32 %v752, %v944
      %946 = vadd.xlane.f32.xlu0 %v945
      %v947 = vpop.xlane.xlu0 %946
      %v948 = vsel %vm391, %v755, 0.0
      %v949 = vadd.f32 %v754, %v948
      %950 = vadd.xlane.f32.xlu0 %v949
      %v951 = vpop.xlane.xlu0 %950
      %v952 = vsel %vm391, %v757, 0.0
      %v953 = vadd.f32 %v756, %v952
      %954 = vadd.xlane.f32.xlu0 %v953
      %v955 = vpop.xlane.xlu0 %954
      %v956 = vsel %vm391, %v759, 0.0
      %v957 = vadd.f32 %v758, %v956
      %958 = vadd.xlane.f32.xlu0 %v957
      %v959 = vpop.xlane.xlu0 %958
      %v960 = vsel %vm391, %v761, 0.0
      %v961 = vadd.f32 %v760, %v960
      %962 = vadd.xlane.f32.xlu0 %v961
      %v963 = vpop.xlane.xlu0 %962
      %v964 = vsel %vm391, %v763, 0.0
      %v965 = vadd.f32 %v762, %v964
      %966 = vadd.xlane.f32.xlu0 %v965
      %v967 = vpop.xlane.xlu0 %966
      %v968 = vsel %vm391, %v765, 0.0
      %v969 = vadd.f32 %v764, %v968
      %970 = vadd.xlane.f32.xlu0 %v969
      %v971 = vpop.xlane.xlu0 %970
      %v972 = vsel %vm391, %v767, 0.0
      %v973 = vadd.f32 %v766, %v972
      %974 = vadd.xlane.f32.xlu0 %v973
      %v975 = vpop.xlane.xlu0 %974
      %v976 = vsel %vm391, %v769, 0.0
      %v977 = vadd.f32 %v768, %v976
      %978 = vadd.xlane.f32.xlu0 %v977
      %v979 = vpop.xlane.xlu0 %978
      %v980 = vsel %vm391, %v771, 0.0
      %v981 = vadd.f32 %v770, %v980
      %982 = vadd.xlane.f32.xlu0 %v981
      %v983 = vpop.xlane.xlu0 %982
      %v984 = vsel %vm391, %v773, 0.0
      %v985 = vadd.f32 %v772, %v984
      %986 = vadd.xlane.f32.xlu0 %v985
      %v987 = vpop.xlane.xlu0 %986
      %v988 = vsel %vm391, %v775, 0.0
      %v989 = vadd.f32 %v774, %v988
      %990 = vadd.xlane.f32.xlu0 %v989
      %v991 = vpop.xlane.xlu0 %990
      %v992 = vsel %vm391, %v777, 0.0
      %v993 = vadd.f32 %v776, %v992
      %994 = vadd.xlane.f32.xlu0 %v993
      %v995 = vpop.xlane.xlu0 %994
      %v996 = vsel %vm391, %v779, 0.0
      %v997 = vadd.f32 %v778, %v996
      %998 = vadd.xlane.f32.xlu0 %v997
      %v999 = vpop.xlane.xlu0 %998
      %v1000 = vsel %vm391, %v781, 0.0
      %v1001 = vadd.f32 %v780, %v1000
      %1002 = vadd.xlane.f32.xlu0 %v1001
      %v1003 = vpop.xlane.xlu0 %1002
      %v1004 = vsel %vm391, %v783, 0.0
      %v1005 = vadd.f32 %v782, %v1004
      %1006 = vadd.xlane.f32.xlu0 %v1005
      %v1007 = vpop.xlane.xlu0 %1006
      %v1008 = vsel %vm391, %v785, 0.0
      %v1009 = vadd.f32 %v784, %v1008
      %1010 = vadd.xlane.f32.xlu0 %v1009
      %v1011 = vpop.xlane.xlu0 %1010
      %v1012 = vsel %vm391, %v787, 0.0
      %v1013 = vadd.f32 %v786, %v1012
      %1014 = vadd.xlane.f32.xlu0 %v1013
      %v1015 = vpop.xlane.xlu0 %1014
      %v1016 = vsel %vm391, %v789, 0.0
      %v1017 = vadd.f32 %v788, %v1016
      %1018 = vadd.xlane.f32.xlu0 %v1017
      %v1019 = vpop.xlane.xlu0 %1018
      %v1020 = vsel %vm391, %v791, 0.0
      %v1021 = vadd.f32 %v790, %v1020
      %1022 = vadd.xlane.f32.xlu0 %v1021
      %v1023 = vpop.xlane.xlu0 %1022
      %v1024 = vsel %vm391, %v793, 0.0
      %v1025 = vadd.f32 %v792, %v1024
      %1026 = vadd.xlane.f32.xlu0 %v1025
      %v1027 = vpop.xlane.xlu0 %1026
      %v1028 = vsel %vm391, %v795, 0.0
      %v1029 = vadd.f32 %v794, %v1028
      %1030 = vadd.xlane.f32.xlu0 %v1029
      %v1031 = vpop.xlane.xlu0 %1030
      %v1032 = vsel %vm391, %v797, 0.0
      %v1033 = vadd.f32 %v796, %v1032
      %1034 = vadd.xlane.f32.xlu0 %v1033
      %v1035 = vpop.xlane.xlu0 %1034
      %v1036 = vsel %vm391, %v799, 0.0
      %v1037 = vadd.f32 %v798, %v1036
      %1038 = vadd.xlane.f32.xlu0 %v1037
      %v1039 = vpop.xlane.xlu0 %1038
      %v1040 = vsel %vm391, %v801, 0.0
      %v1041 = vadd.f32 %v800, %v1040
      %1042 = vadd.xlane.f32.xlu0 %v1041
      %v1043 = vpop.xlane.xlu0 %1042
      %v1044 = vsel %vm391, %v803, 0.0
      %v1045 = vadd.f32 %v802, %v1044
      %1046 = vadd.xlane.f32.xlu0 %v1045
      %v1047 = vpop.xlane.xlu0 %1046
      %v1048 = vsel %vm391, %v805, 0.0
      %v1049 = vadd.f32 %v804, %v1048
      %1050 = vadd.xlane.f32.xlu0 %v1049
      %v1051 = vpop.xlane.xlu0 %1050
      %v1052 = vsel %vm391, %v807, 0.0
      %v1053 = vadd.f32 %v806, %v1052
      %1054 = vadd.xlane.f32.xlu0 %v1053
      %v1055 = vpop.xlane.xlu0 %1054
      %v1056 = vsel %vm391, %v809, 0.0
      %v1057 = vadd.f32 %v808, %v1056
      %1058 = vadd.xlane.f32.xlu0 %v1057
      %v1059 = vpop.xlane.xlu0 %1058
      %v1060 = vsel %vm391, %v811, 0.0
      %v1061 = vadd.f32 %v810, %v1060
      %1062 = vadd.xlane.f32.xlu0 %v1061
      %v1063 = vpop.xlane.xlu0 %1062
      %v1064 = vsel %vm391, %v813, 0.0
      %v1065 = vadd.f32 %v812, %v1064
      %1066 = vadd.xlane.f32.xlu0 %v1065
      %v1067 = vpop.xlane.xlu0 %1066
      %v1068 = vsel %vm391, %v815, 0.0
      %v1069 = vadd.f32 %v814, %v1068
      %1070 = vadd.xlane.f32.xlu0 %v1069
      %v1071 = vpop.xlane.xlu0 %1070
      %v1072 = vsel %vm391, %v817, 0.0
      %v1073 = vadd.f32 %v816, %v1072
      %1074 = vadd.xlane.f32.xlu0 %v1073
      %v1075 = vpop.xlane.xlu0 %1074
      %v1076 = vsel %vm391, %v819, 0.0
      %v1077 = vadd.f32 %v818, %v1076
      %1078 = vadd.xlane.f32.xlu0 %v1077
      %v1079 = vpop.xlane.xlu0 %1078
      %v1080 = vsel %vm391, %v821, 0.0
      %v1081 = vadd.f32 %v820, %v1080
      %1082 = vadd.xlane.f32.xlu0 %v1081
      %v1083 = vpop.xlane.xlu0 %1082
      %v1084 = vsel %vm391, %v823, 0.0
      %v1085 = vadd.f32 %v822, %v1084
      %1086 = vadd.xlane.f32.xlu0 %v1085
      %v1087 = vpop.xlane.xlu0 %1086
      %v1088 = vsel %vm391, %v825, 0.0
      %v1089 = vadd.f32 %v824, %v1088
      %1090 = vadd.xlane.f32.xlu0 %v1089
      %v1091 = vpop.xlane.xlu0 %1090
      %v1092 = vsel %vm391, %v827, 0.0
      %v1093 = vadd.f32 %v826, %v1092
      %1094 = vadd.xlane.f32.xlu0 %v1093
      %v1095 = vpop.xlane.xlu0 %1094
      %v1096 = vsel %vm391, %v829, 0.0
      %v1097 = vadd.f32 %v828, %v1096
      %1098 = vadd.xlane.f32.xlu0 %v1097
      %v1099 = vpop.xlane.xlu0 %1098
      %v1100 = vsel %vm391, %v831, 0.0
      %v1101 = vadd.f32 %v830, %v1100
      %1102 = vadd.xlane.f32.xlu0 %v1101
      %v1103 = vpop.xlane.xlu0 %1102
      %v1104 = vsel %vm391, %v833, 0.0
      %v1105 = vadd.f32 %v832, %v1104
      %1106 = vadd.xlane.f32.xlu0 %v1105
      %v1107 = vpop.xlane.xlu0 %1106
      %v1108 = vsel %vm391, %v835, 0.0
      %v1109 = vadd.f32 %v834, %v1108
      %1110 = vadd.xlane.f32.xlu0 %v1109
      %v1111 = vpop.xlane.xlu0 %1110
      %v1112 = vsel %vm391, %v837, 0.0
      %v1113 = vadd.f32 %v836, %v1112
      %1114 = vadd.xlane.f32.xlu0 %v1113
      %v1115 = vpop.xlane.xlu0 %1114
      %v1116 = vsel %vm391, %v839, 0.0
      %v1117 = vadd.f32 %v838, %v1116
      %1118 = vadd.xlane.f32.xlu0 %v1117
      %v1119 = vpop.xlane.xlu0 %1118
      %v1120 = vsel %vm391, %v841, 0.0
      %v1121 = vadd.f32 %v840, %v1120
      %1122 = vadd.xlane.f32.xlu0 %v1121
      %v1123 = vpop.xlane.xlu0 %1122
      %v1124 = vsel %vm391, %v843, 0.0
      %v1125 = vadd.f32 %v842, %v1124
      %1126 = vadd.xlane.f32.xlu0 %v1125
      %v1127 = vpop.xlane.xlu0 %1126
      %v1128 = vsel %vm391, %v845, 0.0
      %v1129 = vadd.f32 %v844, %v1128
      %1130 = vadd.xlane.f32.xlu0 %v1129
      %v1131 = vpop.xlane.xlu0 %1130
      %v1132 = vsel %vm391, %v847, 0.0
      %v1133 = vadd.f32 %v846, %v1132
      %1134 = vadd.xlane.f32.xlu0 %v1133
      %v1135 = vpop.xlane.xlu0 %1134
      %v1136 = vsel %vm391, %v849, 0.0
      %v1137 = vadd.f32 %v848, %v1136
      %1138 = vadd.xlane.f32.xlu0 %v1137
      %v1139 = vpop.xlane.xlu0 %1138
      %v1140 = vsel %vm391, %v851, 0.0
      %v1141 = vadd.f32 %v850, %v1140
      %1142 = vadd.xlane.f32.xlu0 %v1141
      %v1143 = vpop.xlane.xlu0 %1142
      %v1144 = vsel %vm391, %v853, 0.0
      %v1145 = vadd.f32 %v852, %v1144
      %1146 = vadd.xlane.f32.xlu0 %v1145
      %v1147 = vpop.xlane.xlu0 %1146
      %v1148 = vsel %vm391, %v855, 0.0
      %v1149 = vadd.f32 %v854, %v1148
      %1150 = vadd.xlane.f32.xlu0 %v1149
      %v1151 = vpop.xlane.xlu0 %1150
      %v1152 = vsel %vm391, %v857, 0.0
      %v1153 = vadd.f32 %v856, %v1152
      %1154 = vadd.xlane.f32.xlu0 %v1153
      %v1155 = vpop.xlane.xlu0 %1154
      %v1156 = vsel %vm391, %v859, 0.0
      %v1157 = vadd.f32 %v858, %v1156
      %1158 = vadd.xlane.f32.xlu0 %v1157
      %v1159 = vpop.xlane.xlu0 %1158
      %v1160 = vsel %vm391, %v861, 0.0
      %v1161 = vadd.f32 %v860, %v1160
      %1162 = vadd.xlane.f32.xlu0 %v1161
      %v1163 = vpop.xlane.xlu0 %1162
      %v1164 = vsel %vm391, %v863, 0.0
      %v1165 = vadd.f32 %v862, %v1164
      %1166 = vadd.xlane.f32.xlu0 %v1165
      %v1167 = vpop.xlane.xlu0 %1166
      %v1168 = vsel %vm391, %v865, 0.0
      %v1169 = vadd.f32 %v864, %v1168
      %1170 = vadd.xlane.f32.xlu0 %v1169
      %v1171 = vpop.xlane.xlu0 %1170
      %v1172 = vsel %vm391, %v867, 0.0
      %v1173 = vadd.f32 %v866, %v1172
      %1174 = vadd.xlane.f32.xlu0 %v1173
      %v1175 = vpop.xlane.xlu0 %1174
      %v1176 = vsel %vm391, %v869, 0.0
      %v1177 = vadd.f32 %v868, %v1176
      %1178 = vadd.xlane.f32.xlu0 %v1177
      %v1179 = vpop.xlane.xlu0 %1178
      %v1180 = vsel %vm391, %v871, 0.0
      %v1181 = vadd.f32 %v870, %v1180
      %1182 = vadd.xlane.f32.xlu0 %v1181
      %v1183 = vpop.xlane.xlu0 %1182
      %v1184 = vsel %vm391, %v873, 0.0
      %v1185 = vadd.f32 %v872, %v1184
      %1186 = vadd.xlane.f32.xlu0 %v1185
      %v1187 = vpop.xlane.xlu0 %1186
      %v1188 = vsel %vm391, %v875, 0.0
      %v1189 = vadd.f32 %v874, %v1188
      %1190 = vadd.xlane.f32.xlu0 %v1189
      %v1191 = vpop.xlane.xlu0 %1190
      %v1192 = vsel %vm391, %v877, 0.0
      %v1193 = vadd.f32 %v876, %v1192
      %1194 = vadd.xlane.f32.xlu0 %v1193
      %v1195 = vpop.xlane.xlu0 %1194
      %v1196 = vsel %vm391, %v879, 0.0
      %v1197 = vadd.f32 %v878, %v1196
      %1198 = vadd.xlane.f32.xlu0 %v1197
      %v1199 = vpop.xlane.xlu0 %1198
      %v1200 = vsel %vm391, %v881, 0.0
      %v1201 = vadd.f32 %v880, %v1200
      %1202 = vadd.xlane.f32.xlu0 %v1201
      %v1203 = vpop.xlane.xlu0 %1202
      %v1204 = vsel %vm391, %v883, 0.0
      %v1205 = vadd.f32 %v882, %v1204
      %1206 = vadd.xlane.f32.xlu0 %v1205
      %v1207 = vpop.xlane.xlu0 %1206
      %v1208 = vsel %vm391, %v885, 0.0
      %v1209 = vadd.f32 %v884, %v1208
      %1210 = vadd.xlane.f32.xlu0 %v1209
      %v1211 = vpop.xlane.xlu0 %1210
      %v1212 = vsel %vm391, %v887, 0.0
      %v1213 = vadd.f32 %v886, %v1212
      %1214 = vadd.xlane.f32.xlu0 %v1213
      %v1215 = vpop.xlane.xlu0 %1214
      %v1216 = vsel %vm391, %v889, 0.0
      %v1217 = vadd.f32 %v888, %v1216
      %1218 = vadd.xlane.f32.xlu0 %v1217
      %v1219 = vpop.xlane.xlu0 %1218
      %v1220 = vsel %vm391, %v891, 0.0
      %v1221 = vadd.f32 %v890, %v1220
      %1222 = vadd.xlane.f32.xlu0 %v1221
      %v1223 = vpop.xlane.xlu0 %1222
      %v1224 = vsel %vm391, %v893, 0.0
      %v1225 = vadd.f32 %v892, %v1224
      %1226 = vadd.xlane.f32.xlu0 %v1225
      %v1227 = vpop.xlane.xlu0 %1226
      %v1228 = vsel %vm391, %v895, 0.0
      %v1229 = vadd.f32 %v894, %v1228
      %1230 = vadd.xlane.f32.xlu0 %v1229
      %v1231 = vpop.xlane.xlu0 %1230
      %v1232 = vmul.f32 %v395, 0.0051020407
      %v1233 = vmul.f32 %v399, 0.0051020407
      %v1234 = vmul.f32 %v403, 0.0051020407
      %v1235 = vmul.f32 %v407, 0.0051020407
      %v1236 = vmul.f32 %v411, 0.0051020407
      %v1237 = vmul.f32 %v415, 0.0051020407
      %v1238 = vmul.f32 %v419, 0.0051020407
      %v1239 = vmul.f32 %v423, 0.0051020407
      %v1240 = vmul.f32 %v427, 0.0051020407
      %v1241 = vmul.f32 %v431, 0.0051020407
      %v1242 = vmul.f32 %v435, 0.0051020407
      %v1243 = vmul.f32 %v439, 0.0051020407
      %v1244 = vmul.f32 %v443, 0.0051020407
      %v1245 = vmul.f32 %v447, 0.0051020407
      %v1246 = vmul.f32 %v451, 0.0051020407
      %v1247 = vmul.f32 %v455, 0.0051020407
      %v1248 = vmul.f32 %v459, 0.0051020407
      %v1249 = vmul.f32 %v463, 0.0051020407
      %v1250 = vmul.f32 %v467, 0.0051020407
      %v1251 = vmul.f32 %v471, 0.0051020407
      %v1252 = vmul.f32 %v475, 0.0051020407
      %v1253 = vmul.f32 %v479, 0.0051020407
      %v1254 = vmul.f32 %v483, 0.0051020407
      %v1255 = vmul.f32 %v487, 0.0051020407
      %v1256 = vmul.f32 %v491, 0.0051020407
      %v1257 = vmul.f32 %v495, 0.0051020407
      %v1258 = vmul.f32 %v499, 0.0051020407
      %v1259 = vmul.f32 %v503, 0.0051020407
      %v1260 = vmul.f32 %v507, 0.0051020407
      %v1261 = vmul.f32 %v511, 0.0051020407
      %v1262 = vmul.f32 %v515, 0.0051020407
      %v1263 = vmul.f32 %v519, 0.0051020407
      %v1264 = vmul.f32 %v523, 0.0051020407
      %v1265 = vmul.f32 %v527, 0.0051020407
      %v1266 = vmul.f32 %v531, 0.0051020407
      %v1267 = vmul.f32 %v535, 0.0051020407
      %v1268 = vmul.f32 %v539, 0.0051020407
      %v1269 = vmul.f32 %v543, 0.0051020407
      %v1270 = vmul.f32 %v547, 0.0051020407
      %v1271 = vmul.f32 %v551, 0.0051020407
      %v1272 = vmul.f32 %v555, 0.0051020407
      %v1273 = vmul.f32 %v559, 0.0051020407
      %v1274 = vmul.f32 %v563, 0.0051020407
      %v1275 = vmul.f32 %v567, 0.0051020407
      %v1276 = vmul.f32 %v571, 0.0051020407
      %v1277 = vmul.f32 %v575, 0.0051020407
      %v1278 = vmul.f32 %v579, 0.0051020407
      %v1279 = vmul.f32 %v583, 0.0051020407
      %v1280 = vmul.f32 %v587, 0.0051020407
      %v1281 = vmul.f32 %v591, 0.0051020407
      %v1282 = vmul.f32 %v595, 0.0051020407
      %v1283 = vmul.f32 %v599, 0.0051020407
      %v1284 = vmul.f32 %v603, 0.0051020407
      %v1285 = vmul.f32 %v607, 0.0051020407
      %v1286 = vmul.f32 %v611, 0.0051020407
      %v1287 = vmul.f32 %v615, 0.0051020407
      %v1288 = vmul.f32 %v619, 0.0051020407
      %v1289 = vmul.f32 %v623, 0.0051020407
      %v1290 = vmul.f32 %v627, 0.0051020407
      %v1291 = vmul.f32 %v631, 0.0051020407
      %v1292 = vmul.f32 %v635, 0.0051020407
      %v1293 = vmul.f32 %v639, 0.0051020407
      %v1294 = vmul.f32 %v643, 0.0051020407
      %v1295 = vmul.f32 %v647, 0.0051020407
      %v1296 = vmul.f32 %v651, 0.0051020407
      %v1297 = vmul.f32 %v655, 0.0051020407
      %v1298 = vmul.f32 %v659, 0.0051020407
      %v1299 = vmul.f32 %v663, 0.0051020407
      %v1300 = vmul.f32 %v667, 0.0051020407
      %v1301 = vmul.f32 %v671, 0.0051020407
      %v1302 = vmul.f32 %v675, 0.0051020407
      %v1303 = vmul.f32 %v679, 0.0051020407
      %v1304 = vmul.f32 %v683, 0.0051020407
      %v1305 = vmul.f32 %v687, 0.0051020407
      %v1306 = vmul.f32 %v691, 0.0051020407
      %v1307 = vmul.f32 %v695, 0.0051020407
      %v1308 = vmul.f32 %v699, 0.0051020407
      %v1309 = vmul.f32 %v703, 0.0051020407
      %v1310 = vmul.f32 %v707, 0.0051020407
      %v1311 = vmul.f32 %v711, 0.0051020407
      %v1312 = vmul.f32 %v715, 0.0051020407
      %v1313 = vmul.f32 %v719, 0.0051020407
      %v1314 = vmul.f32 %v723, 0.0051020407
      %v1315 = vmul.f32 %v727, 0.0051020407
      %v1316 = vmul.f32 %v899, 0.0051020407
      %v1317 = vmul.f32 %v903, 0.0051020407
      %v1318 = vmul.f32 %v907, 0.0051020407
      %v1319 = vmul.f32 %v911, 0.0051020407
      %v1320 = vmul.f32 %v915, 0.0051020407
      %v1321 = vmul.f32 %v919, 0.0051020407
      %v1322 = vmul.f32 %v923, 0.0051020407
      %v1323 = vmul.f32 %v927, 0.0051020407
      %v1324 = vmul.f32 %v931, 0.0051020407
      %v1325 = vmul.f32 %v935, 0.0051020407
      %v1326 = vmul.f32 %v939, 0.0051020407
      %v1327 = vmul.f32 %v943, 0.0051020407
      %v1328 = vmul.f32 %v947, 0.0051020407
      %v1329 = vmul.f32 %v951, 0.0051020407
      %v1330 = vmul.f32 %v955, 0.0051020407
      %v1331 = vmul.f32 %v959, 0.0051020407
      %v1332 = vmul.f32 %v963, 0.0051020407
      %v1333 = vmul.f32 %v967, 0.0051020407
      %v1334 = vmul.f32 %v971, 0.0051020407
      %v1335 = vmul.f32 %v975, 0.0051020407
      %v1336 = vmul.f32 %v979, 0.0051020407
      %v1337 = vmul.f32 %v983, 0.0051020407
      %v1338 = vmul.f32 %v987, 0.0051020407
      %v1339 = vmul.f32 %v991, 0.0051020407
      %v1340 = vmul.f32 %v995, 0.0051020407
      %v1341 = vmul.f32 %v999, 0.0051020407
      %v1342 = vmul.f32 %v1003, 0.0051020407
      %v1343 = vmul.f32 %v1007, 0.0051020407
      %v1344 = vmul.f32 %v1011, 0.0051020407
      %v1345 = vmul.f32 %v1015, 0.0051020407
      %v1346 = vmul.f32 %v1019, 0.0051020407
      %v1347 = vmul.f32 %v1023, 0.0051020407
      %v1348 = vmul.f32 %v1027, 0.0051020407
      %v1349 = vmul.f32 %v1031, 0.0051020407
      %v1350 = vmul.f32 %v1035, 0.0051020407
      %v1351 = vmul.f32 %v1039, 0.0051020407
      %v1352 = vmul.f32 %v1043, 0.0051020407
      %v1353 = vmul.f32 %v1047, 0.0051020407
      %v1354 = vmul.f32 %v1051, 0.0051020407
      %v1355 = vmul.f32 %v1055, 0.0051020407
      %v1356 = vmul.f32 %v1059, 0.0051020407
      %v1357 = vmul.f32 %v1063, 0.0051020407
      %v1358 = vmul.f32 %v1067, 0.0051020407
      %v1359 = vmul.f32 %v1071, 0.0051020407
      %v1360 = vmul.f32 %v1075, 0.0051020407
      %v1361 = vmul.f32 %v1079, 0.0051020407
      %v1362 = vmul.f32 %v1083, 0.0051020407
      %v1363 = vmul.f32 %v1087, 0.0051020407
      %v1364 = vmul.f32 %v1091, 0.0051020407
      %v1365 = vmul.f32 %v1095, 0.0051020407
      %v1366 = vmul.f32 %v1099, 0.0051020407
      %v1367 = vmul.f32 %v1103, 0.0051020407
      %v1368 = vmul.f32 %v1107, 0.0051020407
      %v1369 = vmul.f32 %v1111, 0.0051020407
      %v1370 = vmul.f32 %v1115, 0.0051020407
      %v1371 = vmul.f32 %v1119, 0.0051020407
      %v1372 = vmul.f32 %v1123, 0.0051020407
      %v1373 = vmul.f32 %v1127, 0.0051020407
      %v1374 = vmul.f32 %v1131, 0.0051020407
      %v1375 = vmul.f32 %v1135, 0.0051020407
      %v1376 = vmul.f32 %v1139, 0.0051020407
      %v1377 = vmul.f32 %v1143, 0.0051020407
      %v1378 = vmul.f32 %v1147, 0.0051020407
      %v1379 = vmul.f32 %v1151, 0.0051020407
      %v1380 = vmul.f32 %v1155, 0.0051020407
      %v1381 = vmul.f32 %v1159, 0.0051020407
      %v1382 = vmul.f32 %v1163, 0.0051020407
      %v1383 = vmul.f32 %v1167, 0.0051020407
      %v1384 = vmul.f32 %v1171, 0.0051020407
      %v1385 = vmul.f32 %v1175, 0.0051020407
      %v1386 = vmul.f32 %v1179, 0.0051020407
      %v1387 = vmul.f32 %v1183, 0.0051020407
      %v1388 = vmul.f32 %v1187, 0.0051020407
      %v1389 = vmul.f32 %v1191, 0.0051020407
      %v1390 = vmul.f32 %v1195, 0.0051020407
      %v1391 = vmul.f32 %v1199, 0.0051020407
      %v1392 = vmul.f32 %v1203, 0.0051020407
      %v1393 = vmul.f32 %v1207, 0.0051020407
      %v1394 = vmul.f32 %v1211, 0.0051020407
      %v1395 = vmul.f32 %v1215, 0.0051020407
      %v1396 = vmul.f32 %v1219, 0.0051020407
      %v1397 = vmul.f32 %v1223, 0.0051020407
      %v1398 = vmul.f32 %v1227, 0.0051020407
      %v1399 = vmul.f32 %v1231, 0.0051020407
      %v1400 = vmul.f32 %v1232, %v1232
      %v1401 = vmul.f32 %v1233, %v1233
      %v1402 = vmul.f32 %v1234, %v1234
      %v1403 = vmul.f32 %v1235, %v1235
      %v1404 = vmul.f32 %v1236, %v1236
      %v1405 = vmul.f32 %v1237, %v1237
      %v1406 = vmul.f32 %v1238, %v1238
      %v1407 = vmul.f32 %v1239, %v1239
      %v1408 = vmul.f32 %v1240, %v1240
      %v1409 = vmul.f32 %v1241, %v1241
      %v1410 = vmul.f32 %v1242, %v1242
      %v1411 = vmul.f32 %v1243, %v1243
      %v1412 = vmul.f32 %v1244, %v1244
      %v1413 = vmul.f32 %v1245, %v1245
      %v1414 = vmul.f32 %v1246, %v1246
      %v1415 = vmul.f32 %v1247, %v1247
      %v1416 = vmul.f32 %v1248, %v1248
      %v1417 = vmul.f32 %v1249, %v1249
      %v1418 = vmul.f32 %v1250, %v1250
      %v1419 = vmul.f32 %v1251, %v1251
      %v1420 = vmul.f32 %v1252, %v1252
      %v1421 = vmul.f32 %v1253, %v1253
      %v1422 = vmul.f32 %v1254, %v1254
      %v1423 = vmul.f32 %v1255, %v1255
      %v1424 = vmul.f32 %v1256, %v1256
      %v1425 = vmul.f32 %v1257, %v1257
      %v1426 = vmul.f32 %v1258, %v1258
      %v1427 = vmul.f32 %v1259, %v1259
      %v1428 = vmul.f32 %v1260, %v1260
      %v1429 = vmul.f32 %v1261, %v1261
      %v1430 = vmul.f32 %v1262, %v1262
      %v1431 = vmul.f32 %v1263, %v1263
      %v1432 = vmul.f32 %v1264, %v1264
      %v1433 = vmul.f32 %v1265, %v1265
      %v1434 = vmul.f32 %v1266, %v1266
      %v1435 = vmul.f32 %v1267, %v1267
      %v1436 = vmul.f32 %v1268, %v1268
      %v1437 = vmul.f32 %v1269, %v1269
      %v1438 = vmul.f32 %v1270, %v1270
      %v1439 = vmul.f32 %v1271, %v1271
      %v1440 = vmul.f32 %v1272, %v1272
      %v1441 = vmul.f32 %v1273, %v1273
      %v1442 = vmul.f32 %v1274, %v1274
      %v1443 = vmul.f32 %v1275, %v1275
      %v1444 = vmul.f32 %v1276, %v1276
      %v1445 = vmul.f32 %v1277, %v1277
      %v1446 = vmul.f32 %v1278, %v1278
      %v1447 = vmul.f32 %v1279, %v1279
      %v1448 = vmul.f32 %v1280, %v1280
      %v1449 = vmul.f32 %v1281, %v1281
      %v1450 = vmul.f32 %v1282, %v1282
      %v1451 = vmul.f32 %v1283, %v1283
      %v1452 = vmul.f32 %v1284, %v1284
      %v1453 = vmul.f32 %v1285, %v1285
      %v1454 = vmul.f32 %v1286, %v1286
      %v1455 = vmul.f32 %v1287, %v1287
      %v1456 = vmul.f32 %v1288, %v1288
      %v1457 = vmul.f32 %v1289, %v1289
      %v1458 = vmul.f32 %v1290, %v1290
      %v1459 = vmul.f32 %v1291, %v1291
      %v1460 = vmul.f32 %v1292, %v1292
      %v1461 = vmul.f32 %v1293, %v1293
      %v1462 = vmul.f32 %v1294, %v1294
      %v1463 = vmul.f32 %v1295, %v1295
      %v1464 = vmul.f32 %v1296, %v1296
      %v1465 = vmul.f32 %v1297, %v1297
      %v1466 = vmul.f32 %v1298, %v1298
      %v1467 = vmul.f32 %v1299, %v1299
      %v1468 = vmul.f32 %v1300, %v1300
      %v1469 = vmul.f32 %v1301, %v1301
      %v1470 = vmul.f32 %v1302, %v1302
      %v1471 = vmul.f32 %v1303, %v1303
      %v1472 = vmul.f32 %v1304, %v1304
      %v1473 = vmul.f32 %v1305, %v1305
      %v1474 = vmul.f32 %v1306, %v1306
      %v1475 = vmul.f32 %v1307, %v1307
      %v1476 = vmul.f32 %v1308, %v1308
      %v1477 = vmul.f32 %v1309, %v1309
      %v1478 = vmul.f32 %v1310, %v1310
      %v1479 = vmul.f32 %v1311, %v1311
      %v1480 = vmul.f32 %v1312, %v1312
      %v1481 = vmul.f32 %v1313, %v1313
      %v1482 = vmul.f32 %v1314, %v1314
      %v1483 = vmul.f32 %v1315, %v1315
      %v1484 = vsub.f32 %v1316, %v1400
      %v1485 = vsub.f32 %v1317, %v1401
      %v1486 = vsub.f32 %v1318, %v1402
      %v1487 = vsub.f32 %v1319, %v1403
      %v1488 = vsub.f32 %v1320, %v1404
      %v1489 = vsub.f32 %v1321, %v1405
      %v1490 = vsub.f32 %v1322, %v1406
      %v1491 = vsub.f32 %v1323, %v1407
      %v1492 = vsub.f32 %v1324, %v1408
      %v1493 = vsub.f32 %v1325, %v1409
      %v1494 = vsub.f32 %v1326, %v1410
      %v1495 = vsub.f32 %v1327, %v1411
      %v1496 = vsub.f32 %v1328, %v1412
      %v1497 = vsub.f32 %v1329, %v1413
      %v1498 = vsub.f32 %v1330, %v1414
      %v1499 = vsub.f32 %v1331, %v1415
      %v1500 = vsub.f32 %v1332, %v1416
      %v1501 = vsub.f32 %v1333, %v1417
      %v1502 = vsub.f32 %v1334, %v1418
      %v1503 = vsub.f32 %v1335, %v1419
      %v1504 = vsub.f32 %v1336, %v1420
      %v1505 = vsub.f32 %v1337, %v1421
      %v1506 = vsub.f32 %v1338, %v1422
      %v1507 = vsub.f32 %v1339, %v1423
      %v1508 = vsub.f32 %v1340, %v1424
      %v1509 = vsub.f32 %v1341, %v1425
      %v1510 = vsub.f32 %v1342, %v1426
      %v1511 = vsub.f32 %v1343, %v1427
      %v1512 = vsub.f32 %v1344, %v1428
      %v1513 = vsub.f32 %v1345, %v1429
      %v1514 = vsub.f32 %v1346, %v1430
      %v1515 = vsub.f32 %v1347, %v1431
      %v1516 = vsub.f32 %v1348, %v1432
      %v1517 = vsub.f32 %v1349, %v1433
      %v1518 = vsub.f32 %v1350, %v1434
      %v1519 = vsub.f32 %v1351, %v1435
      %v1520 = vsub.f32 %v1352, %v1436
      %v1521 = vsub.f32 %v1353, %v1437
      %v1522 = vsub.f32 %v1354, %v1438
      %v1523 = vsub.f32 %v1355, %v1439
      %v1524 = vsub.f32 %v1356, %v1440
      %v1525 = vsub.f32 %v1357, %v1441
      %v1526 = vsub.f32 %v1358, %v1442
      %v1527 = vsub.f32 %v1359, %v1443
      %v1528 = vsub.f32 %v1360, %v1444
      %v1529 = vsub.f32 %v1361, %v1445
      %v1530 = vsub.f32 %v1362, %v1446
      %v1531 = vsub.f32 %v1363, %v1447
      %v1532 = vsub.f32 %v1364, %v1448
      %v1533 = vsub.f32 %v1365, %v1449
      %v1534 = vsub.f32 %v1366, %v1450
      %v1535 = vsub.f32 %v1367, %v1451
      %v1536 = vsub.f32 %v1368, %v1452
      %v1537 = vsub.f32 %v1369, %v1453
      %v1538 = vsub.f32 %v1370, %v1454
      %v1539 = vsub.f32 %v1371, %v1455
      %v1540 = vsub.f32 %v1372, %v1456
      %v1541 = vsub.f32 %v1373, %v1457
      %v1542 = vsub.f32 %v1374, %v1458
      %v1543 = vsub.f32 %v1375, %v1459
      %v1544 = vsub.f32 %v1376, %v1460
      %v1545 = vsub.f32 %v1377, %v1461
      %v1546 = vsub.f32 %v1378, %v1462
      %v1547 = vsub.f32 %v1379, %v1463
      %v1548 = vsub.f32 %v1380, %v1464
      %v1549 = vsub.f32 %v1381, %v1465
      %v1550 = vsub.f32 %v1382, %v1466
      %v1551 = vsub.f32 %v1383, %v1467
      %v1552 = vsub.f32 %v1384, %v1468
      %v1553 = vsub.f32 %v1385, %v1469
      %v1554 = vsub.f32 %v1386, %v1470
      %v1555 = vsub.f32 %v1387, %v1471
      %v1556 = vsub.f32 %v1388, %v1472
      %v1557 = vsub.f32 %v1389, %v1473
      %v1558 = vsub.f32 %v1390, %v1474
      %v1559 = vsub.f32 %v1391, %v1475
      %v1560 = vsub.f32 %v1392, %v1476
      %v1561 = vsub.f32 %v1393, %v1477
      %v1562 = vsub.f32 %v1394, %v1478
      %v1563 = vsub.f32 %v1395, %v1479
      %v1564 = vsub.f32 %v1396, %v1480
      %v1565 = vsub.f32 %v1397, %v1481
      %v1566 = vsub.f32 %v1398, %v1482
      %v1567 = vsub.f32 %v1399, %v1483
      %v1568 = vmax.f32 %v1484, 0.0
      %v1569 = vmax.f32 %v1485, 0.0
      %v1570 = vmax.f32 %v1486, 0.0
      %v1571 = vmax.f32 %v1487, 0.0
      %v1572 = vmax.f32 %v1488, 0.0
      %v1573 = vmax.f32 %v1489, 0.0
      %v1574 = vmax.f32 %v1490, 0.0
      %v1575 = vmax.f32 %v1491, 0.0
      %v1576 = vmax.f32 %v1492, 0.0
      %v1577 = vmax.f32 %v1493, 0.0
      %v1578 = vmax.f32 %v1494, 0.0
      %v1579 = vmax.f32 %v1495, 0.0
      %v1580 = vmax.f32 %v1496, 0.0
      %v1581 = vmax.f32 %v1497, 0.0
      %v1582 = vmax.f32 %v1498, 0.0
      %v1583 = vmax.f32 %v1499, 0.0
      %v1584 = vmax.f32 %v1500, 0.0
      %v1585 = vmax.f32 %v1501, 0.0
      %v1586 = vmax.f32 %v1502, 0.0
      %v1587 = vmax.f32 %v1503, 0.0
      %v1588 = vmax.f32 %v1504, 0.0
      %v1589 = vmax.f32 %v1505, 0.0
      %v1590 = vmax.f32 %v1506, 0.0
      %v1591 = vmax.f32 %v1507, 0.0
      %v1592 = vmax.f32 %v1508, 0.0
      %v1593 = vmax.f32 %v1509, 0.0
      %v1594 = vmax.f32 %v1510, 0.0
      %v1595 = vmax.f32 %v1511, 0.0
      %v1596 = vmax.f32 %v1512, 0.0
      %v1597 = vmax.f32 %v1513, 0.0
      %v1598 = vmax.f32 %v1514, 0.0
      %v1599 = vmax.f32 %v1515, 0.0
      %v1600 = vmax.f32 %v1516, 0.0
      %v1601 = vmax.f32 %v1517, 0.0
      %v1602 = vmax.f32 %v1518, 0.0
      %v1603 = vmax.f32 %v1519, 0.0
      %v1604 = vmax.f32 %v1520, 0.0
      %v1605 = vmax.f32 %v1521, 0.0
      %v1606 = vmax.f32 %v1522, 0.0
      %v1607 = vmax.f32 %v1523, 0.0
      %v1608 = vmax.f32 %v1524, 0.0
      %v1609 = vmax.f32 %v1525, 0.0
      %v1610 = vmax.f32 %v1526, 0.0
      %v1611 = vmax.f32 %v1527, 0.0
      %v1612 = vmax.f32 %v1528, 0.0
      %v1613 = vmax.f32 %v1529, 0.0
      %v1614 = vmax.f32 %v1530, 0.0
      %v1615 = vmax.f32 %v1531, 0.0
      %v1616 = vmax.f32 %v1532, 0.0
      %v1617 = vmax.f32 %v1533, 0.0
      %v1618 = vmax.f32 %v1534, 0.0
      %v1619 = vmax.f32 %v1535, 0.0
      %v1620 = vmax.f32 %v1536, 0.0
      %v1621 = vmax.f32 %v1537, 0.0
      %v1622 = vmax.f32 %v1538, 0.0
      %v1623 = vmax.f32 %v1539, 0.0
      %v1624 = vmax.f32 %v1540, 0.0
      %v1625 = vmax.f32 %v1541, 0.0
      %v1626 = vmax.f32 %v1542, 0.0
      %v1627 = vmax.f32 %v1543, 0.0
      %v1628 = vmax.f32 %v1544, 0.0
      %v1629 = vmax.f32 %v1545, 0.0
      %v1630 = vmax.f32 %v1546, 0.0
      %v1631 = vmax.f32 %v1547, 0.0
      %v1632 = vmax.f32 %v1548, 0.0
      %v1633 = vmax.f32 %v1549, 0.0
      %v1634 = vmax.f32 %v1550, 0.0
      %v1635 = vmax.f32 %v1551, 0.0
      %v1636 = vmax.f32 %v1552, 0.0
      %v1637 = vmax.f32 %v1553, 0.0
      %v1638 = vmax.f32 %v1554, 0.0
      %v1639 = vmax.f32 %v1555, 0.0
      %v1640 = vmax.f32 %v1556, 0.0
      %v1641 = vmax.f32 %v1557, 0.0
      %v1642 = vmax.f32 %v1558, 0.0
      %v1643 = vmax.f32 %v1559, 0.0
      %v1644 = vmax.f32 %v1560, 0.0
      %v1645 = vmax.f32 %v1561, 0.0
      %v1646 = vmax.f32 %v1562, 0.0
      %v1647 = vmax.f32 %v1563, 0.0
      %v1648 = vmax.f32 %v1564, 0.0
      %v1649 = vmax.f32 %v1565, 0.0
      %v1650 = vmax.f32 %v1566, 0.0
      %v1651 = vmax.f32 %v1567, 0.0
      %v1652 = vadd.f32 %v1568, 0.001
      %v1653 = vadd.f32 %v1569, 0.001
      %v1654 = vadd.f32 %v1570, 0.001
      %v1655 = vadd.f32 %v1571, 0.001
      %v1656 = vadd.f32 %v1572, 0.001
      %v1657 = vadd.f32 %v1573, 0.001
      %v1658 = vadd.f32 %v1574, 0.001
      %v1659 = vadd.f32 %v1575, 0.001
      %v1660 = vadd.f32 %v1576, 0.001
      %v1661 = vadd.f32 %v1577, 0.001
      %v1662 = vadd.f32 %v1578, 0.001
      %v1663 = vadd.f32 %v1579, 0.001
      %v1664 = vadd.f32 %v1580, 0.001
      %v1665 = vadd.f32 %v1581, 0.001
      %v1666 = vadd.f32 %v1582, 0.001
      %v1667 = vadd.f32 %v1583, 0.001
      %v1668 = vadd.f32 %v1584, 0.001
      %v1669 = vadd.f32 %v1585, 0.001
      %v1670 = vadd.f32 %v1586, 0.001
      %v1671 = vadd.f32 %v1587, 0.001
      %v1672 = vadd.f32 %v1588, 0.001
      %v1673 = vadd.f32 %v1589, 0.001
      %v1674 = vadd.f32 %v1590, 0.001
      %v1675 = vadd.f32 %v1591, 0.001
      %v1676 = vadd.f32 %v1592, 0.001
      %v1677 = vadd.f32 %v1593, 0.001
      %v1678 = vadd.f32 %v1594, 0.001
      %v1679 = vadd.f32 %v1595, 0.001
      %v1680 = vadd.f32 %v1596, 0.001
      %v1681 = vadd.f32 %v1597, 0.001
      %v1682 = vadd.f32 %v1598, 0.001
      %v1683 = vadd.f32 %v1599, 0.001
      %v1684 = vadd.f32 %v1600, 0.001
      %v1685 = vadd.f32 %v1601, 0.001
      %v1686 = vadd.f32 %v1602, 0.001
      %v1687 = vadd.f32 %v1603, 0.001
      %v1688 = vadd.f32 %v1604, 0.001
      %v1689 = vadd.f32 %v1605, 0.001
      %v1690 = vadd.f32 %v1606, 0.001
      %v1691 = vadd.f32 %v1607, 0.001
      %v1692 = vadd.f32 %v1608, 0.001
      %v1693 = vadd.f32 %v1609, 0.001
      %v1694 = vadd.f32 %v1610, 0.001
      %v1695 = vadd.f32 %v1611, 0.001
      %v1696 = vadd.f32 %v1612, 0.001
      %v1697 = vadd.f32 %v1613, 0.001
      %v1698 = vadd.f32 %v1614, 0.001
      %v1699 = vadd.f32 %v1615, 0.001
      %v1700 = vadd.f32 %v1616, 0.001
      %v1701 = vadd.f32 %v1617, 0.001
      %v1702 = vadd.f32 %v1618, 0.001
      %v1703 = vadd.f32 %v1619, 0.001
      %v1704 = vadd.f32 %v1620, 0.001
      %v1705 = vadd.f32 %v1621, 0.001
      %v1706 = vadd.f32 %v1622, 0.001
      %v1707 = vadd.f32 %v1623, 0.001
      %v1708 = vadd.f32 %v1624, 0.001
      %v1709 = vadd.f32 %v1625, 0.001
      %v1710 = vadd.f32 %v1626, 0.001
      %v1711 = vadd.f32 %v1627, 0.001
      %v1712 = vadd.f32 %v1628, 0.001
      %v1713 = vadd.f32 %v1629, 0.001
      %v1714 = vadd.f32 %v1630, 0.001
      %v1715 = vadd.f32 %v1631, 0.001
      %v1716 = vadd.f32 %v1632, 0.001
      %v1717 = vadd.f32 %v1633, 0.001
      %v1718 = vadd.f32 %v1634, 0.001
      %v1719 = vadd.f32 %v1635, 0.001
      %v1720 = vadd.f32 %v1636, 0.001
      %v1721 = vadd.f32 %v1637, 0.001
      %v1722 = vadd.f32 %v1638, 0.001
      %v1723 = vadd.f32 %v1639, 0.001
      %v1724 = vadd.f32 %v1640, 0.001
      %v1725 = vadd.f32 %v1641, 0.001
      %v1726 = vadd.f32 %v1642, 0.001
      %v1727 = vadd.f32 %v1643, 0.001
      %v1728 = vadd.f32 %v1644, 0.001
      %v1729 = vadd.f32 %v1645, 0.001
      %v1730 = vadd.f32 %v1646, 0.001
      %v1731 = vadd.f32 %v1647, 0.001
      %v1732 = vadd.f32 %v1648, 0.001
      %v1733 = vadd.f32 %v1649, 0.001
      %v1734 = vadd.f32 %v1650, 0.001
      %v1735 = vadd.f32 %v1651, 0.001
      %v1736 = vrsqrt.pop %v1652
      %v1737 = vrsqrt.pop %v1653
      %v1738 = vrsqrt.pop %v1654
      %v1739 = vrsqrt.pop %v1655
      %v1740 = vrsqrt.pop %v1656
      %v1741 = vrsqrt.pop %v1657
      %v1742 = vrsqrt.pop %v1658
      %v1743 = vrsqrt.pop %v1659
      %v1744 = vrsqrt.pop %v1660
      %v1745 = vrsqrt.pop %v1661
      %v1746 = vrsqrt.pop %v1662
      %v1747 = vrsqrt.pop %v1663
      %v1748 = vrsqrt.pop %v1664
      %v1749 = vrsqrt.pop %v1665
      %v1750 = vrsqrt.pop %v1666
      %v1751 = vrsqrt.pop %v1667
      %v1752 = vrsqrt.pop %v1668
      %v1753 = vrsqrt.pop %v1669
      %v1754 = vrsqrt.pop %v1670
      %v1755 = vrsqrt.pop %v1671
      %v1756 = vrsqrt.pop %v1672
      %v1757 = vrsqrt.pop %v1673
      %v1758 = vrsqrt.pop %v1674
      %v1759 = vrsqrt.pop %v1675
      %v1760 = vrsqrt.pop %v1676
      %v1761 = vrsqrt.pop %v1677
      %v1762 = vrsqrt.pop %v1678
      %v1763 = vrsqrt.pop %v1679
      %v1764 = vrsqrt.pop %v1680
      %v1765 = vrsqrt.pop %v1681
      %v1766 = vrsqrt.pop %v1682
      %v1767 = vrsqrt.pop %v1683
      %v1768 = vrsqrt.pop %v1684
      %v1769 = vrsqrt.pop %v1685
      %v1770 = vrsqrt.pop %v1686
      %v1771 = vrsqrt.pop %v1687
      %v1772 = vrsqrt.pop %v1688
      %v1773 = vrsqrt.pop %v1689
      %v1774 = vrsqrt.pop %v1690
      %v1775 = vrsqrt.pop %v1691
      %v1776 = vrsqrt.pop %v1692
      %v1777 = vrsqrt.pop %v1693
      %v1778 = vrsqrt.pop %v1694
      %v1779 = vrsqrt.pop %v1695
      %v1780 = vrsqrt.pop %v1696
      %v1781 = vrsqrt.pop %v1697
      %v1782 = vrsqrt.pop %v1698
      %v1783 = vrsqrt.pop %v1699
      %v1784 = vrsqrt.pop %v1700
      %v1785 = vrsqrt.pop %v1701
      %v1786 = vrsqrt.pop %v1702
      %v1787 = vrsqrt.pop %v1703
      %v1788 = vrsqrt.pop %v1704
      %v1789 = vrsqrt.pop %v1705
      %v1790 = vrsqrt.pop %v1706
      %v1791 = vrsqrt.pop %v1707
      %v1792 = vrsqrt.pop %v1708
      %v1793 = vrsqrt.pop %v1709
      %v1794 = vrsqrt.pop %v1710
      %v1795 = vrsqrt.pop %v1711
      %v1796 = vrsqrt.pop %v1712
      %v1797 = vrsqrt.pop %v1713
      %v1798 = vrsqrt.pop %v1714
      %v1799 = vrsqrt.pop %v1715
      %v1800 = vrsqrt.pop %v1716
      %v1801 = vrsqrt.pop %v1717
      %v1802 = vrsqrt.pop %v1718
      %v1803 = vrsqrt.pop %v1719
      %v1804 = vrsqrt.pop %v1720
      %v1805 = vrsqrt.pop %v1721
      %v1806 = vrsqrt.pop %v1722
      %v1807 = vrsqrt.pop %v1723
      %v1808 = vrsqrt.pop %v1724
      %v1809 = vrsqrt.pop %v1725
      %v1810 = vrsqrt.pop %v1726
      %v1811 = vrsqrt.pop %v1727
      %v1812 = vrsqrt.pop %v1728
      %v1813 = vrsqrt.pop %v1729
      %v1814 = vrsqrt.pop %v1730
      %v1815 = vrsqrt.pop %v1731
      %v1816 = vrsqrt.pop %v1732
      %v1817 = vrsqrt.pop %v1733
      %v1818 = vrsqrt.pop %v1734
      %v1819 = vrsqrt.pop %v1735
      %v1820 = vld [vmem:[%s208] sm:$0xff]
      %v1821 = vld [vmem:[%s208 + $0x8] sm:$0xff]
      %v1822 = vld [vmem:[%s208 + $0x10] sm:$0xff]
      %v1823 = vld [vmem:[%s208 + $0x18] sm:$0xff]
      %v1824 = vld [vmem:[%s208 + $0x20] sm:$0xff]
      %v1825 = vld [vmem:[%s208 + $0x28] sm:$0xff]
      %v1826 = vld [vmem:[%s208 + $0x30] sm:$0xff]
      %v1827 = vld [vmem:[%s208 + $0x38] sm:$0xff]
      %v1828 = vld [vmem:[%s208 + $0x40] sm:$0xff]
      %v1829 = vld [vmem:[%s208 + $0x48] sm:$0xff]
      %v1830 = vld [vmem:[%s208 + $0x50] sm:$0xff]
      %v1831 = vld [vmem:[%s208 + $0x58] sm:$0xff]
      %v1832 = vld [vmem:[%s208 + $0x60] sm:$0xff]
      %v1833 = vld [vmem:[%s208 + $0x68] sm:$0xff]
      %v1834 = vld [vmem:[%s208 + $0x70] sm:$0xff]
      %v1835 = vld [vmem:[%s208 + $0x78] sm:$0xff]
      %v1836 = vld [vmem:[%s208 + $0x80] sm:$0xff]
      %v1837 = vld [vmem:[%s208 + $0x88] sm:$0xff]
      %v1838 = vld [vmem:[%s208 + $0x90] sm:$0xff]
      %v1839 = vld [vmem:[%s208 + $0x98] sm:$0xff]
      %v1840 = vld [vmem:[%s208 + $0xa0] sm:$0xff]
      %v1841 = vld [vmem:[%s208 + $0xa8] sm:$0xff]
      %v1842 = vld [vmem:[%s208 + $0xb0] sm:$0xff]
      %v1843 = vld [vmem:[%s208 + $0xb8] sm:$0xff]
      %v1844 = vld [vmem:[%s208 + $0xc0] sm:$0xff]
      %v1845 = vld [vmem:[%s208 + $0xc8] sm:$0xff]
      %v1846 = vld [vmem:[%s208 + $0xd0] sm:$0xff]
      %v1847 = vld [vmem:[%s208 + $0xd8] sm:$0xff]
      %v1848 = vld [vmem:[%s208 + $0xe0] sm:$0xff]
      %v1849 = vld [vmem:[%s208 + $0xe8] sm:$0xff]
      %v1850 = vld [vmem:[%s208 + $0xf0] sm:$0xff]
      %v1851 = vld [vmem:[%s208 + $0xf8] sm:$0xff]
      %v1852 = vld [vmem:[%s208 + $0x100] sm:$0xff]
      %v1853 = vld [vmem:[%s208 + $0x108] sm:$0xff]
      %v1854 = vld [vmem:[%s208 + $0x110] sm:$0xff]
      %v1855 = vld [vmem:[%s208 + $0x118] sm:$0xff]
      %v1856 = vld [vmem:[%s208 + $0x120] sm:$0xff]
      %v1857 = vld [vmem:[%s208 + $0x128] sm:$0xff]
      %v1858 = vld [vmem:[%s208 + $0x130] sm:$0xff]
      %v1859 = vld [vmem:[%s208 + $0x138] sm:$0xff]
      %v1860 = vld [vmem:[%s208 + $0x140] sm:$0xff]
      %v1861 = vld [vmem:[%s208 + $0x148] sm:$0xff]
      %v1862 = vld [vmem:[%s208 + $0x150] sm:$0xff]
      %v1863 = vld [vmem:[%s208 + $0x158] sm:$0xff]
      %v1864 = vld [vmem:[%s208 + $0x160] sm:$0xff]
      %v1865 = vld [vmem:[%s208 + $0x168] sm:$0xff]
      %v1866 = vld [vmem:[%s208 + $0x170] sm:$0xff]
      %v1867 = vld [vmem:[%s208 + $0x178] sm:$0xff]
      %v1868 = vld [vmem:[%s208 + $0x180] sm:$0xff]
      %v1869 = vld [vmem:[%s208 + $0x188] sm:$0xff]
      %v1870 = vld [vmem:[%s208 + $0x190] sm:$0xff]
      %v1871 = vld [vmem:[%s208 + $0x198] sm:$0xff]
      %v1872 = vld [vmem:[%s208 + $0x1a0] sm:$0xff]
      %v1873 = vld [vmem:[%s208 + $0x1a8] sm:$0xff]
      %v1874 = vld [vmem:[%s208 + $0x1b0] sm:$0xff]
      %v1875 = vld [vmem:[%s208 + $0x1b8] sm:$0xff]
      %v1876 = vld [vmem:[%s208 + $0x1c0] sm:$0xff]
      %v1877 = vld [vmem:[%s208 + $0x1c8] sm:$0xff]
      %v1878 = vld [vmem:[%s208 + $0x1d0] sm:$0xff]
      %v1879 = vld [vmem:[%s208 + $0x1d8] sm:$0xff]
      %v1880 = vld [vmem:[%s208 + $0x1e0] sm:$0xff]
      %v1881 = vld [vmem:[%s208 + $0x1e8] sm:$0xff]
      %v1882 = vld [vmem:[%s208 + $0x1f0] sm:$0xff]
      %v1883 = vld [vmem:[%s208 + $0x1f8] sm:$0xff]
      %v1884 = vld [vmem:[%s208 + $0x200] sm:$0xff]
      %v1885 = vld [vmem:[%s208 + $0x208] sm:$0xff]
      %v1886 = vld [vmem:[%s208 + $0x210] sm:$0xff]
      %v1887 = vld [vmem:[%s208 + $0x218] sm:$0xff]
      %v1888 = vld [vmem:[%s208 + $0x220] sm:$0xff]
      %v1889 = vld [vmem:[%s208 + $0x228] sm:$0xff]
      %v1890 = vld [vmem:[%s208 + $0x230] sm:$0xff]
      %v1891 = vld [vmem:[%s208 + $0x238] sm:$0xff]
      %v1892 = vld [vmem:[%s208 + $0x240] sm:$0xff]
      %v1893 = vld [vmem:[%s208 + $0x248] sm:$0xff]
      %v1894 = vld [vmem:[%s208 + $0x250] sm:$0xff]
      %v1895 = vld [vmem:[%s208 + $0x258] sm:$0xff]
      %v1896 = vld [vmem:[%s208 + $0x260] sm:$0xff]
      %v1897 = vld [vmem:[%s208 + $0x268] sm:$0xff]
      %v1898 = vld [vmem:[%s208 + $0x270] sm:$0xff]
      %v1899 = vld [vmem:[%s208 + $0x278] sm:$0xff]
      %v1900 = vld [vmem:[%s208 + $0x280] sm:$0xff]
      %v1901 = vld [vmem:[%s208 + $0x288] sm:$0xff]
      %v1902 = vld [vmem:[%s208 + $0x290] sm:$0xff]
      %v1903 = vld [vmem:[%s208 + $0x298] sm:$0xff]
      %v1904 = vld [vmem:[%s214] sm:$0xff]
      %v1905 = vld [vmem:[%s214 + $0x8] sm:$0xff]
      %v1906 = vld [vmem:[%s214 + $0x10] sm:$0xff]
      %v1907 = vld [vmem:[%s214 + $0x18] sm:$0xff]
      %v1908 = vld [vmem:[%s214 + $0x20] sm:$0xff]
      %v1909 = vld [vmem:[%s214 + $0x28] sm:$0xff]
      %v1910 = vld [vmem:[%s214 + $0x30] sm:$0xff]
      %v1911 = vld [vmem:[%s214 + $0x38] sm:$0xff]
      %v1912 = vld [vmem:[%s214 + $0x40] sm:$0xff]
      %v1913 = vld [vmem:[%s214 + $0x48] sm:$0xff]
      %v1914 = vld [vmem:[%s214 + $0x50] sm:$0xff]
      %v1915 = vld [vmem:[%s214 + $0x58] sm:$0xff]
      %v1916 = vld [vmem:[%s214 + $0x60] sm:$0xff]
      %v1917 = vld [vmem:[%s214 + $0x68] sm:$0xff]
      %v1918 = vld [vmem:[%s214 + $0x70] sm:$0xff]
      %v1919 = vld [vmem:[%s214 + $0x78] sm:$0xff]
      %v1920 = vld [vmem:[%s214 + $0x80] sm:$0xff]
      %v1921 = vld [vmem:[%s214 + $0x88] sm:$0xff]
      %v1922 = vld [vmem:[%s214 + $0x90] sm:$0xff]
      %v1923 = vld [vmem:[%s214 + $0x98] sm:$0xff]
      %v1924 = vld [vmem:[%s214 + $0xa0] sm:$0xff]
      %v1925 = vld [vmem:[%s214 + $0xa8] sm:$0xff]
      %v1926 = vld [vmem:[%s214 + $0xb0] sm:$0xff]
      %v1927 = vld [vmem:[%s214 + $0xb8] sm:$0xff]
      %v1928 = vld [vmem:[%s214 + $0xc0] sm:$0xff]
      %v1929 = vld [vmem:[%s214 + $0xc8] sm:$0xff]
      %v1930 = vld [vmem:[%s214 + $0xd0] sm:$0xff]
      %v1931 = vld [vmem:[%s214 + $0xd8] sm:$0xff]
      %v1932 = vld [vmem:[%s214 + $0xe0] sm:$0xff]
      %v1933 = vld [vmem:[%s214 + $0xe8] sm:$0xff]
      %v1934 = vld [vmem:[%s214 + $0xf0] sm:$0xff]
      %v1935 = vld [vmem:[%s214 + $0xf8] sm:$0xff]
      %v1936 = vld [vmem:[%s214 + $0x100] sm:$0xff]
      %v1937 = vld [vmem:[%s214 + $0x108] sm:$0xff]
      %v1938 = vld [vmem:[%s214 + $0x110] sm:$0xff]
      %v1939 = vld [vmem:[%s214 + $0x118] sm:$0xff]
      %v1940 = vld [vmem:[%s214 + $0x120] sm:$0xff]
      %v1941 = vld [vmem:[%s214 + $0x128] sm:$0xff]
      %v1942 = vld [vmem:[%s214 + $0x130] sm:$0xff]
      %v1943 = vld [vmem:[%s214 + $0x138] sm:$0xff]
      %v1944 = vld [vmem:[%s214 + $0x140] sm:$0xff]
      %v1945 = vld [vmem:[%s214 + $0x148] sm:$0xff]
      %v1946 = vld [vmem:[%s214 + $0x150] sm:$0xff]
      %v1947 = vld [vmem:[%s214 + $0x158] sm:$0xff]
      %v1948 = vld [vmem:[%s214 + $0x160] sm:$0xff]
      %v1949 = vld [vmem:[%s214 + $0x168] sm:$0xff]
      %v1950 = vld [vmem:[%s214 + $0x170] sm:$0xff]
      %v1951 = vld [vmem:[%s214 + $0x178] sm:$0xff]
      %v1952 = vld [vmem:[%s214 + $0x180] sm:$0xff]
      %v1953 = vld [vmem:[%s214 + $0x188] sm:$0xff]
      %v1954 = vld [vmem:[%s214 + $0x190] sm:$0xff]
      %v1955 = vld [vmem:[%s214 + $0x198] sm:$0xff]
      %v1956 = vld [vmem:[%s214 + $0x1a0] sm:$0xff]
      %v1957 = vld [vmem:[%s214 + $0x1a8] sm:$0xff]
      %v1958 = vld [vmem:[%s214 + $0x1b0] sm:$0xff]
      %v1959 = vld [vmem:[%s214 + $0x1b8] sm:$0xff]
      %v1960 = vld [vmem:[%s214 + $0x1c0] sm:$0xff]
      %v1961 = vld [vmem:[%s214 + $0x1c8] sm:$0xff]
      %v1962 = vld [vmem:[%s214 + $0x1d0] sm:$0xff]
      %v1963 = vld [vmem:[%s214 + $0x1d8] sm:$0xff]
      %v1964 = vld [vmem:[%s214 + $0x1e0] sm:$0xff]
      %v1965 = vld [vmem:[%s214 + $0x1e8] sm:$0xff]
      %v1966 = vld [vmem:[%s214 + $0x1f0] sm:$0xff]
      %v1967 = vld [vmem:[%s214 + $0x1f8] sm:$0xff]
      %v1968 = vld [vmem:[%s214 + $0x200] sm:$0xff]
      %v1969 = vld [vmem:[%s214 + $0x208] sm:$0xff]
      %v1970 = vld [vmem:[%s214 + $0x210] sm:$0xff]
      %v1971 = vld [vmem:[%s214 + $0x218] sm:$0xff]
      %v1972 = vld [vmem:[%s214 + $0x220] sm:$0xff]
      %v1973 = vld [vmem:[%s214 + $0x228] sm:$0xff]
      %v1974 = vld [vmem:[%s214 + $0x230] sm:$0xff]
      %v1975 = vld [vmem:[%s214 + $0x238] sm:$0xff]
      %v1976 = vld [vmem:[%s214 + $0x240] sm:$0xff]
      %v1977 = vld [vmem:[%s214 + $0x248] sm:$0xff]
      %v1978 = vld [vmem:[%s214 + $0x250] sm:$0xff]
      %v1979 = vld [vmem:[%s214 + $0x258] sm:$0xff]
      %v1980 = vld [vmem:[%s214 + $0x260] sm:$0xff]
      %v1981 = vld [vmem:[%s214 + $0x268] sm:$0xff]
      %v1982 = vld [vmem:[%s214 + $0x270] sm:$0xff]
      %v1983 = vld [vmem:[%s214 + $0x278] sm:$0xff]
      %v1984 = vld [vmem:[%s214 + $0x280] sm:$0xff]
      %v1985 = vld [vmem:[%s214 + $0x288] sm:$0xff]
      %v1986 = vld [vmem:[%s214 + $0x290] sm:$0xff]
      %v1987 = vld [vmem:[%s214 + $0x298] sm:$0xff]
      %v1988 = vmul.f32 %v1736, %v1820
      %v1989 = vmul.f32 %v1737, %v1821
      %v1990 = vmul.f32 %v1738, %v1822
      %v1991 = vmul.f32 %v1739, %v1823
      %v1992 = vmul.f32 %v1740, %v1824
      %v1993 = vmul.f32 %v1741, %v1825
      %v1994 = vmul.f32 %v1742, %v1826
      %v1995 = vmul.f32 %v1743, %v1827
      %v1996 = vmul.f32 %v1744, %v1828
      %v1997 = vmul.f32 %v1745, %v1829
      %v1998 = vmul.f32 %v1746, %v1830
      %v1999 = vmul.f32 %v1747, %v1831
      %v2000 = vmul.f32 %v1748, %v1832
      %v2001 = vmul.f32 %v1749, %v1833
      %v2002 = vmul.f32 %v1750, %v1834
      %v2003 = vmul.f32 %v1751, %v1835
      %v2004 = vmul.f32 %v1752, %v1836
      %v2005 = vmul.f32 %v1753, %v1837
      %v2006 = vmul.f32 %v1754, %v1838
      %v2007 = vmul.f32 %v1755, %v1839
      %v2008 = vmul.f32 %v1756, %v1840
      %v2009 = vmul.f32 %v1757, %v1841
      %v2010 = vmul.f32 %v1758, %v1842
      %v2011 = vmul.f32 %v1759, %v1843
      %v2012 = vmul.f32 %v1760, %v1844
      %v2013 = vmul.f32 %v1761, %v1845
      %v2014 = vmul.f32 %v1762, %v1846
      %v2015 = vmul.f32 %v1763, %v1847
      %v2016 = vmul.f32 %v1764, %v1848
      %v2017 = vmul.f32 %v1765, %v1849
      %v2018 = vmul.f32 %v1766, %v1850
      %v2019 = vmul.f32 %v1767, %v1851
      %v2020 = vmul.f32 %v1768, %v1852
      %v2021 = vmul.f32 %v1769, %v1853
      %v2022 = vmul.f32 %v1770, %v1854
      %v2023 = vmul.f32 %v1771, %v1855
      %v2024 = vmul.f32 %v1772, %v1856
      %v2025 = vmul.f32 %v1773, %v1857
      %v2026 = vmul.f32 %v1774, %v1858
      %v2027 = vmul.f32 %v1775, %v1859
      %v2028 = vmul.f32 %v1776, %v1860
      %v2029 = vmul.f32 %v1777, %v1861
      %v2030 = vmul.f32 %v1778, %v1862
      %v2031 = vmul.f32 %v1779, %v1863
      %v2032 = vmul.f32 %v1780, %v1864
      %v2033 = vmul.f32 %v1781, %v1865
      %v2034 = vmul.f32 %v1782, %v1866
      %v2035 = vmul.f32 %v1783, %v1867
      %v2036 = vmul.f32 %v1784, %v1868
      %v2037 = vmul.f32 %v1785, %v1869
      %v2038 = vmul.f32 %v1786, %v1870
      %v2039 = vmul.f32 %v1787, %v1871
      %v2040 = vmul.f32 %v1788, %v1872
      %v2041 = vmul.f32 %v1789, %v1873
      %v2042 = vmul.f32 %v1790, %v1874
      %v2043 = vmul.f32 %v1791, %v1875
      %v2044 = vmul.f32 %v1792, %v1876
      %v2045 = vmul.f32 %v1793, %v1877
      %v2046 = vmul.f32 %v1794, %v1878
      %v2047 = vmul.f32 %v1795, %v1879
      %v2048 = vmul.f32 %v1796, %v1880
      %v2049 = vmul.f32 %v1797, %v1881
      %v2050 = vmul.f32 %v1798, %v1882
      %v2051 = vmul.f32 %v1799, %v1883
      %v2052 = vmul.f32 %v1800, %v1884
      %v2053 = vmul.f32 %v1801, %v1885
      %v2054 = vmul.f32 %v1802, %v1886
      %v2055 = vmul.f32 %v1803, %v1887
      %v2056 = vmul.f32 %v1804, %v1888
      %v2057 = vmul.f32 %v1805, %v1889
      %v2058 = vmul.f32 %v1806, %v1890
      %v2059 = vmul.f32 %v1807, %v1891
      %v2060 = vmul.f32 %v1808, %v1892
      %v2061 = vmul.f32 %v1809, %v1893
      %v2062 = vmul.f32 %v1810, %v1894
      %v2063 = vmul.f32 %v1811, %v1895
      %v2064 = vmul.f32 %v1812, %v1896
      %v2065 = vmul.f32 %v1813, %v1897
      %v2066 = vmul.f32 %v1814, %v1898
      %v2067 = vmul.f32 %v1815, %v1899
      %v2068 = vmul.f32 %v1816, %v1900
      %v2069 = vmul.f32 %v1817, %v1901
      %v2070 = vmul.f32 %v1818, %v1902
      %v2071 = vmul.f32 %v1819, %v1903
      %v2072 = vmul.f32 %v1232, %v1988
      %v2073 = vmul.f32 %v1233, %v1989
      %v2074 = vmul.f32 %v1234, %v1990
      %v2075 = vmul.f32 %v1235, %v1991
      %v2076 = vmul.f32 %v1236, %v1992
      %v2077 = vmul.f32 %v1237, %v1993
      %v2078 = vmul.f32 %v1238, %v1994
      %v2079 = vmul.f32 %v1239, %v1995
      %v2080 = vmul.f32 %v1240, %v1996
      %v2081 = vmul.f32 %v1241, %v1997
      %v2082 = vmul.f32 %v1242, %v1998
      %v2083 = vmul.f32 %v1243, %v1999
      %v2084 = vmul.f32 %v1244, %v2000
      %v2085 = vmul.f32 %v1245, %v2001
      %v2086 = vmul.f32 %v1246, %v2002
      %v2087 = vmul.f32 %v1247, %v2003
      %v2088 = vmul.f32 %v1248, %v2004
      %v2089 = vmul.f32 %v1249, %v2005
      %v2090 = vmul.f32 %v1250, %v2006
      %v2091 = vmul.f32 %v1251, %v2007
      %v2092 = vmul.f32 %v1252, %v2008
      %v2093 = vmul.f32 %v1253, %v2009
      %v2094 = vmul.f32 %v1254, %v2010
      %v2095 = vmul.f32 %v1255, %v2011
      %v2096 = vmul.f32 %v1256, %v2012
      %v2097 = vmul.f32 %v1257, %v2013
      %v2098 = vmul.f32 %v1258, %v2014
      %v2099 = vmul.f32 %v1259, %v2015
      %v2100 = vmul.f32 %v1260, %v2016
      %v2101 = vmul.f32 %v1261, %v2017
      %v2102 = vmul.f32 %v1262, %v2018
      %v2103 = vmul.f32 %v1263, %v2019
      %v2104 = vmul.f32 %v1264, %v2020
      %v2105 = vmul.f32 %v1265, %v2021
      %v2106 = vmul.f32 %v1266, %v2022
      %v2107 = vmul.f32 %v1267, %v2023
      %v2108 = vmul.f32 %v1268, %v2024
      %v2109 = vmul.f32 %v1269, %v2025
      %v2110 = vmul.f32 %v1270, %v2026
      %v2111 = vmul.f32 %v1271, %v2027
      %v2112 = vmul.f32 %v1272, %v2028
      %v2113 = vmul.f32 %v1273, %v2029
      %v2114 = vmul.f32 %v1274, %v2030
      %v2115 = vmul.f32 %v1275, %v2031
      %v2116 = vmul.f32 %v1276, %v2032
      %v2117 = vmul.f32 %v1277, %v2033
      %v2118 = vmul.f32 %v1278, %v2034
      %v2119 = vmul.f32 %v1279, %v2035
      %v2120 = vmul.f32 %v1280, %v2036
      %v2121 = vmul.f32 %v1281, %v2037
      %v2122 = vmul.f32 %v1282, %v2038
      %v2123 = vmul.f32 %v1283, %v2039
      %v2124 = vmul.f32 %v1284, %v2040
      %v2125 = vmul.f32 %v1285, %v2041
      %v2126 = vmul.f32 %v1286, %v2042
      %v2127 = vmul.f32 %v1287, %v2043
      %v2128 = vmul.f32 %v1288, %v2044
      %v2129 = vmul.f32 %v1289, %v2045
      %v2130 = vmul.f32 %v1290, %v2046
      %v2131 = vmul.f32 %v1291, %v2047
      %v2132 = vmul.f32 %v1292, %v2048
      %v2133 = vmul.f32 %v1293, %v2049
      %v2134 = vmul.f32 %v1294, %v2050
      %v2135 = vmul.f32 %v1295, %v2051
      %v2136 = vmul.f32 %v1296, %v2052
      %v2137 = vmul.f32 %v1297, %v2053
      %v2138 = vmul.f32 %v1298, %v2054
      %v2139 = vmul.f32 %v1299, %v2055
      %v2140 = vmul.f32 %v1300, %v2056
      %v2141 = vmul.f32 %v1301, %v2057
      %v2142 = vmul.f32 %v1302, %v2058
      %v2143 = vmul.f32 %v1303, %v2059
      %v2144 = vmul.f32 %v1304, %v2060
      %v2145 = vmul.f32 %v1305, %v2061
      %v2146 = vmul.f32 %v1306, %v2062
      %v2147 = vmul.f32 %v1307, %v2063
      %v2148 = vmul.f32 %v1308, %v2064
      %v2149 = vmul.f32 %v1309, %v2065
      %v2150 = vmul.f32 %v1310, %v2066
      %v2151 = vmul.f32 %v1311, %v2067
      %v2152 = vmul.f32 %v1312, %v2068
      %v2153 = vmul.f32 %v1313, %v2069
      %v2154 = vmul.f32 %v1314, %v2070
      %v2155 = vmul.f32 %v1315, %v2071
      %v2156 = vsub.f32 %v1904, %v2072
      %v2157 = vsub.f32 %v1905, %v2073
      %v2158 = vsub.f32 %v1906, %v2074
      %v2159 = vsub.f32 %v1907, %v2075
      %v2160 = vsub.f32 %v1908, %v2076
      %v2161 = vsub.f32 %v1909, %v2077
      %v2162 = vsub.f32 %v1910, %v2078
      %v2163 = vsub.f32 %v1911, %v2079
      %v2164 = vsub.f32 %v1912, %v2080
      %v2165 = vsub.f32 %v1913, %v2081
      %v2166 = vsub.f32 %v1914, %v2082
      %v2167 = vsub.f32 %v1915, %v2083
      %v2168 = vsub.f32 %v1916, %v2084
      %v2169 = vsub.f32 %v1917, %v2085
      %v2170 = vsub.f32 %v1918, %v2086
      %v2171 = vsub.f32 %v1919, %v2087
      %v2172 = vsub.f32 %v1920, %v2088
      %v2173 = vsub.f32 %v1921, %v2089
      %v2174 = vsub.f32 %v1922, %v2090
      %v2175 = vsub.f32 %v1923, %v2091
      %v2176 = vsub.f32 %v1924, %v2092
      %v2177 = vsub.f32 %v1925, %v2093
      %v2178 = vsub.f32 %v1926, %v2094
      %v2179 = vsub.f32 %v1927, %v2095
      %v2180 = vsub.f32 %v1928, %v2096
      %v2181 = vsub.f32 %v1929, %v2097
      %v2182 = vsub.f32 %v1930, %v2098
      %v2183 = vsub.f32 %v1931, %v2099
      %v2184 = vsub.f32 %v1932, %v2100
      %v2185 = vsub.f32 %v1933, %v2101
      %v2186 = vsub.f32 %v1934, %v2102
      %v2187 = vsub.f32 %v1935, %v2103
      %v2188 = vsub.f32 %v1936, %v2104
      %v2189 = vsub.f32 %v1937, %v2105
      %v2190 = vsub.f32 %v1938, %v2106
      %v2191 = vsub.f32 %v1939, %v2107
      %v2192 = vsub.f32 %v1940, %v2108
      %v2193 = vsub.f32 %v1941, %v2109
      %v2194 = vsub.f32 %v1942, %v2110
      %v2195 = vsub.f32 %v1943, %v2111
      %v2196 = vsub.f32 %v1944, %v2112
      %v2197 = vsub.f32 %v1945, %v2113
      %v2198 = vsub.f32 %v1946, %v2114
      %v2199 = vsub.f32 %v1947, %v2115
      %v2200 = vsub.f32 %v1948, %v2116
      %v2201 = vsub.f32 %v1949, %v2117
      %v2202 = vsub.f32 %v1950, %v2118
      %v2203 = vsub.f32 %v1951, %v2119
      %v2204 = vsub.f32 %v1952, %v2120
      %v2205 = vsub.f32 %v1953, %v2121
      %v2206 = vsub.f32 %v1954, %v2122
      %v2207 = vsub.f32 %v1955, %v2123
      %v2208 = vsub.f32 %v1956, %v2124
      %v2209 = vsub.f32 %v1957, %v2125
      %v2210 = vsub.f32 %v1958, %v2126
      %v2211 = vsub.f32 %v1959, %v2127
      %v2212 = vsub.f32 %v1960, %v2128
      %v2213 = vsub.f32 %v1961, %v2129
      %v2214 = vsub.f32 %v1962, %v2130
      %v2215 = vsub.f32 %v1963, %v2131
      %v2216 = vsub.f32 %v1964, %v2132
      %v2217 = vsub.f32 %v1965, %v2133
      %v2218 = vsub.f32 %v1966, %v2134
      %v2219 = vsub.f32 %v1967, %v2135
      %v2220 = vsub.f32 %v1968, %v2136
      %v2221 = vsub.f32 %v1969, %v2137
      %v2222 = vsub.f32 %v1970, %v2138
      %v2223 = vsub.f32 %v1971, %v2139
      %v2224 = vsub.f32 %v1972, %v2140
      %v2225 = vsub.f32 %v1973, %v2141
      %v2226 = vsub.f32 %v1974, %v2142
      %v2227 = vsub.f32 %v1975, %v2143
      %v2228 = vsub.f32 %v1976, %v2144
      %v2229 = vsub.f32 %v1977, %v2145
      %v2230 = vsub.f32 %v1978, %v2146
      %v2231 = vsub.f32 %v1979, %v2147
      %v2232 = vsub.f32 %v1980, %v2148
      %v2233 = vsub.f32 %v1981, %v2149
      %v2234 = vsub.f32 %v1982, %v2150
      %v2235 = vsub.f32 %v1983, %v2151
      %v2236 = vsub.f32 %v1984, %v2152
      %v2237 = vsub.f32 %v1985, %v2153
      %v2238 = vsub.f32 %v1986, %v2154
      %v2239 = vsub.f32 %v1987, %v2155
      %2241 = vset.pattern.permute.xlu0 0
      %2242 = vperm.xlu0 %2241, %v1988
      %v2243 = vpop.permute.xlu0 %2242
      %2246 = vset.pattern.permute.xlu0 0
      %2247 = vperm.xlu0 %2246, %v1989
      %v2248 = vpop.permute.xlu0 %2247
      %2251 = vset.pattern.permute.xlu0 0
      %2252 = vperm.xlu0 %2251, %v1990
      %v2253 = vpop.permute.xlu0 %2252
      %2256 = vset.pattern.permute.xlu0 0
      %2257 = vperm.xlu0 %2256, %v1991
      %v2258 = vpop.permute.xlu0 %2257
      %2261 = vset.pattern.permute.xlu0 0
      %2262 = vperm.xlu0 %2261, %v1992
      %v2263 = vpop.permute.xlu0 %2262
      %2266 = vset.pattern.permute.xlu0 0
      %2267 = vperm.xlu0 %2266, %v1993
      %v2268 = vpop.permute.xlu0 %2267
      %2271 = vset.pattern.permute.xlu0 0
      %2272 = vperm.xlu0 %2271, %v1994
      %v2273 = vpop.permute.xlu0 %2272
      %2276 = vset.pattern.permute.xlu0 0
      %2277 = vperm.xlu0 %2276, %v1995
      %v2278 = vpop.permute.xlu0 %2277
      %2281 = vset.pattern.permute.xlu0 0
      %2282 = vperm.xlu0 %2281, %v1996
      %v2283 = vpop.permute.xlu0 %2282
      %2286 = vset.pattern.permute.xlu0 0
      %2287 = vperm.xlu0 %2286, %v1997
      %v2288 = vpop.permute.xlu0 %2287
      %2291 = vset.pattern.permute.xlu0 0
      %2292 = vperm.xlu0 %2291, %v1998
      %v2293 = vpop.permute.xlu0 %2292
      %2296 = vset.pattern.permute.xlu0 0
      %2297 = vperm.xlu0 %2296, %v1999
      %v2298 = vpop.permute.xlu0 %2297
      %2301 = vset.pattern.permute.xlu0 0
      %2302 = vperm.xlu0 %2301, %v2000
      %v2303 = vpop.permute.xlu0 %2302
      %2306 = vset.pattern.permute.xlu0 0
      %2307 = vperm.xlu0 %2306, %v2001
      %v2308 = vpop.permute.xlu0 %2307
      %2311 = vset.pattern.permute.xlu0 0
      %2312 = vperm.xlu0 %2311, %v2002
      %v2313 = vpop.permute.xlu0 %2312
      %2316 = vset.pattern.permute.xlu0 0
      %2317 = vperm.xlu0 %2316, %v2003
      %v2318 = vpop.permute.xlu0 %2317
      %2321 = vset.pattern.permute.xlu0 0
      %2322 = vperm.xlu0 %2321, %v2004
      %v2323 = vpop.permute.xlu0 %2322
      %2326 = vset.pattern.permute.xlu0 0
      %2327 = vperm.xlu0 %2326, %v2005
      %v2328 = vpop.permute.xlu0 %2327
      %2331 = vset.pattern.permute.xlu0 0
      %2332 = vperm.xlu0 %2331, %v2006
      %v2333 = vpop.permute.xlu0 %2332
      %2336 = vset.pattern.permute.xlu0 0
      %2337 = vperm.xlu0 %2336, %v2007
      %v2338 = vpop.permute.xlu0 %2337
      %2341 = vset.pattern.permute.xlu0 0
      %2342 = vperm.xlu0 %2341, %v2008
      %v2343 = vpop.permute.xlu0 %2342
      %2346 = vset.pattern.permute.xlu0 0
      %2347 = vperm.xlu0 %2346, %v2009
      %v2348 = vpop.permute.xlu0 %2347
      %2351 = vset.pattern.permute.xlu0 0
      %2352 = vperm.xlu0 %2351, %v2010
      %v2353 = vpop.permute.xlu0 %2352
      %2356 = vset.pattern.permute.xlu0 0
      %2357 = vperm.xlu0 %2356, %v2011
      %v2358 = vpop.permute.xlu0 %2357
      %2361 = vset.pattern.permute.xlu0 0
      %2362 = vperm.xlu0 %2361, %v2012
      %v2363 = vpop.permute.xlu0 %2362
      %2366 = vset.pattern.permute.xlu0 0
      %2367 = vperm.xlu0 %2366, %v2013
      %v2368 = vpop.permute.xlu0 %2367
      %2371 = vset.pattern.permute.xlu0 0
      %2372 = vperm.xlu0 %2371, %v2014
      %v2373 = vpop.permute.xlu0 %2372
      %2376 = vset.pattern.permute.xlu0 0
      %2377 = vperm.xlu0 %2376, %v2015
      %v2378 = vpop.permute.xlu0 %2377
      %2381 = vset.pattern.permute.xlu0 0
      %2382 = vperm.xlu0 %2381, %v2016
      %v2383 = vpop.permute.xlu0 %2382
      %2386 = vset.pattern.permute.xlu0 0
      %2387 = vperm.xlu0 %2386, %v2017
      %v2388 = vpop.permute.xlu0 %2387
      %2391 = vset.pattern.permute.xlu0 0
      %2392 = vperm.xlu0 %2391, %v2018
      %v2393 = vpop.permute.xlu0 %2392
      %2396 = vset.pattern.permute.xlu0 0
      %2397 = vperm.xlu0 %2396, %v2019
      %v2398 = vpop.permute.xlu0 %2397
      %2401 = vset.pattern.permute.xlu0 0
      %2402 = vperm.xlu0 %2401, %v2020
      %v2403 = vpop.permute.xlu0 %2402
      %2406 = vset.pattern.permute.xlu0 0
      %2407 = vperm.xlu0 %2406, %v2021
      %v2408 = vpop.permute.xlu0 %2407
      %2411 = vset.pattern.permute.xlu0 0
      %2412 = vperm.xlu0 %2411, %v2022
      %v2413 = vpop.permute.xlu0 %2412
      %2416 = vset.pattern.permute.xlu0 0
      %2417 = vperm.xlu0 %2416, %v2023
      %v2418 = vpop.permute.xlu0 %2417
      %2421 = vset.pattern.permute.xlu0 0
      %2422 = vperm.xlu0 %2421, %v2024
      %v2423 = vpop.permute.xlu0 %2422
      %2426 = vset.pattern.permute.xlu0 0
      %2427 = vperm.xlu0 %2426, %v2025
      %v2428 = vpop.permute.xlu0 %2427
      %2431 = vset.pattern.permute.xlu0 0
      %2432 = vperm.xlu0 %2431, %v2026
      %v2433 = vpop.permute.xlu0 %2432
      %2436 = vset.pattern.permute.xlu0 0
      %2437 = vperm.xlu0 %2436, %v2027
      %v2438 = vpop.permute.xlu0 %2437
      %2441 = vset.pattern.permute.xlu0 0
      %2442 = vperm.xlu0 %2441, %v2028
      %v2443 = vpop.permute.xlu0 %2442
      %2446 = vset.pattern.permute.xlu0 0
      %2447 = vperm.xlu0 %2446, %v2029
      %v2448 = vpop.permute.xlu0 %2447
      %2451 = vset.pattern.permute.xlu0 0
      %2452 = vperm.xlu0 %2451, %v2030
      %v2453 = vpop.permute.xlu0 %2452
      %2456 = vset.pattern.permute.xlu0 0
      %2457 = vperm.xlu0 %2456, %v2031
      %v2458 = vpop.permute.xlu0 %2457
      %2461 = vset.pattern.permute.xlu0 0
      %2462 = vperm.xlu0 %2461, %v2032
      %v2463 = vpop.permute.xlu0 %2462
      %2466 = vset.pattern.permute.xlu0 0
      %2467 = vperm.xlu0 %2466, %v2033
      %v2468 = vpop.permute.xlu0 %2467
      %2471 = vset.pattern.permute.xlu0 0
      %2472 = vperm.xlu0 %2471, %v2034
      %v2473 = vpop.permute.xlu0 %2472
      %2476 = vset.pattern.permute.xlu0 0
      %2477 = vperm.xlu0 %2476, %v2035
      %v2478 = vpop.permute.xlu0 %2477
      %2481 = vset.pattern.permute.xlu0 0
      %2482 = vperm.xlu0 %2481, %v2036
      %v2483 = vpop.permute.xlu0 %2482
      %2486 = vset.pattern.permute.xlu0 0
      %2487 = vperm.xlu0 %2486, %v2037
      %v2488 = vpop.permute.xlu0 %2487
      %2491 = vset.pattern.permute.xlu0 0
      %2492 = vperm.xlu0 %2491, %v2038
      %v2493 = vpop.permute.xlu0 %2492
      %2496 = vset.pattern.permute.xlu0 0
      %2497 = vperm.xlu0 %2496, %v2039
      %v2498 = vpop.permute.xlu0 %2497
      %2501 = vset.pattern.permute.xlu0 0
      %2502 = vperm.xlu0 %2501, %v2040
      %v2503 = vpop.permute.xlu0 %2502
      %2506 = vset.pattern.permute.xlu0 0
      %2507 = vperm.xlu0 %2506, %v2041
      %v2508 = vpop.permute.xlu0 %2507
      %2511 = vset.pattern.permute.xlu0 0
      %2512 = vperm.xlu0 %2511, %v2042
      %v2513 = vpop.permute.xlu0 %2512
      %2516 = vset.pattern.permute.xlu0 0
      %2517 = vperm.xlu0 %2516, %v2043
      %v2518 = vpop.permute.xlu0 %2517
      %2521 = vset.pattern.permute.xlu0 0
      %2522 = vperm.xlu0 %2521, %v2044
      %v2523 = vpop.permute.xlu0 %2522
      %2526 = vset.pattern.permute.xlu0 0
      %2527 = vperm.xlu0 %2526, %v2045
      %v2528 = vpop.permute.xlu0 %2527
      %2531 = vset.pattern.permute.xlu0 0
      %2532 = vperm.xlu0 %2531, %v2046
      %v2533 = vpop.permute.xlu0 %2532
      %2536 = vset.pattern.permute.xlu0 0
      %2537 = vperm.xlu0 %2536, %v2047
      %v2538 = vpop.permute.xlu0 %2537
      %2541 = vset.pattern.permute.xlu0 0
      %2542 = vperm.xlu0 %2541, %v2048
      %v2543 = vpop.permute.xlu0 %2542
      %2546 = vset.pattern.permute.xlu0 0
      %2547 = vperm.xlu0 %2546, %v2049
      %v2548 = vpop.permute.xlu0 %2547
      %2551 = vset.pattern.permute.xlu0 0
      %2552 = vperm.xlu0 %2551, %v2050
      %v2553 = vpop.permute.xlu0 %2552
      %2556 = vset.pattern.permute.xlu0 0
      %2557 = vperm.xlu0 %2556, %v2051
      %v2558 = vpop.permute.xlu0 %2557
      %2561 = vset.pattern.permute.xlu0 0
      %2562 = vperm.xlu0 %2561, %v2052
      %v2563 = vpop.permute.xlu0 %2562
      %2566 = vset.pattern.permute.xlu0 0
      %2567 = vperm.xlu0 %2566, %v2053
      %v2568 = vpop.permute.xlu0 %2567
      %2571 = vset.pattern.permute.xlu0 0
      %2572 = vperm.xlu0 %2571, %v2054
      %v2573 = vpop.permute.xlu0 %2572
      %2576 = vset.pattern.permute.xlu0 0
      %2577 = vperm.xlu0 %2576, %v2055
      %v2578 = vpop.permute.xlu0 %2577
      %2581 = vset.pattern.permute.xlu0 0
      %2582 = vperm.xlu0 %2581, %v2056
      %v2583 = vpop.permute.xlu0 %2582
      %2586 = vset.pattern.permute.xlu0 0
      %2587 = vperm.xlu0 %2586, %v2057
      %v2588 = vpop.permute.xlu0 %2587
      %2591 = vset.pattern.permute.xlu0 0
      %2592 = vperm.xlu0 %2591, %v2058
      %v2593 = vpop.permute.xlu0 %2592
      %2596 = vset.pattern.permute.xlu0 0
      %2597 = vperm.xlu0 %2596, %v2059
      %v2598 = vpop.permute.xlu0 %2597
      %2601 = vset.pattern.permute.xlu0 0
      %2602 = vperm.xlu0 %2601, %v2060
      %v2603 = vpop.permute.xlu0 %2602
      %2606 = vset.pattern.permute.xlu0 0
      %2607 = vperm.xlu0 %2606, %v2061
      %v2608 = vpop.permute.xlu0 %2607
      %2611 = vset.pattern.permute.xlu0 0
      %2612 = vperm.xlu0 %2611, %v2062
      %v2613 = vpop.permute.xlu0 %2612
      %2616 = vset.pattern.permute.xlu0 0
      %2617 = vperm.xlu0 %2616, %v2063
      %v2618 = vpop.permute.xlu0 %2617
      %2621 = vset.pattern.permute.xlu0 0
      %2622 = vperm.xlu0 %2621, %v2064
      %v2623 = vpop.permute.xlu0 %2622
      %2626 = vset.pattern.permute.xlu0 0
      %2627 = vperm.xlu0 %2626, %v2065
      %v2628 = vpop.permute.xlu0 %2627
      %2631 = vset.pattern.permute.xlu0 0
      %2632 = vperm.xlu0 %2631, %v2066
      %v2633 = vpop.permute.xlu0 %2632
      %2636 = vset.pattern.permute.xlu0 0
      %2637 = vperm.xlu0 %2636, %v2067
      %v2638 = vpop.permute.xlu0 %2637
      %2641 = vset.pattern.permute.xlu0 0
      %2642 = vperm.xlu0 %2641, %v2068
      %v2643 = vpop.permute.xlu0 %2642
      %2646 = vset.pattern.permute.xlu0 0
      %2647 = vperm.xlu0 %2646, %v2069
      %v2648 = vpop.permute.xlu0 %2647
      %2651 = vset.pattern.permute.xlu0 0
      %2652 = vperm.xlu0 %2651, %v2070
      %v2653 = vpop.permute.xlu0 %2652
      %2656 = vset.pattern.permute.xlu0 0
      %2657 = vperm.xlu0 %2656, %v2071
      %v2658 = vpop.permute.xlu0 %2657
      %v2660 = vmul.f32 %v223, %v2243
      %v2661 = vmul.f32 %v224, %v2243
      %v2662 = vmul.f32 %v225, %v2248
      %v2663 = vmul.f32 %v226, %v2248
      %v2664 = vmul.f32 %v227, %v2253
      %v2665 = vmul.f32 %v228, %v2253
      %v2666 = vmul.f32 %v229, %v2258
      %v2667 = vmul.f32 %v230, %v2258
      %v2668 = vmul.f32 %v231, %v2263
      %v2669 = vmul.f32 %v232, %v2263
      %v2670 = vmul.f32 %v233, %v2268
      %v2671 = vmul.f32 %v234, %v2268
      %v2672 = vmul.f32 %v235, %v2273
      %v2673 = vmul.f32 %v236, %v2273
      %v2674 = vmul.f32 %v237, %v2278
      %v2675 = vmul.f32 %v238, %v2278
      %v2676 = vmul.f32 %v239, %v2283
      %v2677 = vmul.f32 %v240, %v2283
      %v2678 = vmul.f32 %v241, %v2288
      %v2679 = vmul.f32 %v242, %v2288
      %v2680 = vmul.f32 %v243, %v2293
      %v2681 = vmul.f32 %v244, %v2293
      %v2682 = vmul.f32 %v245, %v2298
      %v2683 = vmul.f32 %v246, %v2298
      %v2684 = vmul.f32 %v247, %v2303
      %v2685 = vmul.f32 %v248, %v2303
      %v2686 = vmul.f32 %v249, %v2308
      %v2687 = vmul.f32 %v250, %v2308
      %v2688 = vmul.f32 %v251, %v2313
      %v2689 = vmul.f32 %v252, %v2313
      %v2690 = vmul.f32 %v253, %v2318
      %v2691 = vmul.f32 %v254, %v2318
      %v2692 = vmul.f32 %v255, %v2323
      %v2693 = vmul.f32 %v256, %v2323
      %v2694 = vmul.f32 %v257, %v2328
      %v2695 = vmul.f32 %v258, %v2328
      %v2696 = vmul.f32 %v259, %v2333
      %v2697 = vmul.f32 %v260, %v2333
      %v2698 = vmul.f32 %v261, %v2338
      %v2699 = vmul.f32 %v262, %v2338
      %v2700 = vmul.f32 %v263, %v2343
      %v2701 = vmul.f32 %v264, %v2343
      %v2702 = vmul.f32 %v265, %v2348
      %v2703 = vmul.f32 %v266, %v2348
      %v2704 = vmul.f32 %v267, %v2353
      %v2705 = vmul.f32 %v268, %v2353
      %v2706 = vmul.f32 %v269, %v2358
      %v2707 = vmul.f32 %v270, %v2358
      %v2708 = vmul.f32 %v271, %v2363
      %v2709 = vmul.f32 %v272, %v2363
      %v2710 = vmul.f32 %v273, %v2368
      %v2711 = vmul.f32 %v274, %v2368
      %v2712 = vmul.f32 %v275, %v2373
      %v2713 = vmul.f32 %v276, %v2373
      %v2714 = vmul.f32 %v277, %v2378
      %v2715 = vmul.f32 %v278, %v2378
      %v2716 = vmul.f32 %v279, %v2383
      %v2717 = vmul.f32 %v280, %v2383
      %v2718 = vmul.f32 %v281, %v2388
      %v2719 = vmul.f32 %v282, %v2388
      %v2720 = vmul.f32 %v283, %v2393
      %v2721 = vmul.f32 %v284, %v2393
      %v2722 = vmul.f32 %v285, %v2398
      %v2723 = vmul.f32 %v286, %v2398
      %v2724 = vmul.f32 %v287, %v2403
      %v2725 = vmul.f32 %v288, %v2403
      %v2726 = vmul.f32 %v289, %v2408
      %v2727 = vmul.f32 %v290, %v2408
      %v2728 = vmul.f32 %v291, %v2413
      %v2729 = vmul.f32 %v292, %v2413
      %v2730 = vmul.f32 %v293, %v2418
      %v2731 = vmul.f32 %v294, %v2418
      %v2732 = vmul.f32 %v295, %v2423
      %v2733 = vmul.f32 %v296, %v2423
      %v2734 = vmul.f32 %v297, %v2428
      %v2735 = vmul.f32 %v298, %v2428
      %v2736 = vmul.f32 %v299, %v2433
      %v2737 = vmul.f32 %v300, %v2433
      %v2738 = vmul.f32 %v301, %v2438
      %v2739 = vmul.f32 %v302, %v2438
      %v2740 = vmul.f32 %v303, %v2443
      %v2741 = vmul.f32 %v304, %v2443
      %v2742 = vmul.f32 %v305, %v2448
      %v2743 = vmul.f32 %v306, %v2448
      %v2744 = vmul.f32 %v307, %v2453
      %v2745 = vmul.f32 %v308, %v2453
      %v2746 = vmul.f32 %v309, %v2458
      %v2747 = vmul.f32 %v310, %v2458
      %v2748 = vmul.f32 %v311, %v2463
      %v2749 = vmul.f32 %v312, %v2463
      %v2750 = vmul.f32 %v313, %v2468
      %v2751 = vmul.f32 %v314, %v2468
      %v2752 = vmul.f32 %v315, %v2473
      %v2753 = vmul.f32 %v316, %v2473
      %v2754 = vmul.f32 %v317, %v2478
      %v2755 = vmul.f32 %v318, %v2478
      %v2756 = vmul.f32 %v319, %v2483
      %v2757 = vmul.f32 %v320, %v2483
      %v2758 = vmul.f32 %v321, %v2488
      %v2759 = vmul.f32 %v322, %v2488
      %v2760 = vmul.f32 %v323, %v2493
      %v2761 = vmul.f32 %v324, %v2493
      %v2762 = vmul.f32 %v325, %v2498
      %v2763 = vmul.f32 %v326, %v2498
      %v2764 = vmul.f32 %v327, %v2503
      %v2765 = vmul.f32 %v328, %v2503
      %v2766 = vmul.f32 %v329, %v2508
      %v2767 = vmul.f32 %v330, %v2508
      %v2768 = vmul.f32 %v331, %v2513
      %v2769 = vmul.f32 %v332, %v2513
      %v2770 = vmul.f32 %v333, %v2518
      %v2771 = vmul.f32 %v334, %v2518
      %v2772 = vmul.f32 %v335, %v2523
      %v2773 = vmul.f32 %v336, %v2523
      %v2774 = vmul.f32 %v337, %v2528
      %v2775 = vmul.f32 %v338, %v2528
      %v2776 = vmul.f32 %v339, %v2533
      %v2777 = vmul.f32 %v340, %v2533
      %v2778 = vmul.f32 %v341, %v2538
      %v2779 = vmul.f32 %v342, %v2538
      %v2780 = vmul.f32 %v343, %v2543
      %v2781 = vmul.f32 %v344, %v2543
      %v2782 = vmul.f32 %v345, %v2548
      %v2783 = vmul.f32 %v346, %v2548
      %v2784 = vmul.f32 %v347, %v2553
      %v2785 = vmul.f32 %v348, %v2553
      %v2786 = vmul.f32 %v349, %v2558
      %v2787 = vmul.f32 %v350, %v2558
      %v2788 = vmul.f32 %v351, %v2563
      %v2789 = vmul.f32 %v352, %v2563
      %v2790 = vmul.f32 %v353, %v2568
      %v2791 = vmul.f32 %v354, %v2568
      %v2792 = vmul.f32 %v355, %v2573
      %v2793 = vmul.f32 %v356, %v2573
      %v2794 = vmul.f32 %v357, %v2578
      %v2795 = vmul.f32 %v358, %v2578
      %v2796 = vmul.f32 %v359, %v2583
      %v2797 = vmul.f32 %v360, %v2583
      %v2798 = vmul.f32 %v361, %v2588
      %v2799 = vmul.f32 %v362, %v2588
      %v2800 = vmul.f32 %v363, %v2593
      %v2801 = vmul.f32 %v364, %v2593
      %v2802 = vmul.f32 %v365, %v2598
      %v2803 = vmul.f32 %v366, %v2598
      %v2804 = vmul.f32 %v367, %v2603
      %v2805 = vmul.f32 %v368, %v2603
      %v2806 = vmul.f32 %v369, %v2608
      %v2807 = vmul.f32 %v370, %v2608
      %v2808 = vmul.f32 %v371, %v2613
      %v2809 = vmul.f32 %v372, %v2613
      %v2810 = vmul.f32 %v373, %v2618
      %v2811 = vmul.f32 %v374, %v2618
      %v2812 = vmul.f32 %v375, %v2623
      %v2813 = vmul.f32 %v376, %v2623
      %v2814 = vmul.f32 %v377, %v2628
      %v2815 = vmul.f32 %v378, %v2628
      %v2816 = vmul.f32 %v379, %v2633
      %v2817 = vmul.f32 %v380, %v2633
      %v2818 = vmul.f32 %v381, %v2638
      %v2819 = vmul.f32 %v382, %v2638
      %v2820 = vmul.f32 %v383, %v2643
      %v2821 = vmul.f32 %v384, %v2643
      %v2822 = vmul.f32 %v385, %v2648
      %v2823 = vmul.f32 %v386, %v2648
      %v2824 = vmul.f32 %v387, %v2653
      %v2825 = vmul.f32 %v388, %v2653
      %v2826 = vmul.f32 %v389, %v2658
      %v2827 = vmul.f32 %v390, %v2658
      %2829 = vset.pattern.permute.xlu0 0
      %2830 = vperm.xlu0 %2829, %v2156
      %v2831 = vpop.permute.xlu0 %2830
      %2834 = vset.pattern.permute.xlu0 0
      %2835 = vperm.xlu0 %2834, %v2157
      %v2836 = vpop.permute.xlu0 %2835
      %2839 = vset.pattern.permute.xlu0 0
      %2840 = vperm.xlu0 %2839, %v2158
      %v2841 = vpop.permute.xlu0 %2840
      %2844 = vset.pattern.permute.xlu0 0
      %2845 = vperm.xlu0 %2844, %v2159
      %v2846 = vpop.permute.xlu0 %2845
      %2849 = vset.pattern.permute.xlu0 0
      %2850 = vperm.xlu0 %2849, %v2160
      %v2851 = vpop.permute.xlu0 %2850
      %2854 = vset.pattern.permute.xlu0 0
      %2855 = vperm.xlu0 %2854, %v2161
      %v2856 = vpop.permute.xlu0 %2855
      %2859 = vset.pattern.permute.xlu0 0
      %2860 = vperm.xlu0 %2859, %v2162
      %v2861 = vpop.permute.xlu0 %2860
      %2864 = vset.pattern.permute.xlu0 0
      %2865 = vperm.xlu0 %2864, %v2163
      %v2866 = vpop.permute.xlu0 %2865
      %2869 = vset.pattern.permute.xlu0 0
      %2870 = vperm.xlu0 %2869, %v2164
      %v2871 = vpop.permute.xlu0 %2870
      %2874 = vset.pattern.permute.xlu0 0
      %2875 = vperm.xlu0 %2874, %v2165
      %v2876 = vpop.permute.xlu0 %2875
      %2879 = vset.pattern.permute.xlu0 0
      %2880 = vperm.xlu0 %2879, %v2166
      %v2881 = vpop.permute.xlu0 %2880
      %2884 = vset.pattern.permute.xlu0 0
      %2885 = vperm.xlu0 %2884, %v2167
      %v2886 = vpop.permute.xlu0 %2885
      %2889 = vset.pattern.permute.xlu0 0
      %2890 = vperm.xlu0 %2889, %v2168
      %v2891 = vpop.permute.xlu0 %2890
      %2894 = vset.pattern.permute.xlu0 0
      %2895 = vperm.xlu0 %2894, %v2169
      %v2896 = vpop.permute.xlu0 %2895
      %2899 = vset.pattern.permute.xlu0 0
      %2900 = vperm.xlu0 %2899, %v2170
      %v2901 = vpop.permute.xlu0 %2900
      %2904 = vset.pattern.permute.xlu0 0
      %2905 = vperm.xlu0 %2904, %v2171
      %v2906 = vpop.permute.xlu0 %2905
      %2909 = vset.pattern.permute.xlu0 0
      %2910 = vperm.xlu0 %2909, %v2172
      %v2911 = vpop.permute.xlu0 %2910
      %2914 = vset.pattern.permute.xlu0 0
      %2915 = vperm.xlu0 %2914, %v2173
      %v2916 = vpop.permute.xlu0 %2915
      %2919 = vset.pattern.permute.xlu0 0
      %2920 = vperm.xlu0 %2919, %v2174
      %v2921 = vpop.permute.xlu0 %2920
      %2924 = vset.pattern.permute.xlu0 0
      %2925 = vperm.xlu0 %2924, %v2175
      %v2926 = vpop.permute.xlu0 %2925
      %2929 = vset.pattern.permute.xlu0 0
      %2930 = vperm.xlu0 %2929, %v2176
      %v2931 = vpop.permute.xlu0 %2930
      %2934 = vset.pattern.permute.xlu0 0
      %2935 = vperm.xlu0 %2934, %v2177
      %v2936 = vpop.permute.xlu0 %2935
      %2939 = vset.pattern.permute.xlu0 0
      %2940 = vperm.xlu0 %2939, %v2178
      %v2941 = vpop.permute.xlu0 %2940
      %2944 = vset.pattern.permute.xlu0 0
      %2945 = vperm.xlu0 %2944, %v2179
      %v2946 = vpop.permute.xlu0 %2945
      %2949 = vset.pattern.permute.xlu0 0
      %2950 = vperm.xlu0 %2949, %v2180
      %v2951 = vpop.permute.xlu0 %2950
      %2954 = vset.pattern.permute.xlu0 0
      %2955 = vperm.xlu0 %2954, %v2181
      %v2956 = vpop.permute.xlu0 %2955
      %2959 = vset.pattern.permute.xlu0 0
      %2960 = vperm.xlu0 %2959, %v2182
      %v2961 = vpop.permute.xlu0 %2960
      %2964 = vset.pattern.permute.xlu0 0
      %2965 = vperm.xlu0 %2964, %v2183
      %v2966 = vpop.permute.xlu0 %2965
      %2969 = vset.pattern.permute.xlu0 0
      %2970 = vperm.xlu0 %2969, %v2184
      %v2971 = vpop.permute.xlu0 %2970
      %2974 = vset.pattern.permute.xlu0 0
      %2975 = vperm.xlu0 %2974, %v2185
      %v2976 = vpop.permute.xlu0 %2975
      %2979 = vset.pattern.permute.xlu0 0
      %2980 = vperm.xlu0 %2979, %v2186
      %v2981 = vpop.permute.xlu0 %2980
      %2984 = vset.pattern.permute.xlu0 0
      %2985 = vperm.xlu0 %2984, %v2187
      %v2986 = vpop.permute.xlu0 %2985
      %2989 = vset.pattern.permute.xlu0 0
      %2990 = vperm.xlu0 %2989, %v2188
      %v2991 = vpop.permute.xlu0 %2990
      %2994 = vset.pattern.permute.xlu0 0
      %2995 = vperm.xlu0 %2994, %v2189
      %v2996 = vpop.permute.xlu0 %2995
      %2999 = vset.pattern.permute.xlu0 0
      %3000 = vperm.xlu0 %2999, %v2190
      %v3001 = vpop.permute.xlu0 %3000
      %3004 = vset.pattern.permute.xlu0 0
      %3005 = vperm.xlu0 %3004, %v2191
      %v3006 = vpop.permute.xlu0 %3005
      %3009 = vset.pattern.permute.xlu0 0
      %3010 = vperm.xlu0 %3009, %v2192
      %v3011 = vpop.permute.xlu0 %3010
      %3014 = vset.pattern.permute.xlu0 0
      %3015 = vperm.xlu0 %3014, %v2193
      %v3016 = vpop.permute.xlu0 %3015
      %3019 = vset.pattern.permute.xlu0 0
      %3020 = vperm.xlu0 %3019, %v2194
      %v3021 = vpop.permute.xlu0 %3020
      %3024 = vset.pattern.permute.xlu0 0
      %3025 = vperm.xlu0 %3024, %v2195
      %v3026 = vpop.permute.xlu0 %3025
      %3029 = vset.pattern.permute.xlu0 0
      %3030 = vperm.xlu0 %3029, %v2196
      %v3031 = vpop.permute.xlu0 %3030
      %3034 = vset.pattern.permute.xlu0 0
      %3035 = vperm.xlu0 %3034, %v2197
      %v3036 = vpop.permute.xlu0 %3035
      %3039 = vset.pattern.permute.xlu0 0
      %3040 = vperm.xlu0 %3039, %v2198
      %v3041 = vpop.permute.xlu0 %3040
      %3044 = vset.pattern.permute.xlu0 0
      %3045 = vperm.xlu0 %3044, %v2199
      %v3046 = vpop.permute.xlu0 %3045
      %3049 = vset.pattern.permute.xlu0 0
      %3050 = vperm.xlu0 %3049, %v2200
      %v3051 = vpop.permute.xlu0 %3050
      %3054 = vset.pattern.permute.xlu0 0
      %3055 = vperm.xlu0 %3054, %v2201
      %v3056 = vpop.permute.xlu0 %3055
      %3059 = vset.pattern.permute.xlu0 0
      %3060 = vperm.xlu0 %3059, %v2202
      %v3061 = vpop.permute.xlu0 %3060
      %3064 = vset.pattern.permute.xlu0 0
      %3065 = vperm.xlu0 %3064, %v2203
      %v3066 = vpop.permute.xlu0 %3065
      %3069 = vset.pattern.permute.xlu0 0
      %3070 = vperm.xlu0 %3069, %v2204
      %v3071 = vpop.permute.xlu0 %3070
      %3074 = vset.pattern.permute.xlu0 0
      %3075 = vperm.xlu0 %3074, %v2205
      %v3076 = vpop.permute.xlu0 %3075
      %3079 = vset.pattern.permute.xlu0 0
      %3080 = vperm.xlu0 %3079, %v2206
      %v3081 = vpop.permute.xlu0 %3080
      %3084 = vset.pattern.permute.xlu0 0
      %3085 = vperm.xlu0 %3084, %v2207
      %v3086 = vpop.permute.xlu0 %3085
      %3089 = vset.pattern.permute.xlu0 0
      %3090 = vperm.xlu0 %3089, %v2208
      %v3091 = vpop.permute.xlu0 %3090
      %3094 = vset.pattern.permute.xlu0 0
      %3095 = vperm.xlu0 %3094, %v2209
      %v3096 = vpop.permute.xlu0 %3095
      %3099 = vset.pattern.permute.xlu0 0
      %3100 = vperm.xlu0 %3099, %v2210
      %v3101 = vpop.permute.xlu0 %3100
      %3104 = vset.pattern.permute.xlu0 0
      %3105 = vperm.xlu0 %3104, %v2211
      %v3106 = vpop.permute.xlu0 %3105
      %3109 = vset.pattern.permute.xlu0 0
      %3110 = vperm.xlu0 %3109, %v2212
      %v3111 = vpop.permute.xlu0 %3110
      %3114 = vset.pattern.permute.xlu0 0
      %3115 = vperm.xlu0 %3114, %v2213
      %v3116 = vpop.permute.xlu0 %3115
      %3119 = vset.pattern.permute.xlu0 0
      %3120 = vperm.xlu0 %3119, %v2214
      %v3121 = vpop.permute.xlu0 %3120
      %3124 = vset.pattern.permute.xlu0 0
      %3125 = vperm.xlu0 %3124, %v2215
      %v3126 = vpop.permute.xlu0 %3125
      %3129 = vset.pattern.permute.xlu0 0
      %3130 = vperm.xlu0 %3129, %v2216
      %v3131 = vpop.permute.xlu0 %3130
      %3134 = vset.pattern.permute.xlu0 0
      %3135 = vperm.xlu0 %3134, %v2217
      %v3136 = vpop.permute.xlu0 %3135
      %3139 = vset.pattern.permute.xlu0 0
      %3140 = vperm.xlu0 %3139, %v2218
      %v3141 = vpop.permute.xlu0 %3140
      %3144 = vset.pattern.permute.xlu0 0
      %3145 = vperm.xlu0 %3144, %v2219
      %v3146 = vpop.permute.xlu0 %3145
      %3149 = vset.pattern.permute.xlu0 0
      %3150 = vperm.xlu0 %3149, %v2220
      %v3151 = vpop.permute.xlu0 %3150
      %3154 = vset.pattern.permute.xlu0 0
      %3155 = vperm.xlu0 %3154, %v2221
      %v3156 = vpop.permute.xlu0 %3155
      %3159 = vset.pattern.permute.xlu0 0
      %3160 = vperm.xlu0 %3159, %v2222
      %v3161 = vpop.permute.xlu0 %3160
      %3164 = vset.pattern.permute.xlu0 0
      %3165 = vperm.xlu0 %3164, %v2223
      %v3166 = vpop.permute.xlu0 %3165
      %3169 = vset.pattern.permute.xlu0 0
      %3170 = vperm.xlu0 %3169, %v2224
      %v3171 = vpop.permute.xlu0 %3170
      %3174 = vset.pattern.permute.xlu0 0
      %3175 = vperm.xlu0 %3174, %v2225
      %v3176 = vpop.permute.xlu0 %3175
      %3179 = vset.pattern.permute.xlu0 0
      %3180 = vperm.xlu0 %3179, %v2226
      %v3181 = vpop.permute.xlu0 %3180
      %3184 = vset.pattern.permute.xlu0 0
      %3185 = vperm.xlu0 %3184, %v2227
      %v3186 = vpop.permute.xlu0 %3185
      %3189 = vset.pattern.permute.xlu0 0
      %3190 = vperm.xlu0 %3189, %v2228
      %v3191 = vpop.permute.xlu0 %3190
      %3194 = vset.pattern.permute.xlu0 0
      %3195 = vperm.xlu0 %3194, %v2229
      %v3196 = vpop.permute.xlu0 %3195
      %3199 = vset.pattern.permute.xlu0 0
      %3200 = vperm.xlu0 %3199, %v2230
      %v3201 = vpop.permute.xlu0 %3200
      %3204 = vset.pattern.permute.xlu0 0
      %3205 = vperm.xlu0 %3204, %v2231
      %v3206 = vpop.permute.xlu0 %3205
      %3209 = vset.pattern.permute.xlu0 0
      %3210 = vperm.xlu0 %3209, %v2232
      %v3211 = vpop.permute.xlu0 %3210
      %3214 = vset.pattern.permute.xlu0 0
      %3215 = vperm.xlu0 %3214, %v2233
      %v3216 = vpop.permute.xlu0 %3215
      %3219 = vset.pattern.permute.xlu0 0
      %3220 = vperm.xlu0 %3219, %v2234
      %v3221 = vpop.permute.xlu0 %3220
      %3224 = vset.pattern.permute.xlu0 0
      %3225 = vperm.xlu0 %3224, %v2235
      %v3226 = vpop.permute.xlu0 %3225
      %3229 = vset.pattern.permute.xlu0 0
      %3230 = vperm.xlu0 %3229, %v2236
      %v3231 = vpop.permute.xlu0 %3230
      %3234 = vset.pattern.permute.xlu0 0
      %3235 = vperm.xlu0 %3234, %v2237
      %v3236 = vpop.permute.xlu0 %3235
      %3239 = vset.pattern.permute.xlu0 0
      %3240 = vperm.xlu0 %3239, %v2238
      %v3241 = vpop.permute.xlu0 %3240
      %3244 = vset.pattern.permute.xlu0 0
      %3245 = vperm.xlu0 %3244, %v2239
      %v3246 = vpop.permute.xlu0 %3245
      %v3248 = vadd.f32 %v2660, %v2831
      %v3249 = vadd.f32 %v2661, %v2831
      %v3250 = vadd.f32 %v2662, %v2836
      %v3251 = vadd.f32 %v2663, %v2836
      %v3252 = vadd.f32 %v2664, %v2841
      %v3253 = vadd.f32 %v2665, %v2841
      %v3254 = vadd.f32 %v2666, %v2846
      %v3255 = vadd.f32 %v2667, %v2846
      %v3256 = vadd.f32 %v2668, %v2851
      %v3257 = vadd.f32 %v2669, %v2851
      %v3258 = vadd.f32 %v2670, %v2856
      %v3259 = vadd.f32 %v2671, %v2856
      %v3260 = vadd.f32 %v2672, %v2861
      %v3261 = vadd.f32 %v2673, %v2861
      %v3262 = vadd.f32 %v2674, %v2866
      %v3263 = vadd.f32 %v2675, %v2866
      %v3264 = vadd.f32 %v2676, %v2871
      %v3265 = vadd.f32 %v2677, %v2871
      %v3266 = vadd.f32 %v2678, %v2876
      %v3267 = vadd.f32 %v2679, %v2876
      %v3268 = vadd.f32 %v2680, %v2881
      %v3269 = vadd.f32 %v2681, %v2881
      %v3270 = vadd.f32 %v2682, %v2886
      %v3271 = vadd.f32 %v2683, %v2886
      %v3272 = vadd.f32 %v2684, %v2891
      %v3273 = vadd.f32 %v2685, %v2891
      %v3274 = vadd.f32 %v2686, %v2896
      %v3275 = vadd.f32 %v2687, %v2896
      %v3276 = vadd.f32 %v2688, %v2901
      %v3277 = vadd.f32 %v2689, %v2901
      %v3278 = vadd.f32 %v2690, %v2906
      %v3279 = vadd.f32 %v2691, %v2906
      %v3280 = vadd.f32 %v2692, %v2911
      %v3281 = vadd.f32 %v2693, %v2911
      %v3282 = vadd.f32 %v2694, %v2916
      %v3283 = vadd.f32 %v2695, %v2916
      %v3284 = vadd.f32 %v2696, %v2921
      %v3285 = vadd.f32 %v2697, %v2921
      %v3286 = vadd.f32 %v2698, %v2926
      %v3287 = vadd.f32 %v2699, %v2926
      %v3288 = vadd.f32 %v2700, %v2931
      %v3289 = vadd.f32 %v2701, %v2931
      %v3290 = vadd.f32 %v2702, %v2936
      %v3291 = vadd.f32 %v2703, %v2936
      %v3292 = vadd.f32 %v2704, %v2941
      %v3293 = vadd.f32 %v2705, %v2941
      %v3294 = vadd.f32 %v2706, %v2946
      %v3295 = vadd.f32 %v2707, %v2946
      %v3296 = vadd.f32 %v2708, %v2951
      %v3297 = vadd.f32 %v2709, %v2951
      %v3298 = vadd.f32 %v2710, %v2956
      %v3299 = vadd.f32 %v2711, %v2956
      %v3300 = vadd.f32 %v2712, %v2961
      %v3301 = vadd.f32 %v2713, %v2961
      %v3302 = vadd.f32 %v2714, %v2966
      %v3303 = vadd.f32 %v2715, %v2966
      %v3304 = vadd.f32 %v2716, %v2971
      %v3305 = vadd.f32 %v2717, %v2971
      %v3306 = vadd.f32 %v2718, %v2976
      %v3307 = vadd.f32 %v2719, %v2976
      %v3308 = vadd.f32 %v2720, %v2981
      %v3309 = vadd.f32 %v2721, %v2981
      %v3310 = vadd.f32 %v2722, %v2986
      %v3311 = vadd.f32 %v2723, %v2986
      %v3312 = vadd.f32 %v2724, %v2991
      %v3313 = vadd.f32 %v2725, %v2991
      %v3314 = vadd.f32 %v2726, %v2996
      %v3315 = vadd.f32 %v2727, %v2996
      %v3316 = vadd.f32 %v2728, %v3001
      %v3317 = vadd.f32 %v2729, %v3001
      %v3318 = vadd.f32 %v2730, %v3006
      %v3319 = vadd.f32 %v2731, %v3006
      %v3320 = vadd.f32 %v2732, %v3011
      %v3321 = vadd.f32 %v2733, %v3011
      %v3322 = vadd.f32 %v2734, %v3016
      %v3323 = vadd.f32 %v2735, %v3016
      %v3324 = vadd.f32 %v2736, %v3021
      %v3325 = vadd.f32 %v2737, %v3021
      %v3326 = vadd.f32 %v2738, %v3026
      %v3327 = vadd.f32 %v2739, %v3026
      %v3328 = vadd.f32 %v2740, %v3031
      %v3329 = vadd.f32 %v2741, %v3031
      %v3330 = vadd.f32 %v2742, %v3036
      %v3331 = vadd.f32 %v2743, %v3036
      %v3332 = vadd.f32 %v2744, %v3041
      %v3333 = vadd.f32 %v2745, %v3041
      %v3334 = vadd.f32 %v2746, %v3046
      %v3335 = vadd.f32 %v2747, %v3046
      %v3336 = vadd.f32 %v2748, %v3051
      %v3337 = vadd.f32 %v2749, %v3051
      %v3338 = vadd.f32 %v2750, %v3056
      %v3339 = vadd.f32 %v2751, %v3056
      %v3340 = vadd.f32 %v2752, %v3061
      %v3341 = vadd.f32 %v2753, %v3061
      %v3342 = vadd.f32 %v2754, %v3066
      %v3343 = vadd.f32 %v2755, %v3066
      %v3344 = vadd.f32 %v2756, %v3071
      %v3345 = vadd.f32 %v2757, %v3071
      %v3346 = vadd.f32 %v2758, %v3076
      %v3347 = vadd.f32 %v2759, %v3076
      %v3348 = vadd.f32 %v2760, %v3081
      %v3349 = vadd.f32 %v2761, %v3081
      %v3350 = vadd.f32 %v2762, %v3086
      %v3351 = vadd.f32 %v2763, %v3086
      %v3352 = vadd.f32 %v2764, %v3091
      %v3353 = vadd.f32 %v2765, %v3091
      %v3354 = vadd.f32 %v2766, %v3096
      %v3355 = vadd.f32 %v2767, %v3096
      %v3356 = vadd.f32 %v2768, %v3101
      %v3357 = vadd.f32 %v2769, %v3101
      %v3358 = vadd.f32 %v2770, %v3106
      %v3359 = vadd.f32 %v2771, %v3106
      %v3360 = vadd.f32 %v2772, %v3111
      %v3361 = vadd.f32 %v2773, %v3111
      %v3362 = vadd.f32 %v2774, %v3116
      %v3363 = vadd.f32 %v2775, %v3116
      %v3364 = vadd.f32 %v2776, %v3121
      %v3365 = vadd.f32 %v2777, %v3121
      %v3366 = vadd.f32 %v2778, %v3126
      %v3367 = vadd.f32 %v2779, %v3126
      %v3368 = vadd.f32 %v2780, %v3131
      %v3369 = vadd.f32 %v2781, %v3131
      %v3370 = vadd.f32 %v2782, %v3136
      %v3371 = vadd.f32 %v2783, %v3136
      %v3372 = vadd.f32 %v2784, %v3141
      %v3373 = vadd.f32 %v2785, %v3141
      %v3374 = vadd.f32 %v2786, %v3146
      %v3375 = vadd.f32 %v2787, %v3146
      %v3376 = vadd.f32 %v2788, %v3151
      %v3377 = vadd.f32 %v2789, %v3151
      %v3378 = vadd.f32 %v2790, %v3156
      %v3379 = vadd.f32 %v2791, %v3156
      %v3380 = vadd.f32 %v2792, %v3161
      %v3381 = vadd.f32 %v2793, %v3161
      %v3382 = vadd.f32 %v2794, %v3166
      %v3383 = vadd.f32 %v2795, %v3166
      %v3384 = vadd.f32 %v2796, %v3171
      %v3385 = vadd.f32 %v2797, %v3171
      %v3386 = vadd.f32 %v2798, %v3176
      %v3387 = vadd.f32 %v2799, %v3176
      %v3388 = vadd.f32 %v2800, %v3181
      %v3389 = vadd.f32 %v2801, %v3181
      %v3390 = vadd.f32 %v2802, %v3186
      %v3391 = vadd.f32 %v2803, %v3186
      %v3392 = vadd.f32 %v2804, %v3191
      %v3393 = vadd.f32 %v2805, %v3191
      %v3394 = vadd.f32 %v2806, %v3196
      %v3395 = vadd.f32 %v2807, %v3196
      %v3396 = vadd.f32 %v2808, %v3201
      %v3397 = vadd.f32 %v2809, %v3201
      %v3398 = vadd.f32 %v2810, %v3206
      %v3399 = vadd.f32 %v2811, %v3206
      %v3400 = vadd.f32 %v2812, %v3211
      %v3401 = vadd.f32 %v2813, %v3211
      %v3402 = vadd.f32 %v2814, %v3216
      %v3403 = vadd.f32 %v2815, %v3216
      %v3404 = vadd.f32 %v2816, %v3221
      %v3405 = vadd.f32 %v2817, %v3221
      %v3406 = vadd.f32 %v2818, %v3226
      %v3407 = vadd.f32 %v2819, %v3226
      %v3408 = vadd.f32 %v2820, %v3231
      %v3409 = vadd.f32 %v2821, %v3231
      %v3410 = vadd.f32 %v2822, %v3236
      %v3411 = vadd.f32 %v2823, %v3236
      %v3412 = vadd.f32 %v2824, %v3241
      %v3413 = vadd.f32 %v2825, %v3241
      %v3414 = vadd.f32 %v2826, %v3246
      %v3415 = vadd.f32 %v2827, %v3246
      %3416 = vst [vmem:[%s221] sm:$0xff] %v3248
      %3417 = vst.msk [vmem:[%s221 + $0x8] sm:$0xff] %vm391, %v3249
      %3418 = vst [vmem:[%s221 + $0x10] sm:$0xff] %v3250
      %3419 = vst.msk [vmem:[%s221 + $0x18] sm:$0xff] %vm391, %v3251
      %3420 = vst [vmem:[%s221 + $0x20] sm:$0xff] %v3252
      %3421 = vst.msk [vmem:[%s221 + $0x28] sm:$0xff] %vm391, %v3253
      %3422 = vst [vmem:[%s221 + $0x30] sm:$0xff] %v3254
      %3423 = vst.msk [vmem:[%s221 + $0x38] sm:$0xff] %vm391, %v3255
      %3424 = vst [vmem:[%s221 + $0x40] sm:$0xff] %v3256
      %3425 = vst.msk [vmem:[%s221 + $0x48] sm:$0xff] %vm391, %v3257
      %3426 = vst [vmem:[%s221 + $0x50] sm:$0xff] %v3258
      %3427 = vst.msk [vmem:[%s221 + $0x58] sm:$0xff] %vm391, %v3259
      %3428 = vst [vmem:[%s221 + $0x60] sm:$0xff] %v3260
      %3429 = vst.msk [vmem:[%s221 + $0x68] sm:$0xff] %vm391, %v3261
      %3430 = vst [vmem:[%s221 + $0x70] sm:$0xff] %v3262
      %3431 = vst.msk [vmem:[%s221 + $0x78] sm:$0xff] %vm391, %v3263
      %3432 = vst [vmem:[%s221 + $0x80] sm:$0xff] %v3264
      %3433 = vst.msk [vmem:[%s221 + $0x88] sm:$0xff] %vm391, %v3265
      %3434 = vst [vmem:[%s221 + $0x90] sm:$0xff] %v3266
      %3435 = vst.msk [vmem:[%s221 + $0x98] sm:$0xff] %vm391, %v3267
      %3436 = vst [vmem:[%s221 + $0xa0] sm:$0xff] %v3268
      %3437 = vst.msk [vmem:[%s221 + $0xa8] sm:$0xff] %vm391, %v3269
      %3438 = vst [vmem:[%s221 + $0xb0] sm:$0xff] %v3270
      %3439 = vst.msk [vmem:[%s221 + $0xb8] sm:$0xff] %vm391, %v3271
      %3440 = vst [vmem:[%s221 + $0xc0] sm:$0xff] %v3272
      %3441 = vst.msk [vmem:[%s221 + $0xc8] sm:$0xff] %vm391, %v3273
      %3442 = vst [vmem:[%s221 + $0xd0] sm:$0xff] %v3274
      %3443 = vst.msk [vmem:[%s221 + $0xd8] sm:$0xff] %vm391, %v3275
      %3444 = vst [vmem:[%s221 + $0xe0] sm:$0xff] %v3276
      %3445 = vst.msk [vmem:[%s221 + $0xe8] sm:$0xff] %vm391, %v3277
      %3446 = vst [vmem:[%s221 + $0xf0] sm:$0xff] %v3278
      %3447 = vst.msk [vmem:[%s221 + $0xf8] sm:$0xff] %vm391, %v3279
      %3448 = vst [vmem:[%s221 + $0x100] sm:$0xff] %v3280
      %3449 = vst.msk [vmem:[%s221 + $0x108] sm:$0xff] %vm391, %v3281
      %3450 = vst [vmem:[%s221 + $0x110] sm:$0xff] %v3282
      %3451 = vst.msk [vmem:[%s221 + $0x118] sm:$0xff] %vm391, %v3283
      %3452 = vst [vmem:[%s221 + $0x120] sm:$0xff] %v3284
      %3453 = vst.msk [vmem:[%s221 + $0x128] sm:$0xff] %vm391, %v3285
      %3454 = vst [vmem:[%s221 + $0x130] sm:$0xff] %v3286
      %3455 = vst.msk [vmem:[%s221 + $0x138] sm:$0xff] %vm391, %v3287
      %3456 = vst [vmem:[%s221 + $0x140] sm:$0xff] %v3288
      %3457 = vst.msk [vmem:[%s221 + $0x148] sm:$0xff] %vm391, %v3289
      %3458 = vst [vmem:[%s221 + $0x150] sm:$0xff] %v3290
      %3459 = vst.msk [vmem:[%s221 + $0x158] sm:$0xff] %vm391, %v3291
      %3460 = vst [vmem:[%s221 + $0x160] sm:$0xff] %v3292
      %3461 = vst.msk [vmem:[%s221 + $0x168] sm:$0xff] %vm391, %v3293
      %3462 = vst [vmem:[%s221 + $0x170] sm:$0xff] %v3294
      %3463 = vst.msk [vmem:[%s221 + $0x178] sm:$0xff] %vm391, %v3295
      %3464 = vst [vmem:[%s221 + $0x180] sm:$0xff] %v3296
      %3465 = vst.msk [vmem:[%s221 + $0x188] sm:$0xff] %vm391, %v3297
      %3466 = vst [vmem:[%s221 + $0x190] sm:$0xff] %v3298
      %3467 = vst.msk [vmem:[%s221 + $0x198] sm:$0xff] %vm391, %v3299
      %3468 = vst [vmem:[%s221 + $0x1a0] sm:$0xff] %v3300
      %3469 = vst.msk [vmem:[%s221 + $0x1a8] sm:$0xff] %vm391, %v3301
      %3470 = vst [vmem:[%s221 + $0x1b0] sm:$0xff] %v3302
      %3471 = vst.msk [vmem:[%s221 + $0x1b8] sm:$0xff] %vm391, %v3303
      %3472 = vst [vmem:[%s221 + $0x1c0] sm:$0xff] %v3304
      %3473 = vst.msk [vmem:[%s221 + $0x1c8] sm:$0xff] %vm391, %v3305
      %3474 = vst [vmem:[%s221 + $0x1d0] sm:$0xff] %v3306
      %3475 = vst.msk [vmem:[%s221 + $0x1d8] sm:$0xff] %vm391, %v3307
      %3476 = vst [vmem:[%s221 + $0x1e0] sm:$0xff] %v3308
      %3477 = vst.msk [vmem:[%s221 + $0x1e8] sm:$0xff] %vm391, %v3309
      %3478 = vst [vmem:[%s221 + $0x1f0] sm:$0xff] %v3310
      %3479 = vst.msk [vmem:[%s221 + $0x1f8] sm:$0xff] %vm391, %v3311
      %3480 = vst [vmem:[%s221 + $0x200] sm:$0xff] %v3312
      %3481 = vst.msk [vmem:[%s221 + $0x208] sm:$0xff] %vm391, %v3313
      %3482 = vst [vmem:[%s221 + $0x210] sm:$0xff] %v3314
      %3483 = vst.msk [vmem:[%s221 + $0x218] sm:$0xff] %vm391, %v3315
      %3484 = vst [vmem:[%s221 + $0x220] sm:$0xff] %v3316
      %3485 = vst.msk [vmem:[%s221 + $0x228] sm:$0xff] %vm391, %v3317
      %3486 = vst [vmem:[%s221 + $0x230] sm:$0xff] %v3318
      %3487 = vst.msk [vmem:[%s221 + $0x238] sm:$0xff] %vm391, %v3319
      %3488 = vst [vmem:[%s221 + $0x240] sm:$0xff] %v3320
      %3489 = vst.msk [vmem:[%s221 + $0x248] sm:$0xff] %vm391, %v3321
      %3490 = vst [vmem:[%s221 + $0x250] sm:$0xff] %v3322
      %3491 = vst.msk [vmem:[%s221 + $0x258] sm:$0xff] %vm391, %v3323
      %3492 = vst [vmem:[%s221 + $0x260] sm:$0xff] %v3324
      %3493 = vst.msk [vmem:[%s221 + $0x268] sm:$0xff] %vm391, %v3325
      %3494 = vst [vmem:[%s221 + $0x270] sm:$0xff] %v3326
      %3495 = vst.msk [vmem:[%s221 + $0x278] sm:$0xff] %vm391, %v3327
      %3496 = vst [vmem:[%s221 + $0x280] sm:$0xff] %v3328
      %3497 = vst.msk [vmem:[%s221 + $0x288] sm:$0xff] %vm391, %v3329
      %3498 = vst [vmem:[%s221 + $0x290] sm:$0xff] %v3330
      %3499 = vst.msk [vmem:[%s221 + $0x298] sm:$0xff] %vm391, %v3331
      %3500 = vst [vmem:[%s221 + $0x2a0] sm:$0xff] %v3332
      %3501 = vst.msk [vmem:[%s221 + $0x2a8] sm:$0xff] %vm391, %v3333
      %3502 = vst [vmem:[%s221 + $0x2b0] sm:$0xff] %v3334
      %3503 = vst.msk [vmem:[%s221 + $0x2b8] sm:$0xff] %vm391, %v3335
      %3504 = vst [vmem:[%s221 + $0x2c0] sm:$0xff] %v3336
      %3505 = vst.msk [vmem:[%s221 + $0x2c8] sm:$0xff] %vm391, %v3337
      %3506 = vst [vmem:[%s221 + $0x2d0] sm:$0xff] %v3338
      %3507 = vst.msk [vmem:[%s221 + $0x2d8] sm:$0xff] %vm391, %v3339
      %3508 = vst [vmem:[%s221 + $0x2e0] sm:$0xff] %v3340
      %3509 = vst.msk [vmem:[%s221 + $0x2e8] sm:$0xff] %vm391, %v3341
      %3510 = vst [vmem:[%s221 + $0x2f0] sm:$0xff] %v3342
      %3511 = vst.msk [vmem:[%s221 + $0x2f8] sm:$0xff] %vm391, %v3343
      %3512 = vst [vmem:[%s221 + $0x300] sm:$0xff] %v3344
      %3513 = vst.msk [vmem:[%s221 + $0x308] sm:$0xff] %vm391, %v3345
      %3514 = vst [vmem:[%s221 + $0x310] sm:$0xff] %v3346
      %3515 = vst.msk [vmem:[%s221 + $0x318] sm:$0xff] %vm391, %v3347
      %3516 = vst [vmem:[%s221 + $0x320] sm:$0xff] %v3348
      %3517 = vst.msk [vmem:[%s221 + $0x328] sm:$0xff] %vm391, %v3349
      %3518 = vst [vmem:[%s221 + $0x330] sm:$0xff] %v3350
      %3519 = vst.msk [vmem:[%s221 + $0x338] sm:$0xff] %vm391, %v3351
      %3520 = vst [vmem:[%s221 + $0x340] sm:$0xff] %v3352
      %3521 = vst.msk [vmem:[%s221 + $0x348] sm:$0xff] %vm391, %v3353
      %3522 = vst [vmem:[%s221 + $0x350] sm:$0xff] %v3354
      %3523 = vst.msk [vmem:[%s221 + $0x358] sm:$0xff] %vm391, %v3355
      %3524 = vst [vmem:[%s221 + $0x360] sm:$0xff] %v3356
      %3525 = vst.msk [vmem:[%s221 + $0x368] sm:$0xff] %vm391, %v3357
      %3526 = vst [vmem:[%s221 + $0x370] sm:$0xff] %v3358
      %3527 = vst.msk [vmem:[%s221 + $0x378] sm:$0xff] %vm391, %v3359
      %3528 = vst [vmem:[%s221 + $0x380] sm:$0xff] %v3360
      %3529 = vst.msk [vmem:[%s221 + $0x388] sm:$0xff] %vm391, %v3361
      %3530 = vst [vmem:[%s221 + $0x390] sm:$0xff] %v3362
      %3531 = vst.msk [vmem:[%s221 + $0x398] sm:$0xff] %vm391, %v3363
      %3532 = vst [vmem:[%s221 + $0x3a0] sm:$0xff] %v3364
      %3533 = vst.msk [vmem:[%s221 + $0x3a8] sm:$0xff] %vm391, %v3365
      %3534 = vst [vmem:[%s221 + $0x3b0] sm:$0xff] %v3366
      %3535 = vst.msk [vmem:[%s221 + $0x3b8] sm:$0xff] %vm391, %v3367
      %3536 = vst [vmem:[%s221 + $0x3c0] sm:$0xff] %v3368
      %3537 = vst.msk [vmem:[%s221 + $0x3c8] sm:$0xff] %vm391, %v3369
      %3538 = vst [vmem:[%s221 + $0x3d0] sm:$0xff] %v3370
      %3539 = vst.msk [vmem:[%s221 + $0x3d8] sm:$0xff] %vm391, %v3371
      %3540 = vst [vmem:[%s221 + $0x3e0] sm:$0xff] %v3372
      %3541 = vst.msk [vmem:[%s221 + $0x3e8] sm:$0xff] %vm391, %v3373
      %3542 = vst [vmem:[%s221 + $0x3f0] sm:$0xff] %v3374
      %3543 = vst.msk [vmem:[%s221 + $0x3f8] sm:$0xff] %vm391, %v3375
      %3544 = vst [vmem:[%s221 + $0x400] sm:$0xff] %v3376
      %3545 = vst.msk [vmem:[%s221 + $0x408] sm:$0xff] %vm391, %v3377
      %3546 = vst [vmem:[%s221 + $0x410] sm:$0xff] %v3378
      %3547 = vst.msk [vmem:[%s221 + $0x418] sm:$0xff] %vm391, %v3379
      %3548 = vst [vmem:[%s221 + $0x420] sm:$0xff] %v3380
      %3549 = vst.msk [vmem:[%s221 + $0x428] sm:$0xff] %vm391, %v3381
      %3550 = vst [vmem:[%s221 + $0x430] sm:$0xff] %v3382
      %3551 = vst.msk [vmem:[%s221 + $0x438] sm:$0xff] %vm391, %v3383
      %3552 = vst [vmem:[%s221 + $0x440] sm:$0xff] %v3384
      %3553 = vst.msk [vmem:[%s221 + $0x448] sm:$0xff] %vm391, %v3385
      %3554 = vst [vmem:[%s221 + $0x450] sm:$0xff] %v3386
      %3555 = vst.msk [vmem:[%s221 + $0x458] sm:$0xff] %vm391, %v3387
      %3556 = vst [vmem:[%s221 + $0x460] sm:$0xff] %v3388
      %3557 = vst.msk [vmem:[%s221 + $0x468] sm:$0xff] %vm391, %v3389
      %3558 = vst [vmem:[%s221 + $0x470] sm:$0xff] %v3390
      %3559 = vst.msk [vmem:[%s221 + $0x478] sm:$0xff] %vm391, %v3391
      %3560 = vst [vmem:[%s221 + $0x480] sm:$0xff] %v3392
      %3561 = vst.msk [vmem:[%s221 + $0x488] sm:$0xff] %vm391, %v3393
      %3562 = vst [vmem:[%s221 + $0x490] sm:$0xff] %v3394
      %3563 = vst.msk [vmem:[%s221 + $0x498] sm:$0xff] %vm391, %v3395
      %3564 = vst [vmem:[%s221 + $0x4a0] sm:$0xff] %v3396
      %3565 = vst.msk [vmem:[%s221 + $0x4a8] sm:$0xff] %vm391, %v3397
      %3566 = vst [vmem:[%s221 + $0x4b0] sm:$0xff] %v3398
      %3567 = vst.msk [vmem:[%s221 + $0x4b8] sm:$0xff] %vm391, %v3399
      %3568 = vst [vmem:[%s221 + $0x4c0] sm:$0xff] %v3400
      %3569 = vst.msk [vmem:[%s221 + $0x4c8] sm:$0xff] %vm391, %v3401
      %3570 = vst [vmem:[%s221 + $0x4d0] sm:$0xff] %v3402
      %3571 = vst.msk [vmem:[%s221 + $0x4d8] sm:$0xff] %vm391, %v3403
      %3572 = vst [vmem:[%s221 + $0x4e0] sm:$0xff] %v3404
      %3573 = vst.msk [vmem:[%s221 + $0x4e8] sm:$0xff] %vm391, %v3405
      %3574 = vst [vmem:[%s221 + $0x4f0] sm:$0xff] %v3406
      %3575 = vst.msk [vmem:[%s221 + $0x4f8] sm:$0xff] %vm391, %v3407
      %3576 = vst [vmem:[%s221 + $0x500] sm:$0xff] %v3408
      %3577 = vst.msk [vmem:[%s221 + $0x508] sm:$0xff] %vm391, %v3409
      %3578 = vst [vmem:[%s221 + $0x510] sm:$0xff] %v3410
      %3579 = vst.msk [vmem:[%s221 + $0x518] sm:$0xff] %vm391, %v3411
      %3580 = vst [vmem:[%s221 + $0x520] sm:$0xff] %v3412
      %3581 = vst.msk [vmem:[%s221 + $0x528] sm:$0xff] %vm391, %v3413
      %3582 = vst [vmem:[%s221 + $0x530] sm:$0xff] %v3414
      %3583 = vst.msk [vmem:[%s221 + $0x538] sm:$0xff] %vm391, %v3415
      %s3584 = smul.u32 84, %s14
      %p3585 = scmp.lt.s32.totalorder %s3584, 167
      %s3586 = scalar_select %p3585, %s3584, 167
      %s3587 = smul.addr %s3586, 2
      %s3588 = smul.addr %s3587, 8
      %s3589 = scalar_lea.vmem %s3, %s3588
      // Predicated region
      $region33: #{tpu_custom_call.1} parent=31 // pred_check
        %p3590 = pneg %p110
      $region34: #{tpu_custom_call.1} parent=31 // pred_check_branch
        %3592 = sbr.rel (%p3590) target = $region36
      $region35: #{tpu_custom_call.1} parent=31 // pred_region
        %s3593 = smul.u32 84, %s14
      $region36: #{tpu_custom_call.1} parent=31 // pred_fallthru
        _
    $region32: #{tpu_custom_call.1} parent=5 // pred_fallthru
      _
    %p3594 = scmp.le.s32.totalorder 2, %s9
    // Predicated region
    $region37: #{tpu_custom_call.1} parent=5 // pred_check
      %p3595 = pneg %p3594
    $region38: #{tpu_custom_call.1} parent=5 // pred_check_branch
      %3597 = sbr.rel (%p3595) target = $region40
    $region39: #{tpu_custom_call.1} parent=5 // pred_region
      %s3598 = ssub.s32 %s9, 2
      // Predicated region
      $region41: #{tpu_custom_call.1} parent=39 // pred_check
        %p3599 = pneg %p116
      $region42: #{tpu_custom_call.1} parent=39 // pred_check_branch
        %3601 = sbr.rel (%p3599) target = $region44
      $region43: #{tpu_custom_call.1} parent=39 // pred_region
        %s3602 = smul.u32 84, %s15
        %p3603 = scmp.lt.s32.totalorder %s3602, 167
        %s3604 = scalar_select %p3603, %s3602, 167
        %s3605 = smul.addr %s3604, 2
        %s3606 = smul.addr %s3605, 8
        %s3607 = scalar_lea.vmem %s3, %s3606
      $region44: #{tpu_custom_call.1} parent=39 // pred_fallthru
        _
    $region40: #{tpu_custom_call.1} parent=5 // pred_fallthru
      _
  $region6: #{tpu_custom_call.1} parent=0 // loop_footer
    %s13 = sadd.s32 1, %s9
  $region7: #{tpu_custom_call.1} parent=0 // loop_footer_branch
    %8 = sbr.rel target = $region3
  $region8: #{tpu_custom_call.1} parent=0 // loop_exit
    _

</llo_original>
